<compile_context>
chip_gen: v7x
topology: tpu7x:2x2x1
jax: 0.10.0
libtpu: 0.0.40
codegen_flags: <defaults>
</compile_context>

<pallas_src>
import functools

import jax
import jax.numpy as jnp
from jax.experimental import pallas as pl
from jax.experimental.pallas import tpu as pltpu

BN_EPS = 1e-5


def _round_up(x, m):
    return (x + m - 1) // m * m


def _choose_tile(m):
    for t in (1024, 512, 256, 128):
        if m % t == 0:
            return t
    return m


# ----------------------------------------------------------------------------
# Pallas kernels
# ----------------------------------------------------------------------------
def _conv_stats_kernel(p_ref, w_ref, g_ref, b_ref,
                       y_ref, scale_ref, shift_ref,
                       sum_ref, ssq_ref, *, inv_m):
    """Pass 1: conv matmul tile + per-channel batch-stat accumulation.

    p_ref  : (Kpad, TM)  bf16 im2col patch tile (K = 9*Cin zero-padded)
    w_ref  : (Cout, Kpad) bf16 weights (resident across the grid)
    g_ref/b_ref : (Cout, 1) f32 BatchNorm gamma / beta
    y_ref  : (Cout, TM) f32 pre-BN conv output tile
    scale_ref/shift_ref : (Cout, 1) f32 fused BN scale/shift (written last step)
    sum_ref/ssq_ref : (Cout, 1) f32 VMEM scratch accumulators
    """
    i = pl.program_id(0)

    @pl.when(i == 0)
    def _():
        sum_ref[...] = jnp.zeros_like(sum_ref)
        ssq_ref[...] = jnp.zeros_like(ssq_ref)

    # Single K=9*Cin MXU matmul (bf16 in, f32 accumulate).  Conv bias omitted:
    # it is a no-op under the training-mode BatchNorm that follows.
    acc = jnp.dot(w_ref[...], p_ref[...], preferred_element_type=jnp.float32)
    y_ref[...] = acc
    sum_ref[...] += jnp.sum(acc, axis=1, keepdims=True)
    ssq_ref[...] += jnp.sum(acc * acc, axis=1, keepdims=True)

    @pl.when(i == pl.num_programs(0) - 1)
    def _():
        mean = sum_ref[...] * inv_m
        var = ssq_ref[...] * inv_m - mean * mean          # E[x^2] - E[x]^2
        rstd = jax.lax.rsqrt(var + BN_EPS)
        s = g_ref[...] * rstd
        scale_ref[...] = s
        shift_ref[...] = b_ref[...] - mean * s


def _bn_relu_kernel(y_ref, scale_ref, shift_ref, o_ref):
    """Pass 2 (no residual): ReLU(y*scale + shift), tiled over M (lanes)."""
    o_ref[...] = jnp.maximum(y_ref[...] * scale_ref[...] + shift_ref[...], 0.0)


def _bn_res_relu_kernel(y_ref, scale_ref, shift_ref, res_ref, o_ref):
    """Pass 2 (+residual): ReLU(y*scale + shift + residual)."""
    z = y_ref[...] * scale_ref[...] + shift_ref[...] + res_ref[...]
    o_ref[...] = jnp.maximum(z, 0.0)


def _linear_kernel(x_ref, w_ref, b_ref, o_ref, *, apply_tanh):
    """y = x @ W + b  [+ tanh]   x:(N,K) bf16  W:(K,F) bf16  b:(1,F)  y:(N,F)"""
    y = jnp.dot(x_ref[...], w_ref[...], preferred_element_type=jnp.float32)
    y = y + b_ref[...]
    if apply_tanh:
        y = jnp.tanh(y)
    o_ref[...] = y


# ----------------------------------------------------------------------------
# Wrappers (glue: padding / im2col / reshapes)
# ----------------------------------------------------------------------------
def conv_bn_relu(a, p, residual=None):
    """3x3 conv (stride 1, pad 1) + BatchNorm(batch stats) [+res] + ReLU.

    a        : (Cin, N, H, W) channel-first activation
    residual : (Cout, N, H, W) or None
    returns  : (Cout, N, H, W)
    """
    cin, n, h, w = a.shape
    cout, kpad = p["w"].shape
    m = n * h * w
    k = 9 * cin

    # im2col in XLA glue: rows ordered (kh, kw, ci), columns ordered (n, h, w).
    ap = jnp.pad(a, ((0, 0), (0, 0), (1, 1), (1, 1)))
    patches = jnp.concatenate(
        [ap[:, :, kh:kh + h, kw:kw + w].reshape(cin, m)
         for kh in range(3) for kw in range(3)], axis=0)
    if kpad != k:
        patches = jnp.pad(patches, ((0, kpad - k), (0, 0)))
    patches = patches.astype(jnp.bfloat16)

    tm = _choose_tile(m)
    grid = (m // tm,)

    # Pass 1: conv matmul + batch statistics -> fused per-channel scale/shift.
    y, scale, shift = pl.pallas_call(
        functools.partial(_conv_stats_kernel, inv_m=1.0 / m),
        out_shape=(jax.ShapeDtypeStruct((cout, m), jnp.float32),
                   jax.ShapeDtypeStruct((cout, 1), jnp.float32),
                   jax.ShapeDtypeStruct((cout, 1), jnp.float32)),
        grid=grid,
        in_specs=[
            pl.BlockSpec((kpad, tm), lambda i: (0, i)),    # patch tile
            pl.BlockSpec((cout, kpad), lambda i: (0, 0)),  # resident weights
            pl.BlockSpec((cout, 1), lambda i: (0, 0)),     # gamma
            pl.BlockSpec((cout, 1), lambda i: (0, 0)),     # beta
        ],
        out_specs=(
            pl.BlockSpec((cout, tm), lambda i: (0, i)),    # pre-BN conv out
            pl.BlockSpec((cout, 1), lambda i: (0, 0)),     # fused scale
            pl.BlockSpec((cout, 1), lambda i: (0, 0)),     # fused shift
        ),
        scratch_shapes=[pltpu.VMEM((cout, 1), jnp.float32),
                        pltpu.VMEM((cout, 1), jnp.float32)],
        compiler_params=pltpu.CompilerParams(
            dimension_semantics=("arbitrary",)),
    )(patches, p["w"], p["gamma"], p["beta"])

    # Pass 2: normalize + optional residual + ReLU (parallel over M tiles).
    if residual is None:
        kernel = _bn_relu_kernel
        extra_in = ()
        extra_specs = ()
    else:
        kernel = _bn_res_relu_kernel
        extra_in = (residual.reshape(cout, m),)
        extra_specs = (pl.BlockSpec((cout, tm), lambda i: (0, i)),)

    out = pl.pallas_call(
        kernel,
        out_shape=jax.ShapeDtypeStruct((cout, m), jnp.float32),
        grid=grid,
        in_specs=[pl.BlockSpec((cout, tm), lambda i: (0, i)),
                  pl.BlockSpec((cout, 1), lambda i: (0, 0)),
                  pl.BlockSpec((cout, 1), lambda i: (0, 0)),
                  *extra_specs],
        out_specs=pl.BlockSpec((cout, tm), lambda i: (0, i)),
        compiler_params=pltpu.CompilerParams(
            dimension_semantics=("parallel",)),
    )(y, scale, shift, *extra_in)

    return out.reshape(cout, n, h, w)


def linear(x, w, b, apply_tanh=False):
    n, k = x.shape
    f = w.shape[-1]
    kernel = functools.partial(_linear_kernel, apply_tanh=apply_tanh)
    return pl.pallas_call(
        kernel,
        out_shape=jax.ShapeDtypeStruct((n, f), jnp.float32),
        grid=(1,),
        in_specs=[pl.BlockSpec((n, k), lambda i: (0, 0)),
                  pl.BlockSpec((k, f), lambda i: (0, 0)),
                  pl.BlockSpec((1, f), lambda i: (0, 0))],
        out_specs=pl.BlockSpec((n, f), lambda i: (0, 0)),
    )(x.astype(jnp.bfloat16), w, b)


# ----------------------------------------------------------------------------
# Parameter construction (deterministic, synthetic; mirrors PyTorch layouts)
# ----------------------------------------------------------------------------
def _conv_params(key, cin, cout):
    # PyTorch conv weight (Cout, Cin, 3, 3) -> (Cout, 3, 3, Cin) -> (Cout, 9*Cin)
    # column order (kh, kw, ci) matching the im2col row order.  K is zero-padded
    # to a multiple of 32 for clean bf16 MXU alignment.  Conv bias is omitted
    # (exactly cancelled by the training-mode BatchNorm mean subtraction).
    w = jax.random.normal(key, (cout, cin, 3, 3), jnp.float32) * 0.1
    k = 9 * cin
    kpad = _round_up(k, 32)
    w2 = jnp.transpose(w, (0, 2, 3, 1)).reshape(cout, k)
    w2 = jnp.pad(w2, ((0, 0), (0, kpad - k))).astype(jnp.bfloat16)
    gamma = jnp.ones((cout, 1), jnp.float32)   # BN affine init
    beta = jnp.zeros((cout, 1), jnp.float32)
    return dict(w=w2, gamma=gamma, beta=beta)


def _linear_params(key, fin, fout):
    kw, kb = jax.random.split(key)
    w = (jax.random.normal(kw, (fin, fout), jnp.float32) * 0.05).astype(jnp.bfloat16)
    b = jax.random.normal(kb, (1, fout), jnp.float32) * 0.05
    return dict(w=w, b=b)


def make_resnet_params(key, num_res_blocks, num_hidden, rows, cols, action_size):
    keys = jax.random.split(key, 2 * num_res_blocks + 5)
    params = {
        "start": _conv_params(keys[0], 3, num_hidden),
        "blocks": [],
        "policy_conv": _conv_params(keys[1], num_hidden, 32),
        "policy_fc": _linear_params(keys[2], 32 * rows * cols, action_size),
        "value_conv": _conv_params(keys[3], num_hidden, 3),
        "value_fc": _linear_params(keys[4], 3 * rows * cols, 1),
    }
    for r in range(num_res_blocks):
        params["blocks"].append({
            "conv1": _conv_params(keys[5 + 2 * r], num_hidden, num_hidden),
            "conv2": _conv_params(keys[6 + 2 * r], num_hidden, num_hidden),
        })
    return params


# ----------------------------------------------------------------------------
# Forward pass
# ----------------------------------------------------------------------------
def resnet_forward(params, x_nchw):
    n = x_nchw.shape[0]
    a = jnp.transpose(x_nchw, (1, 0, 2, 3))         # NCHW -> channel-first (C,N,H,W)

    x = conv_bn_relu(a, params["start"])
    for blk in params["blocks"]:
        res = x
        hmid = conv_bn_relu(x, blk["conv1"])
        x = conv_bn_relu(hmid, blk["conv2"], residual=res)

    # policy head: channel-first layout already has channels-major order, so the
    # flatten only needs a tiny (C,N) axis swap to match PyTorch NCHW flatten.
    ph = conv_bn_relu(x, params["policy_conv"])                  # (32, N, H, W)
    ph_flat = jnp.transpose(ph, (1, 0, 2, 3)).reshape(n, -1)
    policy = linear(ph_flat, params["policy_fc"]["w"], params["policy_fc"]["b"])

    # value head
    vh = conv_bn_relu(x, params["value_conv"])                   # (3, N, H, W)
    vh_flat = jnp.transpose(vh, (1, 0, 2, 3)).reshape(n, -1)
    value = linear(vh_flat, params["value_fc"]["w"], params["value_fc"]["b"],
                   apply_tanh=True)
    return policy, value


# ----------------------------------------------------------------------------
if __name__ == "__main__":
    # small "game": 8x8 board, 64 actions; batch=2, 3 input planes
    BATCH, ROWS, COLS = 2, 8, 8
    ACTION_SIZE = 64
    NUM_HIDDEN = 32
    NUM_RES_BLOCKS = 2

    key = jax.random.PRNGKey(0)
    k_params, k_x = jax.random.split(key)
    params = make_resnet_params(k_params, NUM_RES_BLOCKS, NUM_HIDDEN,
                                ROWS, COLS, ACTION_SIZE)
    x = jax.random.normal(k_x, (BATCH, 3, ROWS, COLS), jnp.float32)  # NCHW

    policy, value = jax.jit(resnet_forward)(params, x)
    jax.block_until_ready((policy, value))

    assert policy.shape == (BATCH, ACTION_SIZE) and value.shape == (BATCH, 1)
    assert bool(jnp.all(jnp.abs(value) <= 1.0))
    print("KERNEL_OK")
</pallas_src>

<mosaic_0001>
module attributes {stable_mosaic.version = 11 : i64} {
  func.func @_conv_stats_kernel(%arg0: i32, %arg1: memref<32x128xbf16, #tpu.memory_space<vmem>>, %arg2: memref<32x32xbf16, #tpu.memory_space<vmem>>, %arg3: memref<32x1xf32, #tpu.memory_space<vmem>>, %arg4: memref<32x1xf32, #tpu.memory_space<vmem>>, %arg5: memref<32x128xf32, #tpu.memory_space<vmem>>, %arg6: memref<32x1xf32, #tpu.memory_space<vmem>>, %arg7: memref<32x1xf32, #tpu.memory_space<vmem>>, %arg8: memref<32x1xf32, #tpu.memory_space<vmem>>, %arg9: memref<32x1xf32, #tpu.memory_space<vmem>>) attributes {dimension_semantics = [#tpu.dimension_semantics<arbitrary>], iteration_bounds = array<i64: 1>, scalar_prefetch = 0 : i64, scratch_operands = 2 : i64, tpu.core_type = #tpu.core_type<tc>, window_params = [{transform_indices = @transform_0, window_bounds = array<i64: 32, 128>}, {pipeline_mode = #tpu.pipeline_mode<synchronous>, transform_indices = @transform_1, window_bounds = array<i64: 32, 32>}, {pipeline_mode = #tpu.pipeline_mode<synchronous>, transform_indices = @transform_2, window_bounds = array<i64: 32, 1>}, {pipeline_mode = #tpu.pipeline_mode<synchronous>, transform_indices = @transform_3, window_bounds = array<i64: 32, 1>}, {transform_indices = @transform_4, window_bounds = array<i64: 32, 128>}, {pipeline_mode = #tpu.pipeline_mode<synchronous>, transform_indices = @transform_5, window_bounds = array<i64: 32, 1>}, {pipeline_mode = #tpu.pipeline_mode<synchronous>, transform_indices = @transform_6, window_bounds = array<i64: 32, 1>}]} {
    %c0_i32 = arith.constant 0 : i32
    %0 = arith.cmpi eq, %arg0, %c0_i32 : i32
    %1 = arith.extui %0 : i1 to i32
    %c0_i32_0 = arith.constant 0 : i32
    %2 = arith.cmpi ne, %1, %c0_i32_0 : i32
    scf.if %2 {
      %cst_18 = arith.constant 0.000000e+00 : f32
      %21 = vector.broadcast %cst_18 : f32 to vector<32x1xf32>
      %c0_19 = arith.constant 0 : index
      %c0_20 = arith.constant 0 : index
      %22 = vector.load %arg8[%c0_19, %c0_20] : memref<32x1xf32, #tpu.memory_space<vmem>>, vector<32x1xf32>
      tpu.vector_store %arg8[%c0_19, %c0_20], %21 {strides = array<i32>} : memref<32x1xf32, #tpu.memory_space<vmem>>, vector<32x1xf32>,
      %cst_21 = arith.constant 0.000000e+00 : f32
      %23 = vector.broadcast %cst_21 : f32 to vector<32x1xf32>
      %c0_22 = arith.constant 0 : index
      %c0_23 = arith.constant 0 : index
      %24 = vector.load %arg9[%c0_22, %c0_23] : memref<32x1xf32, #tpu.memory_space<vmem>>, vector<32x1xf32>
      tpu.vector_store %arg9[%c0_22, %c0_23], %23 {strides = array<i32>} : memref<32x1xf32, #tpu.memory_space<vmem>>, vector<32x1xf32>,
    } else {
    }
    %c0 = arith.constant 0 : index
    %c0_1 = arith.constant 0 : index
    %3 = vector.load %arg2[%c0, %c0_1] : memref<32x32xbf16, #tpu.memory_space<vmem>>, vector<32x32xbf16>
    %c0_2 = arith.constant 0 : index
    %c0_3 = arith.constant 0 : index
    %4 = vector.load %arg1[%c0_2, %c0_3] : memref<32x128xbf16, #tpu.memory_space<vmem>>, vector<32x128xbf16>
    %cst = arith.constant dense<0.000000e+00> : vector<32x128xf32>
    %5 = tpu.matmul %3, %4, %cst {dimension_numbers = #tpu.dot_dimension_numbers<[1], [0], [0], [1], [0, 0, 1, 1], [], []>} : vector<32x32xbf16>, vector<32x128xbf16>, vector<32x128xf32> -> vector<32x128xf32>
    %c0_4 = arith.constant 0 : index
    %c0_5 = arith.constant 0 : index
    %6 = vector.load %arg5[%c0_4, %c0_5] : memref<32x128xf32, #tpu.memory_space<vmem>>, vector<32x128xf32>
    tpu.vector_store %arg5[%c0_4, %c0_5], %5 {strides = array<i32>} : memref<32x128xf32, #tpu.memory_space<vmem>>, vector<32x128xf32>,
    %c0_6 = arith.constant 0 : index
    %c0_7 = arith.constant 0 : index
    %7 = vector.load %arg8[%c0_6, %c0_7] : memref<32x1xf32, #tpu.memory_space<vmem>>, vector<32x1xf32>
    %cst_8 = arith.constant dense<0.000000e+00> : vector<32xf32>
    %8 = vector.multi_reduction <add>, %5, %cst_8 [1] : vector<32x128xf32> to vector<32xf32>
    %9 = vector.shape_cast %8 : vector<32xf32> to vector<32x1xf32>
    %10 = arith.addf %7, %9 : vector<32x1xf32>
    %c0_9 = arith.constant 0 : index
    %c0_10 = arith.constant 0 : index
    %11 = vector.load %arg8[%c0_9, %c0_10] : memref<32x1xf32, #tpu.memory_space<vmem>>, vector<32x1xf32>
    tpu.vector_store %arg8[%c0_9, %c0_10], %10 {strides = array<i32>} : memref<32x1xf32, #tpu.memory_space<vmem>>, vector<32x1xf32>,
    %c0_11 = arith.constant 0 : index
    %c0_12 = arith.constant 0 : index
    %12 = vector.load %arg9[%c0_11, %c0_12] : memref<32x1xf32, #tpu.memory_space<vmem>>, vector<32x1xf32>
    %13 = arith.mulf %5, %5 : vector<32x128xf32>
    %cst_13 = arith.constant dense<0.000000e+00> : vector<32xf32>
    %14 = vector.multi_reduction <add>, %13, %cst_13 [1] : vector<32x128xf32> to vector<32xf32>
    %15 = vector.shape_cast %14 : vector<32xf32> to vector<32x1xf32>
    %16 = arith.addf %12, %15 : vector<32x1xf32>
    %c0_14 = arith.constant 0 : index
    %c0_15 = arith.constant 0 : index
    %17 = vector.load %arg9[%c0_14, %c0_15] : memref<32x1xf32, #tpu.memory_space<vmem>>, vector<32x1xf32>
    tpu.vector_store %arg9[%c0_14, %c0_15], %16 {strides = array<i32>} : memref<32x1xf32, #tpu.memory_space<vmem>>, vector<32x1xf32>,
    %c0_i32_16 = arith.constant 0 : i32
    %18 = arith.cmpi eq, %arg0, %c0_i32_16 : i32
    %19 = arith.extui %18 : i1 to i32
    %c0_i32_17 = arith.constant 0 : i32
    %20 = arith.cmpi ne, %19, %c0_i32_17 : i32
    scf.if %20 {
      %c0_18 = arith.constant 0 : index
      %c0_19 = arith.constant 0 : index
      %21 = vector.load %arg8[%c0_18, %c0_19] : memref<32x1xf32, #tpu.memory_space<vmem>>, vector<32x1xf32>
      %cst_20 = arith.constant 7.812500e-03 : f32
      %22 = vector.broadcast %cst_20 : f32 to vector<32x1xf32>
      %23 = arith.mulf %21, %22 : vector<32x1xf32>
      %c0_21 = arith.constant 0 : index
      %c0_22 = arith.constant 0 : index
      %24 = vector.load %arg9[%c0_21, %c0_22] : memref<32x1xf32, #tpu.memory_space<vmem>>, vector<32x1xf32>
      %cst_23 = arith.constant 7.812500e-03 : f32
      %25 = vector.broadcast %cst_23 : f32 to vector<32x1xf32>
      %26 = arith.mulf %24, %25 : vector<32x1xf32>
      %27 = arith.mulf %23, %23 : vector<32x1xf32>
      %28 = arith.subf %26, %27 : vector<32x1xf32>
      %cst_24 = arith.constant 9.99999974E-6 : f32
      %29 = vector.broadcast %cst_24 : f32 to vector<32x1xf32>
      %30 = arith.addf %28, %29 : vector<32x1xf32>
      %31 = math.rsqrt %30 : vector<32x1xf32>
      %c0_25 = arith.constant 0 : index
      %c0_26 = arith.constant 0 : index
      %32 = vector.load %arg3[%c0_25, %c0_26] : memref<32x1xf32, #tpu.memory_space<vmem>>, vector<32x1xf32>
      %33 = arith.mulf %32, %31 : vector<32x1xf32>
      %c0_27 = arith.constant 0 : index
      %c0_28 = arith.constant 0 : index
      %34 = vector.load %arg6[%c0_27, %c0_28] : memref<32x1xf32, #tpu.memory_space<vmem>>, vector<32x1xf32>
      tpu.vector_store %arg6[%c0_27, %c0_28], %33 {strides = array<i32>} : memref<32x1xf32, #tpu.memory_space<vmem>>, vector<32x1xf32>,
      %c0_29 = arith.constant 0 : index
      %c0_30 = arith.constant 0 : index
      %35 = vector.load %arg4[%c0_29, %c0_30] : memref<32x1xf32, #tpu.memory_space<vmem>>, vector<32x1xf32>
      %36 = arith.mulf %23, %33 : vector<32x1xf32>
      %37 = arith.subf %35, %36 : vector<32x1xf32>
      %c0_31 = arith.constant 0 : index
      %c0_32 = arith.constant 0 : index
      %38 = vector.load %arg7[%c0_31, %c0_32] : memref<32x1xf32, #tpu.memory_space<vmem>>, vector<32x1xf32>
      tpu.vector_store %arg7[%c0_31, %c0_32], %37 {strides = array<i32>} : memref<32x1xf32, #tpu.memory_space<vmem>>, vector<32x1xf32>,
    } else {
    }
    return
  }
  func.func @transform_0(%arg0: i32) -> (i32, i32) {
    %c0_i32 = arith.constant 0 : i32
    %c0_i32_0 = arith.constant 0 : i32
    return %c0_i32, %arg0 : i32, i32
  }
  func.func @transform_1(%arg0: i32) -> (i32, i32) {
    %c0_i32 = arith.constant 0 : i32
    %c0_i32_0 = arith.constant 0 : i32
    %c0_i32_1 = arith.constant 0 : i32
    return %c0_i32, %c0_i32_0 : i32, i32
  }
  func.func @transform_2(%arg0: i32) -> (i32, i32) {
    %c0_i32 = arith.constant 0 : i32
    %c0_i32_0 = arith.constant 0 : i32
    %c0_i32_1 = arith.constant 0 : i32
    return %c0_i32, %c0_i32_0 : i32, i32
  }
  func.func @transform_3(%arg0: i32) -> (i32, i32) {
    %c0_i32 = arith.constant 0 : i32
    %c0_i32_0 = arith.constant 0 : i32
    %c0_i32_1 = arith.constant 0 : i32
    return %c0_i32, %c0_i32_0 : i32, i32
  }
  func.func @transform_4(%arg0: i32) -> (i32, i32) {
    %c0_i32 = arith.constant 0 : i32
    %c0_i32_0 = arith.constant 0 : i32
    return %c0_i32, %arg0 : i32, i32
  }
  func.func @transform_5(%arg0: i32) -> (i32, i32) {
    %c0_i32 = arith.constant 0 : i32
    %c0_i32_0 = arith.constant 0 : i32
    %c0_i32_1 = arith.constant 0 : i32
    return %c0_i32, %c0_i32_0 : i32, i32
  }
  func.func @transform_6(%arg0: i32) -> (i32, i32) {
    %c0_i32 = arith.constant 0 : i32
    %c0_i32_0 = arith.constant 0 : i32
    %c0_i32_1 = arith.constant 0 : i32
    return %c0_i32, %c0_i32_0 : i32, i32
  }
}

module attributes {stable_mosaic.version = 11 : i64} {
  func.func @_bn_relu_kernel(%arg0: i32, %arg1: memref<32x128xf32, #tpu.memory_space<vmem>>, %arg2: memref<32x1xf32, #tpu.memory_space<vmem>>, %arg3: memref<32x1xf32, #tpu.memory_space<vmem>>, %arg4: memref<32x128xf32, #tpu.memory_space<vmem>>) attributes {dimension_semantics = [#tpu.dimension_semantics<parallel>], iteration_bounds = array<i64: 1>, scalar_prefetch = 0 : i64, scratch_operands = 0 : i64, tpu.core_type = #tpu.core_type<tc>, window_params = [{transform_indices = @transform_0, window_bounds = array<i64: 32, 128>}, {pipeline_mode = #tpu.pipeline_mode<synchronous>, transform_indices = @transform_1, window_bounds = array<i64: 32, 1>}, {pipeline_mode = #tpu.pipeline_mode<synchronous>, transform_indices = @transform_2, window_bounds = array<i64: 32, 1>}, {transform_indices = @transform_3, window_bounds = array<i64: 32, 128>}]} {
    %c0 = arith.constant 0 : index
    %c0_0 = arith.constant 0 : index
    %0 = vector.load %arg1[%c0, %c0_0] : memref<32x128xf32, #tpu.memory_space<vmem>>, vector<32x128xf32>
    %c0_1 = arith.constant 0 : index
    %c0_2 = arith.constant 0 : index
    %1 = vector.load %arg2[%c0_1, %c0_2] : memref<32x1xf32, #tpu.memory_space<vmem>>, vector<32x1xf32>
    %2 = vector.broadcast %1 : vector<32x1xf32> to vector<32x128xf32>
    %3 = arith.mulf %0, %2 : vector<32x128xf32>
    %c0_3 = arith.constant 0 : index
    %c0_4 = arith.constant 0 : index
    %4 = vector.load %arg3[%c0_3, %c0_4] : memref<32x1xf32, #tpu.memory_space<vmem>>, vector<32x1xf32>
    %5 = vector.broadcast %4 : vector<32x1xf32> to vector<32x128xf32>
    %6 = arith.addf %3, %5 : vector<32x128xf32>
    %cst = arith.constant 0.000000e+00 : f32
    %7 = vector.broadcast %cst : f32 to vector<32x128xf32>
    %8 = arith.maximumf %6, %7 : vector<32x128xf32>
    %c0_5 = arith.constant 0 : index
    %c0_6 = arith.constant 0 : index
    %9 = vector.load %arg4[%c0_5, %c0_6] : memref<32x128xf32, #tpu.memory_space<vmem>>, vector<32x128xf32>
    tpu.vector_store %arg4[%c0_5, %c0_6], %8 {strides = array<i32>} : memref<32x128xf32, #tpu.memory_space<vmem>>, vector<32x128xf32>,
    return
  }
  func.func @transform_0(%arg0: i32) -> (i32, i32) {
    %c0_i32 = arith.constant 0 : i32
    %c0_i32_0 = arith.constant 0 : i32
    return %c0_i32, %arg0 : i32, i32
  }
  func.func @transform_1(%arg0: i32) -> (i32, i32) {
    %c0_i32 = arith.constant 0 : i32
    %c0_i32_0 = arith.constant 0 : i32
    %c0_i32_1 = arith.constant 0 : i32
    return %c0_i32, %c0_i32_0 : i32, i32
  }
  func.func @transform_2(%arg0: i32) -> (i32, i32) {
    %c0_i32 = arith.constant 0 : i32
    %c0_i32_0 = arith.constant 0 : i32
    %c0_i32_1 = arith.constant 0 : i32
    return %c0_i32, %c0_i32_0 : i32, i32
  }
  func.func @transform_3(%arg0: i32) -> (i32, i32) {
    %c0_i32 = arith.constant 0 : i32
    %c0_i32_0 = arith.constant 0 : i32
    return %c0_i32, %arg0 : i32, i32
  }
}

module attributes {stable_mosaic.version = 11 : i64} {
  func.func @_bn_res_relu_kernel(%arg0: i32, %arg1: memref<32x128xf32, #tpu.memory_space<vmem>>, %arg2: memref<32x1xf32, #tpu.memory_space<vmem>>, %arg3: memref<32x1xf32, #tpu.memory_space<vmem>>, %arg4: memref<32x128xf32, #tpu.memory_space<vmem>>, %arg5: memref<32x128xf32, #tpu.memory_space<vmem>>) attributes {dimension_semantics = [#tpu.dimension_semantics<parallel>], iteration_bounds = array<i64: 1>, scalar_prefetch = 0 : i64, scratch_operands = 0 : i64, tpu.core_type = #tpu.core_type<tc>, window_params = [{transform_indices = @transform_0, window_bounds = array<i64: 32, 128>}, {pipeline_mode = #tpu.pipeline_mode<synchronous>, transform_indices = @transform_1, window_bounds = array<i64: 32, 1>}, {pipeline_mode = #tpu.pipeline_mode<synchronous>, transform_indices = @transform_2, window_bounds = array<i64: 32, 1>}, {transform_indices = @transform_3, window_bounds = array<i64: 32, 128>}, {transform_indices = @transform_4, window_bounds = array<i64: 32, 128>}]} {
    %c0 = arith.constant 0 : index
    %c0_0 = arith.constant 0 : index
    %0 = vector.load %arg1[%c0, %c0_0] : memref<32x128xf32, #tpu.memory_space<vmem>>, vector<32x128xf32>
    %c0_1 = arith.constant 0 : index
    %c0_2 = arith.constant 0 : index
    %1 = vector.load %arg2[%c0_1, %c0_2] : memref<32x1xf32, #tpu.memory_space<vmem>>, vector<32x1xf32>
    %2 = vector.broadcast %1 : vector<32x1xf32> to vector<32x128xf32>
    %3 = arith.mulf %0, %2 : vector<32x128xf32>
    %c0_3 = arith.constant 0 : index
    %c0_4 = arith.constant 0 : index
    %4 = vector.load %arg3[%c0_3, %c0_4] : memref<32x1xf32, #tpu.memory_space<vmem>>, vector<32x1xf32>
    %5 = vector.broadcast %4 : vector<32x1xf32> to vector<32x128xf32>
    %6 = arith.addf %3, %5 : vector<32x128xf32>
    %c0_5 = arith.constant 0 : index
    %c0_6 = arith.constant 0 : index
    %7 = vector.load %arg4[%c0_5, %c0_6] : memref<32x128xf32, #tpu.memory_space<vmem>>, vector<32x128xf32>
    %8 = arith.addf %6, %7 : vector<32x128xf32>
    %cst = arith.constant 0.000000e+00 : f32
    %9 = vector.broadcast %cst : f32 to vector<32x128xf32>
    %10 = arith.maximumf %8, %9 : vector<32x128xf32>
    %c0_7 = arith.constant 0 : index
    %c0_8 = arith.constant 0 : index
    %11 = vector.load %arg5[%c0_7, %c0_8] : memref<32x128xf32, #tpu.memory_space<vmem>>, vector<32x128xf32>
    tpu.vector_store %arg5[%c0_7, %c0_8], %10 {strides = array<i32>} : memref<32x128xf32, #tpu.memory_space<vmem>>, vector<32x128xf32>,
    return
  }
  func.func @transform_0(%arg0: i32) -> (i32, i32) {
    %c0_i32 = arith.constant 0 : i32
    %c0_i32_0 = arith.constant 0 : i32
    return %c0_i32, %arg0 : i32, i32
  }
  func.func @transform_1(%arg0: i32) -> (i32, i32) {
    %c0_i32 = arith.constant 0 : i32
    %c0_i32_0 = arith.constant 0 : i32
    %c0_i32_1 = arith.constant 0 : i32
    return %c0_i32, %c0_i32_0 : i32, i32
  }
  func.func @transform_2(%arg0: i32) -> (i32, i32) {
    %c0_i32 = arith.constant 0 : i32
    %c0_i32_0 = arith.constant 0 : i32
    %c0_i32_1 = arith.constant 0 : i32
    return %c0_i32, %c0_i32_0 : i32, i32
  }
  func.func @transform_3(%arg0: i32) -> (i32, i32) {
    %c0_i32 = arith.constant 0 : i32
    %c0_i32_0 = arith.constant 0 : i32
    return %c0_i32, %arg0 : i32, i32
  }
  func.func @transform_4(%arg0: i32) -> (i32, i32) {
    %c0_i32 = arith.constant 0 : i32
    %c0_i32_0 = arith.constant 0 : i32
    return %c0_i32, %arg0 : i32, i32
  }
}

module attributes {stable_mosaic.version = 11 : i64} {
  func.func @_conv_stats_kernel(%arg0: i32, %arg1: memref<288x128xbf16, #tpu.memory_space<vmem>>, %arg2: memref<32x288xbf16, #tpu.memory_space<vmem>>, %arg3: memref<32x1xf32, #tpu.memory_space<vmem>>, %arg4: memref<32x1xf32, #tpu.memory_space<vmem>>, %arg5: memref<32x128xf32, #tpu.memory_space<vmem>>, %arg6: memref<32x1xf32, #tpu.memory_space<vmem>>, %arg7: memref<32x1xf32, #tpu.memory_space<vmem>>, %arg8: memref<32x1xf32, #tpu.memory_space<vmem>>, %arg9: memref<32x1xf32, #tpu.memory_space<vmem>>) attributes {dimension_semantics = [#tpu.dimension_semantics<arbitrary>], iteration_bounds = array<i64: 1>, scalar_prefetch = 0 : i64, scratch_operands = 2 : i64, tpu.core_type = #tpu.core_type<tc>, window_params = [{transform_indices = @transform_0, window_bounds = array<i64: 288, 128>}, {pipeline_mode = #tpu.pipeline_mode<synchronous>, transform_indices = @transform_1, window_bounds = array<i64: 32, 288>}, {pipeline_mode = #tpu.pipeline_mode<synchronous>, transform_indices = @transform_2, window_bounds = array<i64: 32, 1>}, {pipeline_mode = #tpu.pipeline_mode<synchronous>, transform_indices = @transform_3, window_bounds = array<i64: 32, 1>}, {transform_indices = @transform_4, window_bounds = array<i64: 32, 128>}, {pipeline_mode = #tpu.pipeline_mode<synchronous>, transform_indices = @transform_5, window_bounds = array<i64: 32, 1>}, {pipeline_mode = #tpu.pipeline_mode<synchronous>, transform_indices = @transform_6, window_bounds = array<i64: 32, 1>}]} {
    %c0_i32 = arith.constant 0 : i32
    %0 = arith.cmpi eq, %arg0, %c0_i32 : i32
    %1 = arith.extui %0 : i1 to i32
    %c0_i32_0 = arith.constant 0 : i32
    %2 = arith.cmpi ne, %1, %c0_i32_0 : i32
    scf.if %2 {
      %cst_18 = arith.constant 0.000000e+00 : f32
      %21 = vector.broadcast %cst_18 : f32 to vector<32x1xf32>
      %c0_19 = arith.constant 0 : index
      %c0_20 = arith.constant 0 : index
      %22 = vector.load %arg8[%c0_19, %c0_20] : memref<32x1xf32, #tpu.memory_space<vmem>>, vector<32x1xf32>
      tpu.vector_store %arg8[%c0_19, %c0_20], %21 {strides = array<i32>} : memref<32x1xf32, #tpu.memory_space<vmem>>, vector<32x1xf32>,
      %cst_21 = arith.constant 0.000000e+00 : f32
      %23 = vector.broadcast %cst_21 : f32 to vector<32x1xf32>
      %c0_22 = arith.constant 0 : index
      %c0_23 = arith.constant 0 : index
      %24 = vector.load %arg9[%c0_22, %c0_23] : memref<32x1xf32, #tpu.memory_space<vmem>>, vector<32x1xf32>
      tpu.vector_store %arg9[%c0_22, %c0_23], %23 {strides = array<i32>} : memref<32x1xf32, #tpu.memory_space<vmem>>, vector<32x1xf32>,
    } else {
    }
    %c0 = arith.constant 0 : index
    %c0_1 = arith.constant 0 : index
    %3 = vector.load %arg2[%c0, %c0_1] : memref<32x288xbf16, #tpu.memory_space<vmem>>, vector<32x288xbf16>
    %c0_2 = arith.constant 0 : index
    %c0_3 = arith.constant 0 : index
    %4 = vector.load %arg1[%c0_2, %c0_3] : memref<288x128xbf16, #tpu.memory_space<vmem>>, vector<288x128xbf16>
    %cst = arith.constant dense<0.000000e+00> : vector<32x128xf32>
    %5 = tpu.matmul %3, %4, %cst {dimension_numbers = #tpu.dot_dimension_numbers<[1], [0], [0], [1], [0, 0, 1, 1], [], []>} : vector<32x288xbf16>, vector<288x128xbf16>, vector<32x128xf32> -> vector<32x128xf32>
    %c0_4 = arith.constant 0 : index
    %c0_5 = arith.constant 0 : index
    %6 = vector.load %arg5[%c0_4, %c0_5] : memref<32x128xf32, #tpu.memory_space<vmem>>, vector<32x128xf32>
    tpu.vector_store %arg5[%c0_4, %c0_5], %5 {strides = array<i32>} : memref<32x128xf32, #tpu.memory_space<vmem>>, vector<32x128xf32>,
    %c0_6 = arith.constant 0 : index
    %c0_7 = arith.constant 0 : index
    %7 = vector.load %arg8[%c0_6, %c0_7] : memref<32x1xf32, #tpu.memory_space<vmem>>, vector<32x1xf32>
    %cst_8 = arith.constant dense<0.000000e+00> : vector<32xf32>
    %8 = vector.multi_reduction <add>, %5, %cst_8 [1] : vector<32x128xf32> to vector<32xf32>
    %9 = vector.shape_cast %8 : vector<32xf32> to vector<32x1xf32>
    %10 = arith.addf %7, %9 : vector<32x1xf32>
    %c0_9 = arith.constant 0 : index
    %c0_10 = arith.constant 0 : index
    %11 = vector.load %arg8[%c0_9, %c0_10] : memref<32x1xf32, #tpu.memory_space<vmem>>, vector<32x1xf32>
    tpu.vector_store %arg8[%c0_9, %c0_10], %10 {strides = array<i32>} : memref<32x1xf32, #tpu.memory_space<vmem>>, vector<32x1xf32>,
    %c0_11 = arith.constant 0 : index
    %c0_12 = arith.constant 0 : index
    %12 = vector.load %arg9[%c0_11, %c0_12] : memref<32x1xf32, #tpu.memory_space<vmem>>, vector<32x1xf32>
    %13 = arith.mulf %5, %5 : vector<32x128xf32>
    %cst_13 = arith.constant dense<0.000000e+00> : vector<32xf32>
    %14 = vector.multi_reduction <add>, %13, %cst_13 [1] : vector<32x128xf32> to vector<32xf32>
    %15 = vector.shape_cast %14 : vector<32xf32> to vector<32x1xf32>
    %16 = arith.addf %12, %15 : vector<32x1xf32>
    %c0_14 = arith.constant 0 : index
    %c0_15 = arith.constant 0 : index
    %17 = vector.load %arg9[%c0_14, %c0_15] : memref<32x1xf32, #tpu.memory_space<vmem>>, vector<32x1xf32>
    tpu.vector_store %arg9[%c0_14, %c0_15], %16 {strides = array<i32>} : memref<32x1xf32, #tpu.memory_space<vmem>>, vector<32x1xf32>,
    %c0_i32_16 = arith.constant 0 : i32
    %18 = arith.cmpi eq, %arg0, %c0_i32_16 : i32
    %19 = arith.extui %18 : i1 to i32
    %c0_i32_17 = arith.constant 0 : i32
    %20 = arith.cmpi ne, %19, %c0_i32_17 : i32
    scf.if %20 {
      %c0_18 = arith.constant 0 : index
      %c0_19 = arith.constant 0 : index
      %21 = vector.load %arg8[%c0_18, %c0_19] : memref<32x1xf32, #tpu.memory_space<vmem>>, vector<32x1xf32>
      %cst_20 = arith.constant 7.812500e-03 : f32
      %22 = vector.broadcast %cst_20 : f32 to vector<32x1xf32>
      %23 = arith.mulf %21, %22 : vector<32x1xf32>
      %c0_21 = arith.constant 0 : index
      %c0_22 = arith.constant 0 : index
      %24 = vector.load %arg9[%c0_21, %c0_22] : memref<32x1xf32, #tpu.memory_space<vmem>>, vector<32x1xf32>
      %cst_23 = arith.constant 7.812500e-03 : f32
      %25 = vector.broadcast %cst_23 : f32 to vector<32x1xf32>
      %26 = arith.mulf %24, %25 : vector<32x1xf32>
      %27 = arith.mulf %23, %23 : vector<32x1xf32>
      %28 = arith.subf %26, %27 : vector<32x1xf32>
      %cst_24 = arith.constant 9.99999974E-6 : f32
      %29 = vector.broadcast %cst_24 : f32 to vector<32x1xf32>
      %30 = arith.addf %28, %29 : vector<32x1xf32>
      %31 = math.rsqrt %30 : vector<32x1xf32>
      %c0_25 = arith.constant 0 : index
      %c0_26 = arith.constant 0 : index
      %32 = vector.load %arg3[%c0_25, %c0_26] : memref<32x1xf32, #tpu.memory_space<vmem>>, vector<32x1xf32>
      %33 = arith.mulf %32, %31 : vector<32x1xf32>
      %c0_27 = arith.constant 0 : index
      %c0_28 = arith.constant 0 : index
      %34 = vector.load %arg6[%c0_27, %c0_28] : memref<32x1xf32, #tpu.memory_space<vmem>>, vector<32x1xf32>
      tpu.vector_store %arg6[%c0_27, %c0_28], %33 {strides = array<i32>} : memref<32x1xf32, #tpu.memory_space<vmem>>, vector<32x1xf32>,
      %c0_29 = arith.constant 0 : index
      %c0_30 = arith.constant 0 : index
      %35 = vector.load %arg4[%c0_29, %c0_30] : memref<32x1xf32, #tpu.memory_space<vmem>>, vector<32x1xf32>
      %36 = arith.mulf %23, %33 : vector<32x1xf32>
      %37 = arith.subf %35, %36 : vector<32x1xf32>
      %c0_31 = arith.constant 0 : index
      %c0_32 = arith.constant 0 : index
      %38 = vector.load %arg7[%c0_31, %c0_32] : memref<32x1xf32, #tpu.memory_space<vmem>>, vector<32x1xf32>
      tpu.vector_store %arg7[%c0_31, %c0_32], %37 {strides = array<i32>} : memref<32x1xf32, #tpu.memory_space<vmem>>, vector<32x1xf32>,
    } else {
    }
    return
  }
  func.func @transform_0(%arg0: i32) -> (i32, i32) {
    %c0_i32 = arith.constant 0 : i32
    %c0_i32_0 = arith.constant 0 : i32
    return %c0_i32, %arg0 : i32, i32
  }
  func.func @transform_1(%arg0: i32) -> (i32, i32) {
    %c0_i32 = arith.constant 0 : i32
    %c0_i32_0 = arith.constant 0 : i32
    %c0_i32_1 = arith.constant 0 : i32
    return %c0_i32, %c0_i32_0 : i32, i32
  }
  func.func @transform_2(%arg0: i32) -> (i32, i32) {
    %c0_i32 = arith.constant 0 : i32
    %c0_i32_0 = arith.constant 0 : i32
    %c0_i32_1 = arith.constant 0 : i32
    return %c0_i32, %c0_i32_0 : i32, i32
  }
  func.func @transform_3(%arg0: i32) -> (i32, i32) {
    %c0_i32 = arith.constant 0 : i32
    %c0_i32_0 = arith.constant 0 : i32
    %c0_i32_1 = arith.constant 0 : i32
    return %c0_i32, %c0_i32_0 : i32, i32
  }
  func.func @transform_4(%arg0: i32) -> (i32, i32) {
    %c0_i32 = arith.constant 0 : i32
    %c0_i32_0 = arith.constant 0 : i32
    return %c0_i32, %arg0 : i32, i32
  }
  func.func @transform_5(%arg0: i32) -> (i32, i32) {
    %c0_i32 = arith.constant 0 : i32
    %c0_i32_0 = arith.constant 0 : i32
    %c0_i32_1 = arith.constant 0 : i32
    return %c0_i32, %c0_i32_0 : i32, i32
  }
  func.func @transform_6(%arg0: i32) -> (i32, i32) {
    %c0_i32 = arith.constant 0 : i32
    %c0_i32_0 = arith.constant 0 : i32
    %c0_i32_1 = arith.constant 0 : i32
    return %c0_i32, %c0_i32_0 : i32, i32
  }
}

module attributes {stable_mosaic.version = 11 : i64} {
  func.func @_conv_stats_kernel(%arg0: i32, %arg1: memref<288x128xbf16, #tpu.memory_space<vmem>>, %arg2: memref<3x288xbf16, #tpu.memory_space<vmem>>, %arg3: memref<3x1xf32, #tpu.memory_space<vmem>>, %arg4: memref<3x1xf32, #tpu.memory_space<vmem>>, %arg5: memref<3x128xf32, #tpu.memory_space<vmem>>, %arg6: memref<3x1xf32, #tpu.memory_space<vmem>>, %arg7: memref<3x1xf32, #tpu.memory_space<vmem>>, %arg8: memref<3x1xf32, #tpu.memory_space<vmem>>, %arg9: memref<3x1xf32, #tpu.memory_space<vmem>>) attributes {dimension_semantics = [#tpu.dimension_semantics<arbitrary>], iteration_bounds = array<i64: 1>, scalar_prefetch = 0 : i64, scratch_operands = 2 : i64, tpu.core_type = #tpu.core_type<tc>, window_params = [{transform_indices = @transform_0, window_bounds = array<i64: 288, 128>}, {pipeline_mode = #tpu.pipeline_mode<synchronous>, transform_indices = @transform_1, window_bounds = array<i64: 3, 288>}, {pipeline_mode = #tpu.pipeline_mode<synchronous>, transform_indices = @transform_2, window_bounds = array<i64: 3, 1>}, {pipeline_mode = #tpu.pipeline_mode<synchronous>, transform_indices = @transform_3, window_bounds = array<i64: 3, 1>}, {transform_indices = @transform_4, window_bounds = array<i64: 3, 128>}, {pipeline_mode = #tpu.pipeline_mode<synchronous>, transform_indices = @transform_5, window_bounds = array<i64: 3, 1>}, {pipeline_mode = #tpu.pipeline_mode<synchronous>, transform_indices = @transform_6, window_bounds = array<i64: 3, 1>}]} {
    %c0_i32 = arith.constant 0 : i32
    %0 = arith.cmpi eq, %arg0, %c0_i32 : i32
    %1 = arith.extui %0 : i1 to i32
    %c0_i32_0 = arith.constant 0 : i32
    %2 = arith.cmpi ne, %1, %c0_i32_0 : i32
    scf.if %2 {
      %cst_18 = arith.constant 0.000000e+00 : f32
      %21 = vector.broadcast %cst_18 : f32 to vector<3x1xf32>
      %c0_19 = arith.constant 0 : index
      %c0_20 = arith.constant 0 : index
      %22 = vector.load %arg8[%c0_19, %c0_20] : memref<3x1xf32, #tpu.memory_space<vmem>>, vector<3x1xf32>
      tpu.vector_store %arg8[%c0_19, %c0_20], %21 {strides = array<i32>} : memref<3x1xf32, #tpu.memory_space<vmem>>, vector<3x1xf32>,
      %cst_21 = arith.constant 0.000000e+00 : f32
      %23 = vector.broadcast %cst_21 : f32 to vector<3x1xf32>
      %c0_22 = arith.constant 0 : index
      %c0_23 = arith.constant 0 : index
      %24 = vector.load %arg9[%c0_22, %c0_23] : memref<3x1xf32, #tpu.memory_space<vmem>>, vector<3x1xf32>
      tpu.vector_store %arg9[%c0_22, %c0_23], %23 {strides = array<i32>} : memref<3x1xf32, #tpu.memory_space<vmem>>, vector<3x1xf32>,
    } else {
    }
    %c0 = arith.constant 0 : index
    %c0_1 = arith.constant 0 : index
    %3 = vector.load %arg2[%c0, %c0_1] : memref<3x288xbf16, #tpu.memory_space<vmem>>, vector<3x288xbf16>
    %c0_2 = arith.constant 0 : index
    %c0_3 = arith.constant 0 : index
    %4 = vector.load %arg1[%c0_2, %c0_3] : memref<288x128xbf16, #tpu.memory_space<vmem>>, vector<288x128xbf16>
    %cst = arith.constant dense<0.000000e+00> : vector<3x128xf32>
    %5 = tpu.matmul %3, %4, %cst {dimension_numbers = #tpu.dot_dimension_numbers<[1], [0], [0], [1], [0, 0, 1, 1], [], []>} : vector<3x288xbf16>, vector<288x128xbf16>, vector<3x128xf32> -> vector<3x128xf32>
    %c0_4 = arith.constant 0 : index
    %c0_5 = arith.constant 0 : index
    %6 = vector.load %arg5[%c0_4, %c0_5] : memref<3x128xf32, #tpu.memory_space<vmem>>, vector<3x128xf32>
    tpu.vector_store %arg5[%c0_4, %c0_5], %5 {strides = array<i32>} : memref<3x128xf32, #tpu.memory_space<vmem>>, vector<3x128xf32>,
    %c0_6 = arith.constant 0 : index
    %c0_7 = arith.constant 0 : index
    %7 = vector.load %arg8[%c0_6, %c0_7] : memref<3x1xf32, #tpu.memory_space<vmem>>, vector<3x1xf32>
    %cst_8 = arith.constant dense<0.000000e+00> : vector<3xf32>
    %8 = vector.multi_reduction <add>, %5, %cst_8 [1] : vector<3x128xf32> to vector<3xf32>
    %9 = vector.shape_cast %8 : vector<3xf32> to vector<3x1xf32>
    %10 = arith.addf %7, %9 : vector<3x1xf32>
    %c0_9 = arith.constant 0 : index
    %c0_10 = arith.constant 0 : index
    %11 = vector.load %arg8[%c0_9, %c0_10] : memref<3x1xf32, #tpu.memory_space<vmem>>, vector<3x1xf32>
    tpu.vector_store %arg8[%c0_9, %c0_10], %10 {strides = array<i32>} : memref<3x1xf32, #tpu.memory_space<vmem>>, vector<3x1xf32>,
    %c0_11 = arith.constant 0 : index
    %c0_12 = arith.constant 0 : index
    %12 = vector.load %arg9[%c0_11, %c0_12] : memref<3x1xf32, #tpu.memory_space<vmem>>, vector<3x1xf32>
    %13 = arith.mulf %5, %5 : vector<3x128xf32>
    %cst_13 = arith.constant dense<0.000000e+00> : vector<3xf32>
    %14 = vector.multi_reduction <add>, %13, %cst_13 [1] : vector<3x128xf32> to vector<3xf32>
    %15 = vector.shape_cast %14 : vector<3xf32> to vector<3x1xf32>
    %16 = arith.addf %12, %15 : vector<3x1xf32>
    %c0_14 = arith.constant 0 : index
    %c0_15 = arith.constant 0 : index
    %17 = vector.load %arg9[%c0_14, %c0_15] : memref<3x1xf32, #tpu.memory_space<vmem>>, vector<3x1xf32>
    tpu.vector_store %arg9[%c0_14, %c0_15], %16 {strides = array<i32>} : memref<3x1xf32, #tpu.memory_space<vmem>>, vector<3x1xf32>,
    %c0_i32_16 = arith.constant 0 : i32
    %18 = arith.cmpi eq, %arg0, %c0_i32_16 : i32
    %19 = arith.extui %18 : i1 to i32
    %c0_i32_17 = arith.constant 0 : i32
    %20 = arith.cmpi ne, %19, %c0_i32_17 : i32
    scf.if %20 {
      %c0_18 = arith.constant 0 : index
      %c0_19 = arith.constant 0 : index
      %21 = vector.load %arg8[%c0_18, %c0_19] : memref<3x1xf32, #tpu.memory_space<vmem>>, vector<3x1xf32>
      %cst_20 = arith.constant 7.812500e-03 : f32
      %22 = vector.broadcast %cst_20 : f32 to vector<3x1xf32>
      %23 = arith.mulf %21, %22 : vector<3x1xf32>
      %c0_21 = arith.constant 0 : index
      %c0_22 = arith.constant 0 : index
      %24 = vector.load %arg9[%c0_21, %c0_22] : memref<3x1xf32, #tpu.memory_space<vmem>>, vector<3x1xf32>
      %cst_23 = arith.constant 7.812500e-03 : f32
      %25 = vector.broadcast %cst_23 : f32 to vector<3x1xf32>
      %26 = arith.mulf %24, %25 : vector<3x1xf32>
      %27 = arith.mulf %23, %23 : vector<3x1xf32>
      %28 = arith.subf %26, %27 : vector<3x1xf32>
      %cst_24 = arith.constant 9.99999974E-6 : f32
      %29 = vector.broadcast %cst_24 : f32 to vector<3x1xf32>
      %30 = arith.addf %28, %29 : vector<3x1xf32>
      %31 = math.rsqrt %30 : vector<3x1xf32>
      %c0_25 = arith.constant 0 : index
      %c0_26 = arith.constant 0 : index
      %32 = vector.load %arg3[%c0_25, %c0_26] : memref<3x1xf32, #tpu.memory_space<vmem>>, vector<3x1xf32>
      %33 = arith.mulf %32, %31 : vector<3x1xf32>
      %c0_27 = arith.constant 0 : index
      %c0_28 = arith.constant 0 : index
      %34 = vector.load %arg6[%c0_27, %c0_28] : memref<3x1xf32, #tpu.memory_space<vmem>>, vector<3x1xf32>
      tpu.vector_store %arg6[%c0_27, %c0_28], %33 {strides = array<i32>} : memref<3x1xf32, #tpu.memory_space<vmem>>, vector<3x1xf32>,
      %c0_29 = arith.constant 0 : index
      %c0_30 = arith.constant 0 : index
      %35 = vector.load %arg4[%c0_29, %c0_30] : memref<3x1xf32, #tpu.memory_space<vmem>>, vector<3x1xf32>
      %36 = arith.mulf %23, %33 : vector<3x1xf32>
      %37 = arith.subf %35, %36 : vector<3x1xf32>
      %c0_31 = arith.constant 0 : index
      %c0_32 = arith.constant 0 : index
      %38 = vector.load %arg7[%c0_31, %c0_32] : memref<3x1xf32, #tpu.memory_space<vmem>>, vector<3x1xf32>
      tpu.vector_store %arg7[%c0_31, %c0_32], %37 {strides = array<i32>} : memref<3x1xf32, #tpu.memory_space<vmem>>, vector<3x1xf32>,
    } else {
    }
    return
  }
  func.func @transform_0(%arg0: i32) -> (i32, i32) {
    %c0_i32 = arith.constant 0 : i32
    %c0_i32_0 = arith.constant 0 : i32
    return %c0_i32, %arg0 : i32, i32
  }
  func.func @transform_1(%arg0: i32) -> (i32, i32) {
    %c0_i32 = arith.constant 0 : i32
    %c0_i32_0 = arith.constant 0 : i32
    %c0_i32_1 = arith.constant 0 : i32
    return %c0_i32, %c0_i32_0 : i32, i32
  }
  func.func @transform_2(%arg0: i32) -> (i32, i32) {
    %c0_i32 = arith.constant 0 : i32
    %c0_i32_0 = arith.constant 0 : i32
    %c0_i32_1 = arith.constant 0 : i32
    return %c0_i32, %c0_i32_0 : i32, i32
  }
  func.func @transform_3(%arg0: i32) -> (i32, i32) {
    %c0_i32 = arith.constant 0 : i32
    %c0_i32_0 = arith.constant 0 : i32
    %c0_i32_1 = arith.constant 0 : i32
    return %c0_i32, %c0_i32_0 : i32, i32
  }
  func.func @transform_4(%arg0: i32) -> (i32, i32) {
    %c0_i32 = arith.constant 0 : i32
    %c0_i32_0 = arith.constant 0 : i32
    return %c0_i32, %arg0 : i32, i32
  }
  func.func @transform_5(%arg0: i32) -> (i32, i32) {
    %c0_i32 = arith.constant 0 : i32
    %c0_i32_0 = arith.constant 0 : i32
    %c0_i32_1 = arith.constant 0 : i32
    return %c0_i32, %c0_i32_0 : i32, i32
  }
  func.func @transform_6(%arg0: i32) -> (i32, i32) {
    %c0_i32 = arith.constant 0 : i32
    %c0_i32_0 = arith.constant 0 : i32
    %c0_i32_1 = arith.constant 0 : i32
    return %c0_i32, %c0_i32_0 : i32, i32
  }
}

module attributes {stable_mosaic.version = 11 : i64} {
  func.func @_bn_relu_kernel(%arg0: i32, %arg1: memref<3x128xf32, #tpu.memory_space<vmem>>, %arg2: memref<3x1xf32, #tpu.memory_space<vmem>>, %arg3: memref<3x1xf32, #tpu.memory_space<vmem>>, %arg4: memref<3x128xf32, #tpu.memory_space<vmem>>) attributes {dimension_semantics = [#tpu.dimension_semantics<parallel>], iteration_bounds = array<i64: 1>, scalar_prefetch = 0 : i64, scratch_operands = 0 : i64, tpu.core_type = #tpu.core_type<tc>, window_params = [{transform_indices = @transform_0, window_bounds = array<i64: 3, 128>}, {pipeline_mode = #tpu.pipeline_mode<synchronous>, transform_indices = @transform_1, window_bounds = array<i64: 3, 1>}, {pipeline_mode = #tpu.pipeline_mode<synchronous>, transform_indices = @transform_2, window_bounds = array<i64: 3, 1>}, {transform_indices = @transform_3, window_bounds = array<i64: 3, 128>}]} {
    %c0 = arith.constant 0 : index
    %c0_0 = arith.constant 0 : index
    %0 = vector.load %arg1[%c0, %c0_0] : memref<3x128xf32, #tpu.memory_space<vmem>>, vector<3x128xf32>
    %c0_1 = arith.constant 0 : index
    %c0_2 = arith.constant 0 : index
    %1 = vector.load %arg2[%c0_1, %c0_2] : memref<3x1xf32, #tpu.memory_space<vmem>>, vector<3x1xf32>
    %2 = vector.broadcast %1 : vector<3x1xf32> to vector<3x128xf32>
    %3 = arith.mulf %0, %2 : vector<3x128xf32>
    %c0_3 = arith.constant 0 : index
    %c0_4 = arith.constant 0 : index
    %4 = vector.load %arg3[%c0_3, %c0_4] : memref<3x1xf32, #tpu.memory_space<vmem>>, vector<3x1xf32>
    %5 = vector.broadcast %4 : vector<3x1xf32> to vector<3x128xf32>
    %6 = arith.addf %3, %5 : vector<3x128xf32>
    %cst = arith.constant 0.000000e+00 : f32
    %7 = vector.broadcast %cst : f32 to vector<3x128xf32>
    %8 = arith.maximumf %6, %7 : vector<3x128xf32>
    %c0_5 = arith.constant 0 : index
    %c0_6 = arith.constant 0 : index
    %9 = vector.load %arg4[%c0_5, %c0_6] : memref<3x128xf32, #tpu.memory_space<vmem>>, vector<3x128xf32>
    tpu.vector_store %arg4[%c0_5, %c0_6], %8 {strides = array<i32>} : memref<3x128xf32, #tpu.memory_space<vmem>>, vector<3x128xf32>,
    return
  }
  func.func @transform_0(%arg0: i32) -> (i32, i32) {
    %c0_i32 = arith.constant 0 : i32
    %c0_i32_0 = arith.constant 0 : i32
    return %c0_i32, %arg0 : i32, i32
  }
  func.func @transform_1(%arg0: i32) -> (i32, i32) {
    %c0_i32 = arith.constant 0 : i32
    %c0_i32_0 = arith.constant 0 : i32
    %c0_i32_1 = arith.constant 0 : i32
    return %c0_i32, %c0_i32_0 : i32, i32
  }
  func.func @transform_2(%arg0: i32) -> (i32, i32) {
    %c0_i32 = arith.constant 0 : i32
    %c0_i32_0 = arith.constant 0 : i32
    %c0_i32_1 = arith.constant 0 : i32
    return %c0_i32, %c0_i32_0 : i32, i32
  }
  func.func @transform_3(%arg0: i32) -> (i32, i32) {
    %c0_i32 = arith.constant 0 : i32
    %c0_i32_0 = arith.constant 0 : i32
    return %c0_i32, %arg0 : i32, i32
  }
}

module attributes {stable_mosaic.version = 11 : i64} {
  func.func @_linear_kernel(%arg0: i32, %arg1: memref<2x192xbf16, #tpu.memory_space<vmem>>, %arg2: memref<192x1xbf16, #tpu.memory_space<vmem>>, %arg3: memref<1x1xf32, #tpu.memory_space<vmem>>, %arg4: memref<2x1xf32, #tpu.memory_space<vmem>>) attributes {dimension_semantics = [#tpu.dimension_semantics<arbitrary>], iteration_bounds = array<i64: 1>, scalar_prefetch = 0 : i64, scratch_operands = 0 : i64, tpu.core_type = #tpu.core_type<tc>, window_params = [{pipeline_mode = #tpu.pipeline_mode<synchronous>, transform_indices = @transform_0, window_bounds = array<i64: 2, 192>}, {pipeline_mode = #tpu.pipeline_mode<synchronous>, transform_indices = @transform_1, window_bounds = array<i64: 192, 1>}, {pipeline_mode = #tpu.pipeline_mode<synchronous>, transform_indices = @transform_2, window_bounds = array<i64: 1, 1>}, {pipeline_mode = #tpu.pipeline_mode<synchronous>, transform_indices = @transform_3, window_bounds = array<i64: 2, 1>}]} {
    %c0 = arith.constant 0 : index
    %c0_0 = arith.constant 0 : index
    %0 = vector.load %arg1[%c0, %c0_0] : memref<2x192xbf16, #tpu.memory_space<vmem>>, vector<2x192xbf16>
    %c0_1 = arith.constant 0 : index
    %c0_2 = arith.constant 0 : index
    %1 = vector.load %arg2[%c0_1, %c0_2] : memref<192x1xbf16, #tpu.memory_space<vmem>>, vector<192x1xbf16>
    %cst = arith.constant dense<0.000000e+00> : vector<2x1xf32>
    %2 = tpu.matmul %0, %1, %cst {dimension_numbers = #tpu.dot_dimension_numbers<[1], [0], [0], [1], [0, 0, 1, 1], [], []>} : vector<2x192xbf16>, vector<192x1xbf16>, vector<2x1xf32> -> vector<2x1xf32>
    %c0_3 = arith.constant 0 : index
    %c0_4 = arith.constant 0 : index
    %3 = vector.load %arg3[%c0_3, %c0_4] : memref<1x1xf32, #tpu.memory_space<vmem>>, vector<1x1xf32>
    %4 = vector.broadcast %3 : vector<1x1xf32> to vector<2x1xf32>
    %5 = arith.addf %2, %4 : vector<2x1xf32>
    %6 = math.tanh %5 : vector<2x1xf32>
    %c0_5 = arith.constant 0 : index
    %c0_6 = arith.constant 0 : index
    %7 = vector.load %arg4[%c0_5, %c0_6] : memref<2x1xf32, #tpu.memory_space<vmem>>, vector<2x1xf32>
    tpu.vector_store %arg4[%c0_5, %c0_6], %6 {strides = array<i32>} : memref<2x1xf32, #tpu.memory_space<vmem>>, vector<2x1xf32>,
    return
  }
  func.func @transform_0(%arg0: i32) -> (i32, i32) {
    %c0_i32 = arith.constant 0 : i32
    %c0_i32_0 = arith.constant 0 : i32
    %c0_i32_1 = arith.constant 0 : i32
    return %c0_i32, %c0_i32_0 : i32, i32
  }
  func.func @transform_1(%arg0: i32) -> (i32, i32) {
    %c0_i32 = arith.constant 0 : i32
    %c0_i32_0 = arith.constant 0 : i32
    %c0_i32_1 = arith.constant 0 : i32
    return %c0_i32, %c0_i32_0 : i32, i32
  }
  func.func @transform_2(%arg0: i32) -> (i32, i32) {
    %c0_i32 = arith.constant 0 : i32
    %c0_i32_0 = arith.constant 0 : i32
    %c0_i32_1 = arith.constant 0 : i32
    return %c0_i32, %c0_i32_0 : i32, i32
  }
  func.func @transform_3(%arg0: i32) -> (i32, i32) {
    %c0_i32 = arith.constant 0 : i32
    %c0_i32_0 = arith.constant 0 : i32
    %c0_i32_1 = arith.constant 0 : i32
    return %c0_i32, %c0_i32_0 : i32, i32
  }
}

module attributes {stable_mosaic.version = 11 : i64} {
  func.func @_linear_kernel(%arg0: i32, %arg1: memref<2x2048xbf16, #tpu.memory_space<vmem>>, %arg2: memref<2048x64xbf16, #tpu.memory_space<vmem>>, %arg3: memref<1x64xf32, #tpu.memory_space<vmem>>, %arg4: memref<2x64xf32, #tpu.memory_space<vmem>>) attributes {dimension_semantics = [#tpu.dimension_semantics<arbitrary>], iteration_bounds = array<i64: 1>, scalar_prefetch = 0 : i64, scratch_operands = 0 : i64, tpu.core_type = #tpu.core_type<tc>, window_params = [{pipeline_mode = #tpu.pipeline_mode<synchronous>, transform_indices = @transform_0, window_bounds = array<i64: 2, 2048>}, {pipeline_mode = #tpu.pipeline_mode<synchronous>, transform_indices = @transform_1, window_bounds = array<i64: 2048, 64>}, {pipeline_mode = #tpu.pipeline_mode<synchronous>, transform_indices = @transform_2, window_bounds = array<i64: 1, 64>}, {pipeline_mode = #tpu.pipeline_mode<synchronous>, transform_indices = @transform_3, window_bounds = array<i64: 2, 64>}]} {
    %c0 = arith.constant 0 : index
    %c0_0 = arith.constant 0 : index
    %0 = vector.load %arg1[%c0, %c0_0] : memref<2x2048xbf16, #tpu.memory_space<vmem>>, vector<2x2048xbf16>
    %c0_1 = arith.constant 0 : index
    %c0_2 = arith.constant 0 : index
    %1 = vector.load %arg2[%c0_1, %c0_2] : memref<2048x64xbf16, #tpu.memory_space<vmem>>, vector<2048x64xbf16>
    %cst = arith.constant dense<0.000000e+00> : vector<2x64xf32>
    %2 = tpu.matmul %0, %1, %cst {dimension_numbers = #tpu.dot_dimension_numbers<[1], [0], [0], [1], [0, 0, 1, 1], [], []>} : vector<2x2048xbf16>, vector<2048x64xbf16>, vector<2x64xf32> -> vector<2x64xf32>
    %c0_3 = arith.constant 0 : index
    %c0_4 = arith.constant 0 : index
    %3 = vector.load %arg3[%c0_3, %c0_4] : memref<1x64xf32, #tpu.memory_space<vmem>>, vector<1x64xf32>
    %4 = vector.broadcast %3 : vector<1x64xf32> to vector<2x64xf32>
    %5 = arith.addf %2, %4 : vector<2x64xf32>
    %c0_5 = arith.constant 0 : index
    %c0_6 = arith.constant 0 : index
    %6 = vector.load %arg4[%c0_5, %c0_6] : memref<2x64xf32, #tpu.memory_space<vmem>>, vector<2x64xf32>
    tpu.vector_store %arg4[%c0_5, %c0_6], %5 {strides = array<i32>} : memref<2x64xf32, #tpu.memory_space<vmem>>, vector<2x64xf32>,
    return
  }
  func.func @transform_0(%arg0: i32) -> (i32, i32) {
    %c0_i32 = arith.constant 0 : i32
    %c0_i32_0 = arith.constant 0 : i32
    %c0_i32_1 = arith.constant 0 : i32
    return %c0_i32, %c0_i32_0 : i32, i32
  }
  func.func @transform_1(%arg0: i32) -> (i32, i32) {
    %c0_i32 = arith.constant 0 : i32
    %c0_i32_0 = arith.constant 0 : i32
    %c0_i32_1 = arith.constant 0 : i32
    return %c0_i32, %c0_i32_0 : i32, i32
  }
  func.func @transform_2(%arg0: i32) -> (i32, i32) {
    %c0_i32 = arith.constant 0 : i32
    %c0_i32_0 = arith.constant 0 : i32
    %c0_i32_1 = arith.constant 0 : i32
    return %c0_i32, %c0_i32_0 : i32, i32
  }
  func.func @transform_3(%arg0: i32) -> (i32, i32) {
    %c0_i32 = arith.constant 0 : i32
    %c0_i32_0 = arith.constant 0 : i32
    %c0_i32_1 = arith.constant 0 : i32
    return %c0_i32, %c0_i32_0 : i32, i32
  }
}

</mosaic_0001>

<llo_original>
// kernel: resnet_forward.17
$region0: #{resnet_forward.17}
  #allocation0 [shape = 'u32[]', space=smem, size = 0x4, offset = 0x4, fixed_abs, tag = 'smem constant byte address 0x4 - core index']
  #allocation1 [shape = 'u32[144,128]{1,0:T(1,128)}', space=vmem, size = 0x12000, scoped, tag = 'internal scratch']
  %s0 = inlined_call_operand.vmem [shape: f32[32,128], index: 0, kind: input, shape index: {}]
  %s1 = inlined_call_operand.vmem [shape: f32[32,1], index: 1, kind: input, shape index: {}]
  %s2 = inlined_call_operand.vmem [shape: f32[32,1], index: 2, kind: input, shape index: {}]
  %s3 = inlined_call_operand.vmem [shape: f32[32,128], index: 3, kind: output, shape index: {}]
  %s4 = sld [smem:[#allocation0]]
  $region22: #{resnet_forward.17} parent=0
    _
  %s6 = ssub.s32 1, %s4
  %s7 = scalar_select 0, %s6, %s4
  // Predicated region
  $region2: #{resnet_forward.17} parent=0 // pred_check
    _
  $region3: #{resnet_forward.17} parent=0 // pred_check_branch
    %9 = sbr.rel (0) target = $region5
  $region4: #{resnet_forward.17} parent=0 // pred_region
    _
  $region5: #{resnet_forward.17} parent=0 // pred_fallthru
    _
  // Predicated region
  $region6: #{resnet_forward.17} parent=0 // pred_check
    _
  $region7: #{resnet_forward.17} parent=0 // pred_check_branch
    %11 = sbr.rel (0) target = $region9
  $region8: #{resnet_forward.17} parent=0 // pred_region
    _
  $region9: #{resnet_forward.17} parent=0 // pred_fallthru
    _
  // Predicated region
  $region10: #{resnet_forward.17} parent=0 // pred_check
    _
  $region11: #{resnet_forward.17} parent=0 // pred_check_branch
    %13 = sbr.rel (0) target = $region13
  $region12: #{resnet_forward.17} parent=0 // pred_region
    _
  $region13: #{resnet_forward.17} parent=0 // pred_fallthru
    _
  %v14 = vld [vmem:[%s0] sm:$0xff]
  %v15 = vld [vmem:[%s0 + $0x8] sm:$0xff]
  %v16 = vld [vmem:[%s0 + $0x10] sm:$0xff]
  %v17 = vld [vmem:[%s0 + $0x18] sm:$0xff]
  %v18 = vld [vmem:[%s1] sm:$0xff]
  %v19 = vld [vmem:[%s1 + $0x8] sm:$0xff]
  %v20 = vld [vmem:[%s1 + $0x10] sm:$0xff]
  %v21 = vld [vmem:[%s1 + $0x18] sm:$0xff]
  %23 = vset.pattern.permute.xlu0 0
  %24 = vperm.xlu0 %23, %v18
  %v25 = vpop.permute.xlu0 %24
  %28 = vset.pattern.permute.xlu0 0
  %29 = vperm.xlu0 %28, %v19
  %v30 = vpop.permute.xlu0 %29
  %33 = vset.pattern.permute.xlu0 0
  %34 = vperm.xlu0 %33, %v20
  %v35 = vpop.permute.xlu0 %34
  %38 = vset.pattern.permute.xlu0 0
  %39 = vperm.xlu0 %38, %v21
  %v40 = vpop.permute.xlu0 %39
  %v42 = vmul.f32 %v14, %v25
  %v43 = vmul.f32 %v15, %v30
  %v44 = vmul.f32 %v16, %v35
  %v45 = vmul.f32 %v17, %v40
  %v46 = vld [vmem:[%s2] sm:$0xff]
  %v47 = vld [vmem:[%s2 + $0x8] sm:$0xff]
  %v48 = vld [vmem:[%s2 + $0x10] sm:$0xff]
  %v49 = vld [vmem:[%s2 + $0x18] sm:$0xff]
  %51 = vset.pattern.permute.xlu0 0
  %52 = vperm.xlu0 %51, %v46
  %v53 = vpop.permute.xlu0 %52
  %56 = vset.pattern.permute.xlu0 0
  %57 = vperm.xlu0 %56, %v47
  %v58 = vpop.permute.xlu0 %57
  %61 = vset.pattern.permute.xlu0 0
  %62 = vperm.xlu0 %61, %v48
  %v63 = vpop.permute.xlu0 %62
  %66 = vset.pattern.permute.xlu0 0
  %67 = vperm.xlu0 %66, %v49
  %v68 = vpop.permute.xlu0 %67
  %v70 = vadd.f32 %v42, %v53
  %v71 = vadd.f32 %v43, %v58
  %v72 = vadd.f32 %v44, %v63
  %v73 = vadd.f32 %v45, %v68
  %v74 = vmax.f32 %v70, 0.0
  %v75 = vmax.f32 %v71, 0.0
  %v76 = vmax.f32 %v72, 0.0
  %v77 = vmax.f32 %v73, 0.0
  %78 = vst [vmem:[%s3] sm:$0xff] %v74
  %79 = vst [vmem:[%s3 + $0x8] sm:$0xff] %v75
  %80 = vst [vmem:[%s3 + $0x10] sm:$0xff] %v76
  %81 = vst [vmem:[%s3 + $0x18] sm:$0xff] %v77
  // Predicated region
  $region14: #{resnet_forward.17} parent=0 // pred_check
    _
  $region15: #{resnet_forward.17} parent=0 // pred_check_branch
    %83 = sbr.rel (0) target = $region17
  $region16: #{resnet_forward.17} parent=0 // pred_region
    _
  $region17: #{resnet_forward.17} parent=0 // pred_fallthru
    _
  // Predicated region
  $region18: #{resnet_forward.17} parent=0 // pred_check
    _
  $region19: #{resnet_forward.17} parent=0 // pred_check_branch
    %85 = sbr.rel (0) target = $region21
  $region20: #{resnet_forward.17} parent=0 // pred_region
    _
  $region21: #{resnet_forward.17} parent=0 // pred_fallthru
    _

// kernel: resnet_forward.16
$region0: #{resnet_forward.16}
  #allocation0 [shape = 'u32[]', space=smem, size = 0x4, offset = 0x4, fixed_abs, tag = 'smem constant byte address 0x4 - core index']
  #allocation1 [shape = 'u32[144,128]{1,0:T(1,128)}', space=vmem, size = 0x12000, scoped, tag = 'internal scratch']
  #allocation2 [shape = 'f32[32,1]{1,0:T(8,128)}', space=vmem, size = 0x4000, scoped, tag = 'scratch operand']
  #allocation3 [shape = 'f32[32,1]{1,0:T(8,128)}', space=vmem, size = 0x4000, scoped, tag = 'scratch operand']
  %s0 = inlined_call_operand.vmem [shape: bf16[32,128], index: 0, kind: input, shape index: {}]
  %s1 = inlined_call_operand.vmem [shape: bf16[32,32], index: 1, kind: input, shape index: {}]
  %s2 = inlined_call_operand.vmem [shape: f32[32,1], index: 2, kind: input, shape index: {}]
  %s3 = inlined_call_operand.vmem [shape: f32[32,1], index: 3, kind: input, shape index: {}]
  %s4 = inlined_call_operand.vmem [shape: f32[32,128], index: 4, kind: output, shape index: {0}]
  %s5 = inlined_call_operand.vmem [shape: f32[32,1], index: 5, kind: output, shape index: {1}]
  %s6 = inlined_call_operand.vmem [shape: f32[32,1], index: 6, kind: output, shape index: {2}]
  %7 = xla_tuple %s4, %s5, %s6
  %s8 = sld [smem:[#allocation0]]
  $region50: #{resnet_forward.16} parent=0
    _
  %s10 = ssub.s32 1, %s8
  %s11 = scalar_select 0, %s10, %s8
  // Predicated region
  $region2: #{resnet_forward.16} parent=0 // pred_check
    _
  $region3: #{resnet_forward.16} parent=0 // pred_check_branch
    %13 = sbr.rel (0) target = $region5
  $region4: #{resnet_forward.16} parent=0 // pred_region
    _
  $region5: #{resnet_forward.16} parent=0 // pred_fallthru
    _
  // Predicated region
  $region6: #{resnet_forward.16} parent=0 // pred_check
    _
  $region7: #{resnet_forward.16} parent=0 // pred_check_branch
    %15 = sbr.rel (0) target = $region9
  $region8: #{resnet_forward.16} parent=0 // pred_region
    _
  $region9: #{resnet_forward.16} parent=0 // pred_fallthru
    _
  // Predicated region
  $region10: #{resnet_forward.16} parent=0 // pred_check
    _
  $region11: #{resnet_forward.16} parent=0 // pred_check_branch
    %17 = sbr.rel (0) target = $region13
  $region12: #{resnet_forward.16} parent=0 // pred_region
    _
  $region13: #{resnet_forward.16} parent=0 // pred_fallthru
    _
  // Predicated region
  $region14: #{resnet_forward.16} parent=0 // pred_check
    _
  $region15: #{resnet_forward.16} parent=0 // pred_check_branch
    %19 = sbr.rel (0) target = $region17
  $region16: #{resnet_forward.16} parent=0 // pred_region
    _
  $region17: #{resnet_forward.16} parent=0 // pred_fallthru
    _
  %p21 = scmp.eq.s32.totalorder 0, 0
  // Predicated region
  $region18: #{resnet_forward.16} parent=0 // pred_check
    %p22 = pneg %p21
  $region19: #{resnet_forward.16} parent=0 // pred_check_branch
    %24 = sbr.rel (%p22) target = $region21
  $region20: #{resnet_forward.16} parent=0 // pred_region
    %vm25 = vcmask 7168
    %26 = vst.msk [vmem:[#allocation2] sm:$0xff] %vm25, 0.0
    %27 = vst.msk [vmem:[#allocation2 + $0x8] sm:$0xff] %vm25, 0.0
    %28 = vst.msk [vmem:[#allocation2 + $0x10] sm:$0xff] %vm25, 0.0
    %29 = vst.msk [vmem:[#allocation2 + $0x18] sm:$0xff] %vm25, 0.0
    %30 = vst.msk [vmem:[#allocation3] sm:$0xff] %vm25, 0.0
    %31 = vst.msk [vmem:[#allocation3 + $0x8] sm:$0xff] %vm25, 0.0
    %32 = vst.msk [vmem:[#allocation3 + $0x10] sm:$0xff] %vm25, 0.0
    %33 = vst.msk [vmem:[#allocation3 + $0x18] sm:$0xff] %vm25, 0.0
  $region21: #{resnet_forward.16} parent=0 // pred_fallthru
    _
  %v34 = vld [vmem:[%s1] sm:$0xf]
  %v35 = vld [vmem:[%s1 + $0x4] sm:$0xf]
  %v36 = vld [vmem:[%s1 + $0x8] sm:$0xf]
  %v37 = vld [vmem:[%s1 + $0xc] sm:$0xf]
  %v38 = vld [vmem:[%s0] sm:$0xf]
  %v39 = vld [vmem:[%s0 + $0x4] sm:$0xf]
  %v40 = vld [vmem:[%s0 + $0x8] sm:$0xf]
  %v41 = vld [vmem:[%s0 + $0xc] sm:$0xf]
  %v46 = vunpack.c.l.b16 %v34
  %v47 = vunpack.c.l.b16 %v35
  %v48 = vunpack.c.l.b16 %v36
  %v49 = vunpack.c.l.b16 %v37
  %v50 = vpack.c.b16 %v47, %v46
  %v51 = vpack.c.b16 %v49, %v48
  %v56 = vunpack.c.l.b16 %v38
  %v57 = vunpack.c.l.b16 %v39
  %v58 = vunpack.c.l.b16 %v40
  %v59 = vunpack.c.l.b16 %v41
  %v60 = vpack.c.b16 %v57, %v56
  %v61 = vpack.c.b16 %v59, %v58
  %vm64 = vcmask 261120
  %v66 = vsel %vm64, %v50, 0
  %v69 = vsel %vm64, %v51, 0
  %71 = vmatprep.subr.bf16.mxu0 0
  %72 = vmatpush1.bf16.msra.mxu0 %v60
  %73 = vmatprep.subr.bf16.mxu0 0
  %74 = vmatpush1.bf16.msra.mxu0 %v61
  %75 = vmatprep.subr.bf16.mxu0 0
  %76 = vmatpush1.bf16.msra.mxu0 0
  %77 = vmatprep.subr.bf16.mxu0 0
  %78 = vmatpush1.bf16.msra.mxu0 0
  %79 = vmatprep.subr.bf16.mxu0 0
  %80 = vmatpush1.bf16.msra.mxu0 0
  %81 = vmatprep.subr.bf16.mxu0 0
  %82 = vmatpush1.bf16.msra.mxu0 0
  %83 = vmatprep.subr.bf16.mxu0 0
  %84 = vmatpush1.bf16.msra.mxu0 0
  %85 = vmatprep.subr.bf16.mxu0 0
  %86 = vmatpush1.bf16.msra.mxu0 0
  %87 = vmatprep.subr.bf16.mxu0 0
  %88 = vmatpush1.bf16.msra.mxu0 0
  %89 = vmatprep.subr.bf16.mxu0 0
  %90 = vmatpush1.bf16.msra.mxu0 0
  %91 = vmatprep.subr.bf16.mxu0 0
  %92 = vmatpush1.bf16.msra.mxu0 0
  %93 = vmatprep.subr.bf16.mxu0 0
  %94 = vmatpush1.bf16.msra.mxu0 0
  %95 = vmatprep.subr.bf16.mxu0 0
  %96 = vmatpush1.bf16.msra.mxu0 0
  %97 = vmatprep.subr.bf16.mxu0 0
  %98 = vmatpush1.bf16.msra.mxu0 0
  %99 = vmatprep.subr.bf16.mxu0 0
  %100 = vmatpush1.bf16.msra.mxu0 0
  %101 = vmatprep.subr.bf16.mxu0 0
  %102 = vmatpush1.bf16.msra.mxu0 0
  %103 = vmatprep.mubr.bf16.mxu0 0
  %104 = vmatmul.mubr.bf16.gmra.mrb[0].mxu0 %v66
  %v105 = vpop.f32.mrb[0].mxu0
  %v106 = vadd.f32 0.0, %v105
  %v107 = vpop.f32.mrb[0].mxu0
  %v108 = vpop.f32.mrb[0].mxu0
  %v109 = vadd.f32 0.0, %v108
  %v110 = vpop.f32.mrb[0].mxu0
  %111 = vmatprep.mubr.bf16.mxu0 0
  %112 = vmatmul.mubr.bf16.gmra.mrb[0].mxu0 %v69
  %v113 = vpop.f32.mrb[0].mxu0
  %v114 = vadd.f32 0.0, %v113
  %v115 = vpop.f32.mrb[0].mxu0
  %v116 = vpop.f32.mrb[0].mxu0
  %v117 = vadd.f32 0.0, %v116
  %v118 = vpop.f32.mrb[0].mxu0
  %119 = vdwg.mxu0
  %120 = vst [vmem:[%s4] sm:$0xff] %v106
  %121 = vst [vmem:[%s4 + $0x8] sm:$0xff] %v109
  %122 = vst [vmem:[%s4 + $0x10] sm:$0xff] %v114
  %123 = vst [vmem:[%s4 + $0x18] sm:$0xff] %v117
  %v124 = vld [vmem:[#allocation2] sm:$0xff]
  %v125 = vld [vmem:[#allocation2 + $0x8] sm:$0xff]
  %v126 = vld [vmem:[#allocation2 + $0x10] sm:$0xff]
  %v127 = vld [vmem:[#allocation2 + $0x18] sm:$0xff]
  %128 = vadd.xlane.f32.xlu0 %v106
  %v129 = vpop.xlane.xlu0 %128
  %130 = vadd.xlane.f32.xlu0 %v109
  %v131 = vpop.xlane.xlu0 %130
  %132 = vadd.xlane.f32.xlu0 %v114
  %v133 = vpop.xlane.xlu0 %132
  %134 = vadd.xlane.f32.xlu0 %v117
  %v135 = vpop.xlane.xlu0 %134
  %v136 = vadd.f32 %v124, %v129
  %v137 = vadd.f32 %v125, %v131
  %v138 = vadd.f32 %v126, %v133
  %v139 = vadd.f32 %v127, %v135
  %vm140 = vcmask 7168
  %141 = vst.msk [vmem:[#allocation2] sm:$0xff] %vm140, %v136
  %142 = vst.msk [vmem:[#allocation2 + $0x8] sm:$0xff] %vm140, %v137
  %143 = vst.msk [vmem:[#allocation2 + $0x10] sm:$0xff] %vm140, %v138
  %144 = vst.msk [vmem:[#allocation2 + $0x18] sm:$0xff] %vm140, %v139
  %v145 = vld [vmem:[#allocation3] sm:$0xff]
  %v146 = vld [vmem:[#allocation3 + $0x8] sm:$0xff]
  %v147 = vld [vmem:[#allocation3 + $0x10] sm:$0xff]
  %v148 = vld [vmem:[#allocation3 + $0x18] sm:$0xff]
  %v149 = vmul.f32 %v106, %v106
  %v150 = vmul.f32 %v109, %v109
  %v151 = vmul.f32 %v114, %v114
  %v152 = vmul.f32 %v117, %v117
  %153 = vadd.xlane.f32.xlu0 %v149
  %v154 = vpop.xlane.xlu0 %153
  %155 = vadd.xlane.f32.xlu0 %v150
  %v156 = vpop.xlane.xlu0 %155
  %157 = vadd.xlane.f32.xlu0 %v151
  %v158 = vpop.xlane.xlu0 %157
  %159 = vadd.xlane.f32.xlu0 %v152
  %v160 = vpop.xlane.xlu0 %159
  %v161 = vadd.f32 %v145, %v154
  %v162 = vadd.f32 %v146, %v156
  %v163 = vadd.f32 %v147, %v158
  %v164 = vadd.f32 %v148, %v160
  %165 = vst.msk [vmem:[#allocation3] sm:$0xff] %vm140, %v161
  %166 = vst.msk [vmem:[#allocation3 + $0x8] sm:$0xff] %vm140, %v162
  %167 = vst.msk [vmem:[#allocation3 + $0x10] sm:$0xff] %vm140, %v163
  %168 = vst.msk [vmem:[#allocation3 + $0x18] sm:$0xff] %vm140, %v164
  // Predicated region
  $region22: #{resnet_forward.16} parent=0 // pred_check
    %p169 = pneg %p21
  $region23: #{resnet_forward.16} parent=0 // pred_check_branch
    %171 = sbr.rel (%p169) target = $region25
  $region24: #{resnet_forward.16} parent=0 // pred_region
    %v172 = vld [vmem:[#allocation2] sm:$0xff]
    %v173 = vld [vmem:[#allocation2 + $0x8] sm:$0xff]
    %v174 = vld [vmem:[#allocation2 + $0x10] sm:$0xff]
    %v175 = vld [vmem:[#allocation2 + $0x18] sm:$0xff]
    %v176 = vmul.f32 %v172, 0.0078125
    %v177 = vmul.f32 %v173, 0.0078125
    %v178 = vmul.f32 %v174, 0.0078125
    %v179 = vmul.f32 %v175, 0.0078125
    %v180 = vld [vmem:[#allocation3] sm:$0xff]
    %v181 = vld [vmem:[#allocation3 + $0x8] sm:$0xff]
    %v182 = vld [vmem:[#allocation3 + $0x10] sm:$0xff]
    %v183 = vld [vmem:[#allocation3 + $0x18] sm:$0xff]
    %v184 = vmul.f32 %v180, 0.0078125
    %v185 = vmul.f32 %v181, 0.0078125
    %v186 = vmul.f32 %v182, 0.0078125
    %v187 = vmul.f32 %v183, 0.0078125
    %v188 = vmul.f32 %v176, %v176
    %v189 = vmul.f32 %v177, %v177
    %v190 = vmul.f32 %v178, %v178
    %v191 = vmul.f32 %v179, %v179
    %v192 = vsub.f32 %v184, %v188
    %v193 = vsub.f32 %v185, %v189
    %v194 = vsub.f32 %v186, %v190
    %v195 = vsub.f32 %v187, %v191
    %v196 = vadd.f32 %v192, 1e-05
    %v197 = vadd.f32 %v193, 1e-05
    %v198 = vadd.f32 %v194, 1e-05
    %v199 = vadd.f32 %v195, 1e-05
    %v200 = vrsqrt.pop %v196
    %v201 = vrsqrt.pop %v197
    %v202 = vrsqrt.pop %v198
    %v203 = vrsqrt.pop %v199
    %v204 = vld [vmem:[%s2] sm:$0xff]
    %v205 = vld [vmem:[%s2 + $0x8] sm:$0xff]
    %v206 = vld [vmem:[%s2 + $0x10] sm:$0xff]
    %v207 = vld [vmem:[%s2 + $0x18] sm:$0xff]
    %v208 = vmul.f32 %v204, %v200
    %v209 = vmul.f32 %v205, %v201
    %v210 = vmul.f32 %v206, %v202
    %v211 = vmul.f32 %v207, %v203
    %212 = vst.msk [vmem:[%s5] sm:$0xff] %vm140, %v208
    %213 = vst.msk [vmem:[%s5 + $0x8] sm:$0xff] %vm140, %v209
    %214 = vst.msk [vmem:[%s5 + $0x10] sm:$0xff] %vm140, %v210
    %215 = vst.msk [vmem:[%s5 + $0x18] sm:$0xff] %vm140, %v211
    %v216 = vld [vmem:[%s3] sm:$0xff]
    %v217 = vld [vmem:[%s3 + $0x8] sm:$0xff]
    %v218 = vld [vmem:[%s3 + $0x10] sm:$0xff]
    %v219 = vld [vmem:[%s3 + $0x18] sm:$0xff]
    %v220 = vmul.f32 %v176, %v208
    %v221 = vmul.f32 %v177, %v209
    %v222 = vmul.f32 %v178, %v210
    %v223 = vmul.f32 %v179, %v211
    %v224 = vsub.f32 %v216, %v220
    %v225 = vsub.f32 %v217, %v221
    %v226 = vsub.f32 %v218, %v222
    %v227 = vsub.f32 %v219, %v223
    %228 = vst.msk [vmem:[%s6] sm:$0xff] %vm140, %v224
    %229 = vst.msk [vmem:[%s6 + $0x8] sm:$0xff] %vm140, %v225
    %230 = vst.msk [vmem:[%s6 + $0x10] sm:$0xff] %vm140, %v226
    %231 = vst.msk [vmem:[%s6 + $0x18] sm:$0xff] %vm140, %v227
  $region25: #{resnet_forward.16} parent=0 // pred_fallthru
    _
  // Predicated region
  $region26: #{resnet_forward.16} parent=0 // pred_check
    _
  $region27: #{resnet_forward.16} parent=0 // pred_check_branch
    %233 = sbr.rel (0) target = $region29
  $region28: #{resnet_forward.16} parent=0 // pred_region
    _
  $region29: #{resnet_forward.16} parent=0 // pred_fallthru
    _
  // Predicated region
  $region30: #{resnet_forward.16} parent=0 // pred_check
    _
  $region31: #{resnet_forward.16} parent=0 // pred_check_branch
    %235 = sbr.rel (0) target = $region33
  $region32: #{resnet_forward.16} parent=0 // pred_region
    _
  $region33: #{resnet_forward.16} parent=0 // pred_fallthru
    _
  // Predicated region
  $region34: #{resnet_forward.16} parent=0 // pred_check
    _
  $region35: #{resnet_forward.16} parent=0 // pred_check_branch
    %237 = sbr.rel (0) target = $region37
  $region36: #{resnet_forward.16} parent=0 // pred_region
    _
  $region37: #{resnet_forward.16} parent=0 // pred_fallthru
    _
  // Predicated region
  $region38: #{resnet_forward.16} parent=0 // pred_check
    _
  $region39: #{resnet_forward.16} parent=0 // pred_check_branch
    %239 = sbr.rel (0) target = $region41
  $region40: #{resnet_forward.16} parent=0 // pred_region
    _
  $region41: #{resnet_forward.16} parent=0 // pred_fallthru
    _
  // Predicated region
  $region42: #{resnet_forward.16} parent=0 // pred_check
    _
  $region43: #{resnet_forward.16} parent=0 // pred_check_branch
    %241 = sbr.rel (0) target = $region45
  $region44: #{resnet_forward.16} parent=0 // pred_region
    _
  $region45: #{resnet_forward.16} parent=0 // pred_fallthru
    _
  // Predicated region
  $region46: #{resnet_forward.16} parent=0 // pred_check
    _
  $region47: #{resnet_forward.16} parent=0 // pred_check_branch
    %243 = sbr.rel (0) target = $region49
  $region48: #{resnet_forward.16} parent=0 // pred_region
    _
  $region49: #{resnet_forward.16} parent=0 // pred_fallthru
    _

// kernel: resnet_forward.21
$region0: #{resnet_forward.21}
  #allocation0 [shape = 'u32[]', space=smem, size = 0x4, offset = 0x4, fixed_abs, tag = 'smem constant byte address 0x4 - core index']
  #allocation1 [shape = 'u32[144,128]{1,0:T(1,128)}', space=vmem, size = 0x12000, scoped, tag = 'internal scratch']
  %s0 = inlined_call_operand.vmem [shape: f32[32,128], index: 0, kind: input, shape index: {}]
  %s1 = inlined_call_operand.vmem [shape: f32[32,1], index: 1, kind: input, shape index: {}]
  %s2 = inlined_call_operand.vmem [shape: f32[32,1], index: 2, kind: input, shape index: {}]
  %s3 = inlined_call_operand.vmem [shape: f32[32,128], index: 3, kind: input, shape index: {}]
  %s4 = inlined_call_operand.vmem [shape: f32[32,128], index: 4, kind: output, shape index: {}]
  %s5 = sld [smem:[#allocation0]]
  $region26: #{resnet_forward.21} parent=0
    _
  %s7 = ssub.s32 1, %s5
  %s8 = scalar_select 0, %s7, %s5
  // Predicated region
  $region2: #{resnet_forward.21} parent=0 // pred_check
    _
  $region3: #{resnet_forward.21} parent=0 // pred_check_branch
    %10 = sbr.rel (0) target = $region5
  $region4: #{resnet_forward.21} parent=0 // pred_region
    _
  $region5: #{resnet_forward.21} parent=0 // pred_fallthru
    _
  // Predicated region
  $region6: #{resnet_forward.21} parent=0 // pred_check
    _
  $region7: #{resnet_forward.21} parent=0 // pred_check_branch
    %12 = sbr.rel (0) target = $region9
  $region8: #{resnet_forward.21} parent=0 // pred_region
    _
  $region9: #{resnet_forward.21} parent=0 // pred_fallthru
    _
  // Predicated region
  $region10: #{resnet_forward.21} parent=0 // pred_check
    _
  $region11: #{resnet_forward.21} parent=0 // pred_check_branch
    %14 = sbr.rel (0) target = $region13
  $region12: #{resnet_forward.21} parent=0 // pred_region
    _
  $region13: #{resnet_forward.21} parent=0 // pred_fallthru
    _
  // Predicated region
  $region14: #{resnet_forward.21} parent=0 // pred_check
    _
  $region15: #{resnet_forward.21} parent=0 // pred_check_branch
    %16 = sbr.rel (0) target = $region17
  $region16: #{resnet_forward.21} parent=0 // pred_region
    _
  $region17: #{resnet_forward.21} parent=0 // pred_fallthru
    _
  %v17 = vld [vmem:[%s0] sm:$0xff]
  %v18 = vld [vmem:[%s0 + $0x8] sm:$0xff]
  %v19 = vld [vmem:[%s0 + $0x10] sm:$0xff]
  %v20 = vld [vmem:[%s0 + $0x18] sm:$0xff]
  %v21 = vld [vmem:[%s1] sm:$0xff]
  %v22 = vld [vmem:[%s1 + $0x8] sm:$0xff]
  %v23 = vld [vmem:[%s1 + $0x10] sm:$0xff]
  %v24 = vld [vmem:[%s1 + $0x18] sm:$0xff]
  %26 = vset.pattern.permute.xlu0 0
  %27 = vperm.xlu0 %26, %v21
  %v28 = vpop.permute.xlu0 %27
  %31 = vset.pattern.permute.xlu0 0
  %32 = vperm.xlu0 %31, %v22
  %v33 = vpop.permute.xlu0 %32
  %36 = vset.pattern.permute.xlu0 0
  %37 = vperm.xlu0 %36, %v23
  %v38 = vpop.permute.xlu0 %37
  %41 = vset.pattern.permute.xlu0 0
  %42 = vperm.xlu0 %41, %v24
  %v43 = vpop.permute.xlu0 %42
  %v45 = vmul.f32 %v17, %v28
  %v46 = vmul.f32 %v18, %v33
  %v47 = vmul.f32 %v19, %v38
  %v48 = vmul.f32 %v20, %v43
  %v49 = vld [vmem:[%s2] sm:$0xff]
  %v50 = vld [vmem:[%s2 + $0x8] sm:$0xff]
  %v51 = vld [vmem:[%s2 + $0x10] sm:$0xff]
  %v52 = vld [vmem:[%s2 + $0x18] sm:$0xff]
  %54 = vset.pattern.permute.xlu0 0
  %55 = vperm.xlu0 %54, %v49
  %v56 = vpop.permute.xlu0 %55
  %59 = vset.pattern.permute.xlu0 0
  %60 = vperm.xlu0 %59, %v50
  %v61 = vpop.permute.xlu0 %60
  %64 = vset.pattern.permute.xlu0 0
  %65 = vperm.xlu0 %64, %v51
  %v66 = vpop.permute.xlu0 %65
  %69 = vset.pattern.permute.xlu0 0
  %70 = vperm.xlu0 %69, %v52
  %v71 = vpop.permute.xlu0 %70
  %v73 = vadd.f32 %v45, %v56
  %v74 = vadd.f32 %v46, %v61
  %v75 = vadd.f32 %v47, %v66
  %v76 = vadd.f32 %v48, %v71
  %v77 = vld [vmem:[%s3] sm:$0xff]
  %v78 = vld [vmem:[%s3 + $0x8] sm:$0xff]
  %v79 = vld [vmem:[%s3 + $0x10] sm:$0xff]
  %v80 = vld [vmem:[%s3 + $0x18] sm:$0xff]
  %v81 = vadd.f32 %v73, %v77
  %v82 = vadd.f32 %v74, %v78
  %v83 = vadd.f32 %v75, %v79
  %v84 = vadd.f32 %v76, %v80
  %v85 = vmax.f32 %v81, 0.0
  %v86 = vmax.f32 %v82, 0.0
  %v87 = vmax.f32 %v83, 0.0
  %v88 = vmax.f32 %v84, 0.0
  %89 = vst [vmem:[%s4] sm:$0xff] %v85
  %90 = vst [vmem:[%s4 + $0x8] sm:$0xff] %v86
  %91 = vst [vmem:[%s4 + $0x10] sm:$0xff] %v87
  %92 = vst [vmem:[%s4 + $0x18] sm:$0xff] %v88
  // Predicated region
  $region18: #{resnet_forward.21} parent=0 // pred_check
    _
  $region19: #{resnet_forward.21} parent=0 // pred_check_branch
    %94 = sbr.rel (0) target = $region21
  $region20: #{resnet_forward.21} parent=0 // pred_region
    _
  $region21: #{resnet_forward.21} parent=0 // pred_fallthru
    _
  // Predicated region
  $region22: #{resnet_forward.21} parent=0 // pred_check
    _
  $region23: #{resnet_forward.21} parent=0 // pred_check_branch
    %96 = sbr.rel (0) target = $region25
  $region24: #{resnet_forward.21} parent=0 // pred_region
    _
  $region25: #{resnet_forward.21} parent=0 // pred_fallthru
    _

// kernel: resnet_forward.30
$region0: #{resnet_forward.30}
  #allocation0 [shape = 'u32[]', space=smem, size = 0x4, offset = 0x4, fixed_abs, tag = 'smem constant byte address 0x4 - core index']
  #allocation1 [shape = 'u32[144,128]{1,0:T(1,128)}', space=vmem, size = 0x12000, scoped, tag = 'internal scratch']
  %s0 = inlined_call_operand.vmem [shape: f32[3,128], index: 0, kind: input, shape index: {}]
  %s1 = inlined_call_operand.vmem [shape: f32[3,1], index: 1, kind: input, shape index: {}]
  %s2 = inlined_call_operand.vmem [shape: f32[3,1], index: 2, kind: input, shape index: {}]
  %s3 = inlined_call_operand.vmem [shape: f32[3,128], index: 3, kind: output, shape index: {}]
  %s4 = sld [smem:[#allocation0]]
  $region22: #{resnet_forward.30} parent=0
    _
  %s6 = ssub.s32 1, %s4
  %s7 = scalar_select 0, %s6, %s4
  // Predicated region
  $region2: #{resnet_forward.30} parent=0 // pred_check
    _
  $region3: #{resnet_forward.30} parent=0 // pred_check_branch
    %9 = sbr.rel (0) target = $region5
  $region4: #{resnet_forward.30} parent=0 // pred_region
    _
  $region5: #{resnet_forward.30} parent=0 // pred_fallthru
    _
  // Predicated region
  $region6: #{resnet_forward.30} parent=0 // pred_check
    _
  $region7: #{resnet_forward.30} parent=0 // pred_check_branch
    %11 = sbr.rel (0) target = $region9
  $region8: #{resnet_forward.30} parent=0 // pred_region
    _
  $region9: #{resnet_forward.30} parent=0 // pred_fallthru
    _
  // Predicated region
  $region10: #{resnet_forward.30} parent=0 // pred_check
    _
  $region11: #{resnet_forward.30} parent=0 // pred_check_branch
    %13 = sbr.rel (0) target = $region13
  $region12: #{resnet_forward.30} parent=0 // pred_region
    _
  $region13: #{resnet_forward.30} parent=0 // pred_fallthru
    _
  %v14 = vld [vmem:[%s0] sm:$0x7]
  %v15 = vld [vmem:[%s1] sm:$0x7]
  %17 = vset.pattern.permute.xlu0 0
  %18 = vperm.xlu0 %17, %v15
  %v19 = vpop.permute.xlu0 %18
  %v21 = vmul.f32 %v14, %v19
  %v22 = vld [vmem:[%s2] sm:$0x7]
  %24 = vset.pattern.permute.xlu0 0
  %25 = vperm.xlu0 %24, %v22
  %v26 = vpop.permute.xlu0 %25
  %v28 = vadd.f32 %v21, %v26
  %v29 = vmax.f32 %v28, 0.0
  %30 = vst [vmem:[%s3] sm:$0x7] %v29
  // Predicated region
  $region14: #{resnet_forward.30} parent=0 // pred_check
    _
  $region15: #{resnet_forward.30} parent=0 // pred_check_branch
    %32 = sbr.rel (0) target = $region17
  $region16: #{resnet_forward.30} parent=0 // pred_region
    _
  $region17: #{resnet_forward.30} parent=0 // pred_fallthru
    _
  // Predicated region
  $region18: #{resnet_forward.30} parent=0 // pred_check
    _
  $region19: #{resnet_forward.30} parent=0 // pred_check_branch
    %34 = sbr.rel (0) target = $region21
  $region20: #{resnet_forward.30} parent=0 // pred_region
    _
  $region21: #{resnet_forward.30} parent=0 // pred_fallthru
    _

// kernel: resnet_forward.18
$region0: #{resnet_forward.18}
  #allocation0 [shape = 'u32[]', space=smem, size = 0x4, offset = 0x4, fixed_abs, tag = 'smem constant byte address 0x4 - core index']
  #allocation1 [shape = 'u32[144,128]{1,0:T(1,128)}', space=vmem, size = 0x12000, scoped, tag = 'internal scratch']
  #allocation2 [shape = 'f32[32,1]{1,0:T(8,128)}', space=vmem, size = 0x4000, scoped, tag = 'scratch operand']
  #allocation3 [shape = 'f32[32,1]{1,0:T(8,128)}', space=vmem, size = 0x4000, scoped, tag = 'scratch operand']
  %s0 = inlined_call_operand.vmem [shape: bf16[288,128], index: 0, kind: input, shape index: {}]
  %s1 = inlined_call_operand.vmem [shape: bf16[32,288], index: 1, kind: input, shape index: {}]
  %s2 = inlined_call_operand.vmem [shape: f32[32,1], index: 2, kind: input, shape index: {}]
  %s3 = inlined_call_operand.vmem [shape: f32[32,1], index: 3, kind: input, shape index: {}]
  %s4 = inlined_call_operand.vmem [shape: f32[32,128], index: 4, kind: output, shape index: {0}]
  %s5 = inlined_call_operand.vmem [shape: f32[32,1], index: 5, kind: output, shape index: {1}]
  %s6 = inlined_call_operand.vmem [shape: f32[32,1], index: 6, kind: output, shape index: {2}]
  %7 = xla_tuple %s4, %s5, %s6
  %s8 = sld [smem:[#allocation0]]
  $region50: #{resnet_forward.18} parent=0
    _
  %s10 = ssub.s32 1, %s8
  %s11 = scalar_select 0, %s10, %s8
  // Predicated region
  $region2: #{resnet_forward.18} parent=0 // pred_check
    _
  $region3: #{resnet_forward.18} parent=0 // pred_check_branch
    %13 = sbr.rel (0) target = $region5
  $region4: #{resnet_forward.18} parent=0 // pred_region
    _
  $region5: #{resnet_forward.18} parent=0 // pred_fallthru
    _
  // Predicated region
  $region6: #{resnet_forward.18} parent=0 // pred_check
    _
  $region7: #{resnet_forward.18} parent=0 // pred_check_branch
    %15 = sbr.rel (0) target = $region9
  $region8: #{resnet_forward.18} parent=0 // pred_region
    _
  $region9: #{resnet_forward.18} parent=0 // pred_fallthru
    _
  // Predicated region
  $region10: #{resnet_forward.18} parent=0 // pred_check
    _
  $region11: #{resnet_forward.18} parent=0 // pred_check_branch
    %17 = sbr.rel (0) target = $region13
  $region12: #{resnet_forward.18} parent=0 // pred_region
    _
  $region13: #{resnet_forward.18} parent=0 // pred_fallthru
    _
  // Predicated region
  $region14: #{resnet_forward.18} parent=0 // pred_check
    _
  $region15: #{resnet_forward.18} parent=0 // pred_check_branch
    %19 = sbr.rel (0) target = $region17
  $region16: #{resnet_forward.18} parent=0 // pred_region
    _
  $region17: #{resnet_forward.18} parent=0 // pred_fallthru
    _
  %p21 = scmp.eq.s32.totalorder 0, 0
  // Predicated region
  $region18: #{resnet_forward.18} parent=0 // pred_check
    %p22 = pneg %p21
  $region19: #{resnet_forward.18} parent=0 // pred_check_branch
    %24 = sbr.rel (%p22) target = $region21
  $region20: #{resnet_forward.18} parent=0 // pred_region
    %vm25 = vcmask 7168
    %26 = vst.msk [vmem:[#allocation2] sm:$0xff] %vm25, 0.0
    %27 = vst.msk [vmem:[#allocation2 + $0x8] sm:$0xff] %vm25, 0.0
    %28 = vst.msk [vmem:[#allocation2 + $0x10] sm:$0xff] %vm25, 0.0
    %29 = vst.msk [vmem:[#allocation2 + $0x18] sm:$0xff] %vm25, 0.0
    %30 = vst.msk [vmem:[#allocation3] sm:$0xff] %vm25, 0.0
    %31 = vst.msk [vmem:[#allocation3 + $0x8] sm:$0xff] %vm25, 0.0
    %32 = vst.msk [vmem:[#allocation3 + $0x10] sm:$0xff] %vm25, 0.0
    %33 = vst.msk [vmem:[#allocation3 + $0x18] sm:$0xff] %vm25, 0.0
  $region21: #{resnet_forward.18} parent=0 // pred_fallthru
    _
  %v34 = vld [vmem:[%s1] sm:$0xff]
  %v35 = vld [vmem:[%s1 + $0x8] sm:$0xf]
  %v36 = vld [vmem:[%s1 + $0xc] sm:$0xff]
  %v37 = vld [vmem:[%s1 + $0x14] sm:$0xf]
  %v38 = vld [vmem:[%s1 + $0x18] sm:$0xff]
  %v39 = vld [vmem:[%s1 + $0x20] sm:$0xf]
  %v40 = vld [vmem:[%s1 + $0x24] sm:$0xff]
  %v41 = vld [vmem:[%s1 + $0x2c] sm:$0xf]
  %v42 = vld [vmem:[%s0] sm:$0xf]
  %v43 = vld [vmem:[%s0 + $0x4] sm:$0xf]
  %v44 = vld [vmem:[%s0 + $0x8] sm:$0xf]
  %v45 = vld [vmem:[%s0 + $0xc] sm:$0xf]
  %v46 = vld [vmem:[%s0 + $0x10] sm:$0xf]
  %v47 = vld [vmem:[%s0 + $0x14] sm:$0xf]
  %v48 = vld [vmem:[%s0 + $0x18] sm:$0xf]
  %v49 = vld [vmem:[%s0 + $0x1c] sm:$0xf]
  %v50 = vld [vmem:[%s0 + $0x20] sm:$0xf]
  %v51 = vld [vmem:[%s0 + $0x24] sm:$0xf]
  %v52 = vld [vmem:[%s0 + $0x28] sm:$0xf]
  %v53 = vld [vmem:[%s0 + $0x2c] sm:$0xf]
  %v54 = vld [vmem:[%s0 + $0x30] sm:$0xf]
  %v55 = vld [vmem:[%s0 + $0x34] sm:$0xf]
  %v56 = vld [vmem:[%s0 + $0x38] sm:$0xf]
  %v57 = vld [vmem:[%s0 + $0x3c] sm:$0xf]
  %v58 = vld [vmem:[%s0 + $0x40] sm:$0xf]
  %v59 = vld [vmem:[%s0 + $0x44] sm:$0xf]
  %v60 = vld [vmem:[%s0 + $0x48] sm:$0xf]
  %v61 = vld [vmem:[%s0 + $0x4c] sm:$0xf]
  %v62 = vld [vmem:[%s0 + $0x50] sm:$0xf]
  %v63 = vld [vmem:[%s0 + $0x54] sm:$0xf]
  %v64 = vld [vmem:[%s0 + $0x58] sm:$0xf]
  %v65 = vld [vmem:[%s0 + $0x5c] sm:$0xf]
  %v66 = vld [vmem:[%s0 + $0x60] sm:$0xf]
  %v67 = vld [vmem:[%s0 + $0x64] sm:$0xf]
  %v68 = vld [vmem:[%s0 + $0x68] sm:$0xf]
  %v69 = vld [vmem:[%s0 + $0x6c] sm:$0xf]
  %v70 = vld [vmem:[%s0 + $0x70] sm:$0xf]
  %v71 = vld [vmem:[%s0 + $0x74] sm:$0xf]
  %v72 = vld [vmem:[%s0 + $0x78] sm:$0xf]
  %v73 = vld [vmem:[%s0 + $0x7c] sm:$0xf]
  %v74 = vld [vmem:[%s0 + $0x80] sm:$0xf]
  %v75 = vld [vmem:[%s0 + $0x84] sm:$0xf]
  %v76 = vld [vmem:[%s0 + $0x88] sm:$0xf]
  %v77 = vld [vmem:[%s0 + $0x8c] sm:$0xf]
  %v86 = vunpack.c.l.b16 %v34
  %v87 = vunpack.c.h.b16 %v34
  %v88 = vunpack.c.l.b16 %v35
  %v89 = vunpack.c.l.b16 %v36
  %v90 = vunpack.c.h.b16 %v36
  %v91 = vunpack.c.l.b16 %v37
  %v92 = vunpack.c.l.b16 %v38
  %v93 = vunpack.c.h.b16 %v38
  %v94 = vunpack.c.l.b16 %v39
  %v95 = vunpack.c.l.b16 %v40
  %v96 = vunpack.c.h.b16 %v40
  %v97 = vunpack.c.l.b16 %v41
  %v98 = vpack.c.b16 %v89, %v86
  %v99 = vpack.c.b16 %v90, %v87
  %v100 = vpack.c.b16 %v91, %v88
  %v101 = vpack.c.b16 %v95, %v92
  %v102 = vpack.c.b16 %v96, %v93
  %v103 = vpack.c.b16 %v97, %v94
  %v144 = vunpack.c.l.b16 %v42
  %v145 = vunpack.c.l.b16 %v43
  %v146 = vunpack.c.l.b16 %v44
  %v147 = vunpack.c.l.b16 %v45
  %v148 = vunpack.c.l.b16 %v46
  %v149 = vunpack.c.l.b16 %v47
  %v150 = vunpack.c.l.b16 %v48
  %v151 = vunpack.c.l.b16 %v49
  %v152 = vunpack.c.l.b16 %v50
  %v153 = vunpack.c.l.b16 %v51
  %v154 = vunpack.c.l.b16 %v52
  %v155 = vunpack.c.l.b16 %v53
  %v156 = vunpack.c.l.b16 %v54
  %v157 = vunpack.c.l.b16 %v55
  %v158 = vunpack.c.l.b16 %v56
  %v159 = vunpack.c.l.b16 %v57
  %v160 = vunpack.c.l.b16 %v58
  %v161 = vunpack.c.l.b16 %v59
  %v162 = vunpack.c.l.b16 %v60
  %v163 = vunpack.c.l.b16 %v61
  %v164 = vunpack.c.l.b16 %v62
  %v165 = vunpack.c.l.b16 %v63
  %v166 = vunpack.c.l.b16 %v64
  %v167 = vunpack.c.l.b16 %v65
  %v168 = vunpack.c.l.b16 %v66
  %v169 = vunpack.c.l.b16 %v67
  %v170 = vunpack.c.l.b16 %v68
  %v171 = vunpack.c.l.b16 %v69
  %v172 = vunpack.c.l.b16 %v70
  %v173 = vunpack.c.l.b16 %v71
  %v174 = vunpack.c.l.b16 %v72
  %v175 = vunpack.c.l.b16 %v73
  %v176 = vunpack.c.l.b16 %v74
  %v177 = vunpack.c.l.b16 %v75
  %v178 = vunpack.c.l.b16 %v76
  %v179 = vunpack.c.l.b16 %v77
  %v180 = vpack.c.b16 %v145, %v144
  %v181 = vpack.c.b16 %v147, %v146
  %v182 = vpack.c.b16 %v149, %v148
  %v183 = vpack.c.b16 %v151, %v150
  %v184 = vpack.c.b16 %v153, %v152
  %v185 = vpack.c.b16 %v155, %v154
  %v186 = vpack.c.b16 %v157, %v156
  %v187 = vpack.c.b16 %v159, %v158
  %v188 = vpack.c.b16 %v161, %v160
  %v189 = vpack.c.b16 %v163, %v162
  %v190 = vpack.c.b16 %v165, %v164
  %v191 = vpack.c.b16 %v167, %v166
  %v192 = vpack.c.b16 %v169, %v168
  %v193 = vpack.c.b16 %v171, %v170
  %v194 = vpack.c.b16 %v173, %v172
  %v195 = vpack.c.b16 %v175, %v174
  %v196 = vpack.c.b16 %v177, %v176
  %v197 = vpack.c.b16 %v179, %v178
  %vm216 = vcmask 261120
  %v218 = vsel %vm216, %v100, 0
  %v221 = vsel %vm216, %v103, 0
  %223 = vmatprep.subr.bf16.mxu0 0
  %224 = vmatpush1.bf16.msra.mxu0 %v180
  %225 = vmatprep.subr.bf16.mxu0 0
  %226 = vmatpush1.bf16.msra.mxu0 %v181
  %227 = vmatprep.subr.bf16.mxu0 0
  %228 = vmatpush1.bf16.msra.mxu0 %v182
  %229 = vmatprep.subr.bf16.mxu0 0
  %230 = vmatpush1.bf16.msra.mxu0 %v183
  %231 = vmatprep.subr.bf16.mxu0 0
  %232 = vmatpush1.bf16.msra.mxu0 %v184
  %233 = vmatprep.subr.bf16.mxu0 0
  %234 = vmatpush1.bf16.msra.mxu0 %v185
  %235 = vmatprep.subr.bf16.mxu0 0
  %236 = vmatpush1.bf16.msra.mxu0 %v186
  %237 = vmatprep.subr.bf16.mxu0 0
  %238 = vmatpush1.bf16.msra.mxu0 %v187
  %239 = vmatprep.subr.bf16.mxu0 0
  %240 = vmatpush1.bf16.msra.mxu0 %v188
  %241 = vmatprep.subr.bf16.mxu0 0
  %242 = vmatpush1.bf16.msra.mxu0 %v189
  %243 = vmatprep.subr.bf16.mxu0 0
  %244 = vmatpush1.bf16.msra.mxu0 %v190
  %245 = vmatprep.subr.bf16.mxu0 0
  %246 = vmatpush1.bf16.msra.mxu0 %v191
  %247 = vmatprep.subr.bf16.mxu0 0
  %248 = vmatpush1.bf16.msra.mxu0 %v192
  %249 = vmatprep.subr.bf16.mxu0 0
  %250 = vmatpush1.bf16.msra.mxu0 %v193
  %251 = vmatprep.subr.bf16.mxu0 0
  %252 = vmatpush1.bf16.msra.mxu0 %v194
  %253 = vmatprep.subr.bf16.mxu0 0
  %254 = vmatpush1.bf16.msra.mxu0 %v195
  %255 = vmatprep.mubr.bf16.mxu0 %v99
  %256 = vmatmul.mubr.bf16.gmra.mrb[0].mxu0 %v98
  %v257 = vpop.f32.mrb[0].mxu0
  %v258 = vadd.f32 0.0, %v257
  %v259 = vpop.f32.mrb[0].mxu0
  %v260 = vpop.f32.mrb[0].mxu0
  %v261 = vadd.f32 0.0, %v260
  %v262 = vpop.f32.mrb[0].mxu0
  %263 = vmatprep.mubr.bf16.mxu0 %v102
  %264 = vmatmul.mubr.bf16.gmra.mrb[0].mxu0 %v101
  %v265 = vpop.f32.mrb[0].mxu0
  %v266 = vadd.f32 0.0, %v265
  %v267 = vpop.f32.mrb[0].mxu0
  %v268 = vpop.f32.mrb[0].mxu0
  %v269 = vadd.f32 0.0, %v268
  %v270 = vpop.f32.mrb[0].mxu0
  %271 = vdwg.mxu0
  %272 = vmatprep.subr.bf16.mxu0 0
  %273 = vmatpush1.bf16.msra.mxu0 %v196
  %274 = vmatprep.subr.bf16.mxu0 0
  %275 = vmatpush1.bf16.msra.mxu0 %v197
  %276 = vmatprep.subr.bf16.mxu0 0
  %277 = vmatpush1.bf16.msra.mxu0 0
  %278 = vmatprep.subr.bf16.mxu0 0
  %279 = vmatpush1.bf16.msra.mxu0 0
  %280 = vmatprep.subr.bf16.mxu0 0
  %281 = vmatpush1.bf16.msra.mxu0 0
  %282 = vmatprep.subr.bf16.mxu0 0
  %283 = vmatpush1.bf16.msra.mxu0 0
  %284 = vmatprep.subr.bf16.mxu0 0
  %285 = vmatpush1.bf16.msra.mxu0 0
  %286 = vmatprep.subr.bf16.mxu0 0
  %287 = vmatpush1.bf16.msra.mxu0 0
  %288 = vmatprep.subr.bf16.mxu0 0
  %289 = vmatpush1.bf16.msra.mxu0 0
  %290 = vmatprep.subr.bf16.mxu0 0
  %291 = vmatpush1.bf16.msra.mxu0 0
  %292 = vmatprep.subr.bf16.mxu0 0
  %293 = vmatpush1.bf16.msra.mxu0 0
  %294 = vmatprep.subr.bf16.mxu0 0
  %295 = vmatpush1.bf16.msra.mxu0 0
  %296 = vmatprep.subr.bf16.mxu0 0
  %297 = vmatpush1.bf16.msra.mxu0 0
  %298 = vmatprep.subr.bf16.mxu0 0
  %299 = vmatpush1.bf16.msra.mxu0 0
  %300 = vmatprep.subr.bf16.mxu0 0
  %301 = vmatpush1.bf16.msra.mxu0 0
  %302 = vmatprep.subr.bf16.mxu0 0
  %303 = vmatpush1.bf16.msra.mxu0 0
  %304 = vmatprep.mubr.bf16.mxu0 0
  %305 = vmatmul.mubr.bf16.gmra.mrb[0].mxu0 %v218
  %v306 = vpop.f32.mrb[0].mxu0
  %v307 = vadd.f32 %v258, %v306
  %v308 = vpop.f32.mrb[0].mxu0
  %v309 = vpop.f32.mrb[0].mxu0
  %v310 = vadd.f32 %v261, %v309
  %v311 = vpop.f32.mrb[0].mxu0
  %312 = vmatprep.mubr.bf16.mxu0 0
  %313 = vmatmul.mubr.bf16.gmra.mrb[0].mxu0 %v221
  %v314 = vpop.f32.mrb[0].mxu0
  %v315 = vadd.f32 %v266, %v314
  %v316 = vpop.f32.mrb[0].mxu0
  %v317 = vpop.f32.mrb[0].mxu0
  %v318 = vadd.f32 %v269, %v317
  %v319 = vpop.f32.mrb[0].mxu0
  %320 = vdwg.mxu0
  %321 = vst [vmem:[%s4] sm:$0xff] %v307
  %322 = vst [vmem:[%s4 + $0x8] sm:$0xff] %v310
  %323 = vst [vmem:[%s4 + $0x10] sm:$0xff] %v315
  %324 = vst [vmem:[%s4 + $0x18] sm:$0xff] %v318
  %v325 = vld [vmem:[#allocation2] sm:$0xff]
  %v326 = vld [vmem:[#allocation2 + $0x8] sm:$0xff]
  %v327 = vld [vmem:[#allocation2 + $0x10] sm:$0xff]
  %v328 = vld [vmem:[#allocation2 + $0x18] sm:$0xff]
  %329 = vadd.xlane.f32.xlu0 %v307
  %v330 = vpop.xlane.xlu0 %329
  %331 = vadd.xlane.f32.xlu0 %v310
  %v332 = vpop.xlane.xlu0 %331
  %333 = vadd.xlane.f32.xlu0 %v315
  %v334 = vpop.xlane.xlu0 %333
  %335 = vadd.xlane.f32.xlu0 %v318
  %v336 = vpop.xlane.xlu0 %335
  %v337 = vadd.f32 %v325, %v330
  %v338 = vadd.f32 %v326, %v332
  %v339 = vadd.f32 %v327, %v334
  %v340 = vadd.f32 %v328, %v336
  %vm341 = vcmask 7168
  %342 = vst.msk [vmem:[#allocation2] sm:$0xff] %vm341, %v337
  %343 = vst.msk [vmem:[#allocation2 + $0x8] sm:$0xff] %vm341, %v338
  %344 = vst.msk [vmem:[#allocation2 + $0x10] sm:$0xff] %vm341, %v339
  %345 = vst.msk [vmem:[#allocation2 + $0x18] sm:$0xff] %vm341, %v340
  %v346 = vld [vmem:[#allocation3] sm:$0xff]
  %v347 = vld [vmem:[#allocation3 + $0x8] sm:$0xff]
  %v348 = vld [vmem:[#allocation3 + $0x10] sm:$0xff]
  %v349 = vld [vmem:[#allocation3 + $0x18] sm:$0xff]
  %v350 = vmul.f32 %v307, %v307
  %v351 = vmul.f32 %v310, %v310
  %v352 = vmul.f32 %v315, %v315
  %v353 = vmul.f32 %v318, %v318
  %354 = vadd.xlane.f32.xlu0 %v350
  %v355 = vpop.xlane.xlu0 %354
  %356 = vadd.xlane.f32.xlu0 %v351
  %v357 = vpop.xlane.xlu0 %356
  %358 = vadd.xlane.f32.xlu0 %v352
  %v359 = vpop.xlane.xlu0 %358
  %360 = vadd.xlane.f32.xlu0 %v353
  %v361 = vpop.xlane.xlu0 %360
  %v362 = vadd.f32 %v346, %v355
  %v363 = vadd.f32 %v347, %v357
  %v364 = vadd.f32 %v348, %v359
  %v365 = vadd.f32 %v349, %v361
  %366 = vst.msk [vmem:[#allocation3] sm:$0xff] %vm341, %v362
  %367 = vst.msk [vmem:[#allocation3 + $0x8] sm:$0xff] %vm341, %v363
  %368 = vst.msk [vmem:[#allocation3 + $0x10] sm:$0xff] %vm341, %v364
  %369 = vst.msk [vmem:[#allocation3 + $0x18] sm:$0xff] %vm341, %v365
  // Predicated region
  $region22: #{resnet_forward.18} parent=0 // pred_check
    %p370 = pneg %p21
  $region23: #{resnet_forward.18} parent=0 // pred_check_branch
    %372 = sbr.rel (%p370) target = $region25
  $region24: #{resnet_forward.18} parent=0 // pred_region
    %v373 = vld [vmem:[#allocation2] sm:$0xff]
    %v374 = vld [vmem:[#allocation2 + $0x8] sm:$0xff]
    %v375 = vld [vmem:[#allocation2 + $0x10] sm:$0xff]
    %v376 = vld [vmem:[#allocation2 + $0x18] sm:$0xff]
    %v377 = vmul.f32 %v373, 0.0078125
    %v378 = vmul.f32 %v374, 0.0078125
    %v379 = vmul.f32 %v375, 0.0078125
    %v380 = vmul.f32 %v376, 0.0078125
    %v381 = vld [vmem:[#allocation3] sm:$0xff]
    %v382 = vld [vmem:[#allocation3 + $0x8] sm:$0xff]
    %v383 = vld [vmem:[#allocation3 + $0x10] sm:$0xff]
    %v384 = vld [vmem:[#allocation3 + $0x18] sm:$0xff]
    %v385 = vmul.f32 %v381, 0.0078125
    %v386 = vmul.f32 %v382, 0.0078125
    %v387 = vmul.f32 %v383, 0.0078125
    %v388 = vmul.f32 %v384, 0.0078125
    %v389 = vmul.f32 %v377, %v377
    %v390 = vmul.f32 %v378, %v378
    %v391 = vmul.f32 %v379, %v379
    %v392 = vmul.f32 %v380, %v380
    %v393 = vsub.f32 %v385, %v389
    %v394 = vsub.f32 %v386, %v390
    %v395 = vsub.f32 %v387, %v391
    %v396 = vsub.f32 %v388, %v392
    %v397 = vadd.f32 %v393, 1e-05
    %v398 = vadd.f32 %v394, 1e-05
    %v399 = vadd.f32 %v395, 1e-05
    %v400 = vadd.f32 %v396, 1e-05
    %v401 = vrsqrt.pop %v397
    %v402 = vrsqrt.pop %v398
    %v403 = vrsqrt.pop %v399
    %v404 = vrsqrt.pop %v400
    %v405 = vld [vmem:[%s2] sm:$0xff]
    %v406 = vld [vmem:[%s2 + $0x8] sm:$0xff]
    %v407 = vld [vmem:[%s2 + $0x10] sm:$0xff]
    %v408 = vld [vmem:[%s2 + $0x18] sm:$0xff]
    %v409 = vmul.f32 %v405, %v401
    %v410 = vmul.f32 %v406, %v402
    %v411 = vmul.f32 %v407, %v403
    %v412 = vmul.f32 %v408, %v404
    %413 = vst.msk [vmem:[%s5] sm:$0xff] %vm341, %v409
    %414 = vst.msk [vmem:[%s5 + $0x8] sm:$0xff] %vm341, %v410
    %415 = vst.msk [vmem:[%s5 + $0x10] sm:$0xff] %vm341, %v411
    %416 = vst.msk [vmem:[%s5 + $0x18] sm:$0xff] %vm341, %v412
    %v417 = vld [vmem:[%s3] sm:$0xff]
    %v418 = vld [vmem:[%s3 + $0x8] sm:$0xff]
    %v419 = vld [vmem:[%s3 + $0x10] sm:$0xff]
    %v420 = vld [vmem:[%s3 + $0x18] sm:$0xff]
    %v421 = vmul.f32 %v377, %v409
    %v422 = vmul.f32 %v378, %v410
    %v423 = vmul.f32 %v379, %v411
    %v424 = vmul.f32 %v380, %v412
    %v425 = vsub.f32 %v417, %v421
    %v426 = vsub.f32 %v418, %v422
    %v427 = vsub.f32 %v419, %v423
    %v428 = vsub.f32 %v420, %v424
    %429 = vst.msk [vmem:[%s6] sm:$0xff] %vm341, %v425
    %430 = vst.msk [vmem:[%s6 + $0x8] sm:$0xff] %vm341, %v426
    %431 = vst.msk [vmem:[%s6 + $0x10] sm:$0xff] %vm341, %v427
    %432 = vst.msk [vmem:[%s6 + $0x18] sm:$0xff] %vm341, %v428
  $region25: #{resnet_forward.18} parent=0 // pred_fallthru
    _
  // Predicated region
  $region26: #{resnet_forward.18} parent=0 // pred_check
    _
  $region27: #{resnet_forward.18} parent=0 // pred_check_branch
    %434 = sbr.rel (0) target = $region29
  $region28: #{resnet_forward.18} parent=0 // pred_region
    _
  $region29: #{resnet_forward.18} parent=0 // pred_fallthru
    _
  // Predicated region
  $region30: #{resnet_forward.18} parent=0 // pred_check
    _
  $region31: #{resnet_forward.18} parent=0 // pred_check_branch
    %436 = sbr.rel (0) target = $region33
  $region32: #{resnet_forward.18} parent=0 // pred_region
    _
  $region33: #{resnet_forward.18} parent=0 // pred_fallthru
    _
  // Predicated region
  $region34: #{resnet_forward.18} parent=0 // pred_check
    _
  $region35: #{resnet_forward.18} parent=0 // pred_check_branch
    %438 = sbr.rel (0) target = $region37
  $region36: #{resnet_forward.18} parent=0 // pred_region
    _
  $region37: #{resnet_forward.18} parent=0 // pred_fallthru
    _
  // Predicated region
  $region38: #{resnet_forward.18} parent=0 // pred_check
    _
  $region39: #{resnet_forward.18} parent=0 // pred_check_branch
    %440 = sbr.rel (0) target = $region41
  $region40: #{resnet_forward.18} parent=0 // pred_region
    _
  $region41: #{resnet_forward.18} parent=0 // pred_fallthru
    _
  // Predicated region
  $region42: #{resnet_forward.18} parent=0 // pred_check
    _
  $region43: #{resnet_forward.18} parent=0 // pred_check_branch
    %442 = sbr.rel (0) target = $region45
  $region44: #{resnet_forward.18} parent=0 // pred_region
    _
  $region45: #{resnet_forward.18} parent=0 // pred_fallthru
    _
  // Predicated region
  $region46: #{resnet_forward.18} parent=0 // pred_check
    _
  $region47: #{resnet_forward.18} parent=0 // pred_check_branch
    %444 = sbr.rel (0) target = $region49
  $region48: #{resnet_forward.18} parent=0 // pred_region
    _
  $region49: #{resnet_forward.18} parent=0 // pred_fallthru
    _

// kernel: resnet_forward.29
$region0: #{resnet_forward.29}
  #allocation0 [shape = 'u32[]', space=smem, size = 0x4, offset = 0x4, fixed_abs, tag = 'smem constant byte address 0x4 - core index']
  #allocation1 [shape = 'u32[144,128]{1,0:T(1,128)}', space=vmem, size = 0x12000, scoped, tag = 'internal scratch']
  #allocation2 [shape = 'f32[3,1]{1,0:T(4,128)}', space=vmem, size = 0x800, scoped, tag = 'scratch operand']
  #allocation3 [shape = 'f32[3,1]{1,0:T(4,128)}', space=vmem, size = 0x800, scoped, tag = 'scratch operand']
  %s0 = inlined_call_operand.vmem [shape: bf16[288,128], index: 0, kind: input, shape index: {}]
  %s1 = inlined_call_operand.vmem [shape: bf16[3,288], index: 1, kind: input, shape index: {}]
  %s2 = inlined_call_operand.vmem [shape: f32[3,1], index: 2, kind: input, shape index: {}]
  %s3 = inlined_call_operand.vmem [shape: f32[3,1], index: 3, kind: input, shape index: {}]
  %s4 = inlined_call_operand.vmem [shape: f32[3,128], index: 4, kind: output, shape index: {0}]
  %s5 = inlined_call_operand.vmem [shape: f32[3,1], index: 5, kind: output, shape index: {1}]
  %s6 = inlined_call_operand.vmem [shape: f32[3,1], index: 6, kind: output, shape index: {2}]
  %7 = xla_tuple %s4, %s5, %s6
  %s8 = sld [smem:[#allocation0]]
  $region50: #{resnet_forward.29} parent=0
    _
  %s10 = ssub.s32 1, %s8
  %s11 = scalar_select 0, %s10, %s8
  // Predicated region
  $region2: #{resnet_forward.29} parent=0 // pred_check
    _
  $region3: #{resnet_forward.29} parent=0 // pred_check_branch
    %13 = sbr.rel (0) target = $region5
  $region4: #{resnet_forward.29} parent=0 // pred_region
    _
  $region5: #{resnet_forward.29} parent=0 // pred_fallthru
    _
  // Predicated region
  $region6: #{resnet_forward.29} parent=0 // pred_check
    _
  $region7: #{resnet_forward.29} parent=0 // pred_check_branch
    %15 = sbr.rel (0) target = $region9
  $region8: #{resnet_forward.29} parent=0 // pred_region
    _
  $region9: #{resnet_forward.29} parent=0 // pred_fallthru
    _
  // Predicated region
  $region10: #{resnet_forward.29} parent=0 // pred_check
    _
  $region11: #{resnet_forward.29} parent=0 // pred_check_branch
    %17 = sbr.rel (0) target = $region13
  $region12: #{resnet_forward.29} parent=0 // pred_region
    _
  $region13: #{resnet_forward.29} parent=0 // pred_fallthru
    _
  // Predicated region
  $region14: #{resnet_forward.29} parent=0 // pred_check
    _
  $region15: #{resnet_forward.29} parent=0 // pred_check_branch
    %19 = sbr.rel (0) target = $region17
  $region16: #{resnet_forward.29} parent=0 // pred_region
    _
  $region17: #{resnet_forward.29} parent=0 // pred_fallthru
    _
  %p21 = scmp.eq.s32.totalorder 0, 0
  // Predicated region
  $region18: #{resnet_forward.29} parent=0 // pred_check
    %p22 = pneg %p21
  $region19: #{resnet_forward.29} parent=0 // pred_check_branch
    %24 = sbr.rel (%p22) target = $region21
  $region20: #{resnet_forward.29} parent=0 // pred_region
    %vm25 = vcmask 2048
    %26 = vst.msk [vmem:[#allocation2] sm:$0x7] %vm25, 0.0
    %27 = vst.msk [vmem:[#allocation3] sm:$0x7] %vm25, 0.0
  $region21: #{resnet_forward.29} parent=0 // pred_fallthru
    _
  %v28 = vld [vmem:[%s1] sm:$0x3f]
  %v29 = vld [vmem:[%s0] sm:$0xf]
  %v30 = vld [vmem:[%s0 + $0x4] sm:$0xf]
  %v31 = vld [vmem:[%s0 + $0x8] sm:$0xf]
  %v32 = vld [vmem:[%s0 + $0xc] sm:$0xf]
  %v33 = vld [vmem:[%s0 + $0x10] sm:$0xf]
  %v34 = vld [vmem:[%s0 + $0x14] sm:$0xf]
  %v35 = vld [vmem:[%s0 + $0x18] sm:$0xf]
  %v36 = vld [vmem:[%s0 + $0x1c] sm:$0xf]
  %v37 = vld [vmem:[%s0 + $0x20] sm:$0xf]
  %v38 = vld [vmem:[%s0 + $0x24] sm:$0xf]
  %v39 = vld [vmem:[%s0 + $0x28] sm:$0xf]
  %v40 = vld [vmem:[%s0 + $0x2c] sm:$0xf]
  %v41 = vld [vmem:[%s0 + $0x30] sm:$0xf]
  %v42 = vld [vmem:[%s0 + $0x34] sm:$0xf]
  %v43 = vld [vmem:[%s0 + $0x38] sm:$0xf]
  %v44 = vld [vmem:[%s0 + $0x3c] sm:$0xf]
  %v45 = vld [vmem:[%s0 + $0x40] sm:$0xf]
  %v46 = vld [vmem:[%s0 + $0x44] sm:$0xf]
  %v47 = vld [vmem:[%s0 + $0x48] sm:$0xf]
  %v48 = vld [vmem:[%s0 + $0x4c] sm:$0xf]
  %v49 = vld [vmem:[%s0 + $0x50] sm:$0xf]
  %v50 = vld [vmem:[%s0 + $0x54] sm:$0xf]
  %v51 = vld [vmem:[%s0 + $0x58] sm:$0xf]
  %v52 = vld [vmem:[%s0 + $0x5c] sm:$0xf]
  %v53 = vld [vmem:[%s0 + $0x60] sm:$0xf]
  %v54 = vld [vmem:[%s0 + $0x64] sm:$0xf]
  %v55 = vld [vmem:[%s0 + $0x68] sm:$0xf]
  %v56 = vld [vmem:[%s0 + $0x6c] sm:$0xf]
  %v57 = vld [vmem:[%s0 + $0x70] sm:$0xf]
  %v58 = vld [vmem:[%s0 + $0x74] sm:$0xf]
  %v59 = vld [vmem:[%s0 + $0x78] sm:$0xf]
  %v60 = vld [vmem:[%s0 + $0x7c] sm:$0xf]
  %v61 = vld [vmem:[%s0 + $0x80] sm:$0xf]
  %v62 = vld [vmem:[%s0 + $0x84] sm:$0xf]
  %v63 = vld [vmem:[%s0 + $0x88] sm:$0xf]
  %v64 = vld [vmem:[%s0 + $0x8c] sm:$0xf]
  %v66 = vcombine.high %v28, %v28
  %v68 = vunpack.c.l.s4 1983009808
  %v69 = vunpack.c.0.s8 %v68
  %v70 = vlaneseq
  %v71 = vshrl.u32 %v70, 7
  %v72 = vsub.s32 %v69, %v71
  %v73 = vrot.slane %v28, %v72
  %v75 = vunpack.c.l.s4 1983009808
  %v76 = vunpack.c.0.s8 %v75
  %v77 = vlaneseq
  %v78 = vshrl.u32 %v77, 7
  %v79 = vsub.s32 %v76, %v78
  %v80 = vrot.slane %v66, %v79
  %v81 = vcombine.high %v73, %v73
  %v120 = vunpack.c.l.b16 %v29
  %v121 = vunpack.c.l.b16 %v30
  %v122 = vunpack.c.l.b16 %v31
  %v123 = vunpack.c.l.b16 %v32
  %v124 = vunpack.c.l.b16 %v33
  %v125 = vunpack.c.l.b16 %v34
  %v126 = vunpack.c.l.b16 %v35
  %v127 = vunpack.c.l.b16 %v36
  %v128 = vunpack.c.l.b16 %v37
  %v129 = vunpack.c.l.b16 %v38
  %v130 = vunpack.c.l.b16 %v39
  %v131 = vunpack.c.l.b16 %v40
  %v132 = vunpack.c.l.b16 %v41
  %v133 = vunpack.c.l.b16 %v42
  %v134 = vunpack.c.l.b16 %v43
  %v135 = vunpack.c.l.b16 %v44
  %v136 = vunpack.c.l.b16 %v45
  %v137 = vunpack.c.l.b16 %v46
  %v138 = vunpack.c.l.b16 %v47
  %v139 = vunpack.c.l.b16 %v48
  %v140 = vunpack.c.l.b16 %v49
  %v141 = vunpack.c.l.b16 %v50
  %v142 = vunpack.c.l.b16 %v51
  %v143 = vunpack.c.l.b16 %v52
  %v144 = vunpack.c.l.b16 %v53
  %v145 = vunpack.c.l.b16 %v54
  %v146 = vunpack.c.l.b16 %v55
  %v147 = vunpack.c.l.b16 %v56
  %v148 = vunpack.c.l.b16 %v57
  %v149 = vunpack.c.l.b16 %v58
  %v150 = vunpack.c.l.b16 %v59
  %v151 = vunpack.c.l.b16 %v60
  %v152 = vunpack.c.l.b16 %v61
  %v153 = vunpack.c.l.b16 %v62
  %v154 = vunpack.c.l.b16 %v63
  %v155 = vunpack.c.l.b16 %v64
  %v156 = vpack.c.b16 %v121, %v120
  %v157 = vpack.c.b16 %v123, %v122
  %v158 = vpack.c.b16 %v125, %v124
  %v159 = vpack.c.b16 %v127, %v126
  %v160 = vpack.c.b16 %v129, %v128
  %v161 = vpack.c.b16 %v131, %v130
  %v162 = vpack.c.b16 %v133, %v132
  %v163 = vpack.c.b16 %v135, %v134
  %v164 = vpack.c.b16 %v137, %v136
  %v165 = vpack.c.b16 %v139, %v138
  %v166 = vpack.c.b16 %v141, %v140
  %v167 = vpack.c.b16 %v143, %v142
  %v168 = vpack.c.b16 %v145, %v144
  %v169 = vpack.c.b16 %v147, %v146
  %v170 = vpack.c.b16 %v149, %v148
  %v171 = vpack.c.b16 %v151, %v150
  %v172 = vpack.c.b16 %v153, %v152
  %v173 = vpack.c.b16 %v155, %v154
  %vm192 = vcmask 261120
  %v194 = vsel %vm192, %v80, 0
  %196 = vmatprep.subr.bf16.mxu0 0
  %197 = vmatpush1.bf16.msra.mxu0 %v156
  %198 = vmatprep.subr.bf16.mxu0 0
  %199 = vmatpush1.bf16.msra.mxu0 %v157
  %200 = vmatprep.subr.bf16.mxu0 0
  %201 = vmatpush1.bf16.msra.mxu0 %v158
  %202 = vmatprep.subr.bf16.mxu0 0
  %203 = vmatpush1.bf16.msra.mxu0 %v159
  %204 = vmatprep.subr.bf16.mxu0 0
  %205 = vmatpush1.bf16.msra.mxu0 %v160
  %206 = vmatprep.subr.bf16.mxu0 0
  %207 = vmatpush1.bf16.msra.mxu0 %v161
  %208 = vmatprep.subr.bf16.mxu0 0
  %209 = vmatpush1.bf16.msra.mxu0 %v162
  %210 = vmatprep.subr.bf16.mxu0 0
  %211 = vmatpush1.bf16.msra.mxu0 %v163
  %212 = vmatprep.subr.bf16.mxu0 0
  %213 = vmatpush1.bf16.msra.mxu0 %v164
  %214 = vmatprep.subr.bf16.mxu0 0
  %215 = vmatpush1.bf16.msra.mxu0 %v165
  %216 = vmatprep.subr.bf16.mxu0 0
  %217 = vmatpush1.bf16.msra.mxu0 %v166
  %218 = vmatprep.subr.bf16.mxu0 0
  %219 = vmatpush1.bf16.msra.mxu0 %v167
  %220 = vmatprep.subr.bf16.mxu0 0
  %221 = vmatpush1.bf16.msra.mxu0 %v168
  %222 = vmatprep.subr.bf16.mxu0 0
  %223 = vmatpush1.bf16.msra.mxu0 %v169
  %224 = vmatprep.subr.bf16.mxu0 0
  %225 = vmatpush1.bf16.msra.mxu0 %v170
  %226 = vmatprep.subr.bf16.mxu0 0
  %227 = vmatpush1.bf16.msra.mxu0 %v171
  %228 = vmatprep.mubr.bf16.mxu0 %v81
  %229 = vmatmul.mubr.bf16.gmra.mrb[0].mxu0 %v73
  %v230 = vpop.f32.mrb[0].mxu0
  %v231 = vadd.f32 0.0, %v230
  %v232 = vpop.f32.mrb[0].mxu0
  %v233 = vpop.f32.mrb[0].mxu0
  %v234 = vpop.f32.mrb[0].mxu0
  %235 = vdwg.mxu0
  %236 = vmatprep.subr.bf16.mxu0 0
  %237 = vmatpush1.bf16.msra.mxu0 %v172
  %238 = vmatprep.subr.bf16.mxu0 0
  %239 = vmatpush1.bf16.msra.mxu0 %v173
  %240 = vmatprep.subr.bf16.mxu0 0
  %241 = vmatpush1.bf16.msra.mxu0 0
  %242 = vmatprep.subr.bf16.mxu0 0
  %243 = vmatpush1.bf16.msra.mxu0 0
  %244 = vmatprep.subr.bf16.mxu0 0
  %245 = vmatpush1.bf16.msra.mxu0 0
  %246 = vmatprep.subr.bf16.mxu0 0
  %247 = vmatpush1.bf16.msra.mxu0 0
  %248 = vmatprep.subr.bf16.mxu0 0
  %249 = vmatpush1.bf16.msra.mxu0 0
  %250 = vmatprep.subr.bf16.mxu0 0
  %251 = vmatpush1.bf16.msra.mxu0 0
  %252 = vmatprep.subr.bf16.mxu0 0
  %253 = vmatpush1.bf16.msra.mxu0 0
  %254 = vmatprep.subr.bf16.mxu0 0
  %255 = vmatpush1.bf16.msra.mxu0 0
  %256 = vmatprep.subr.bf16.mxu0 0
  %257 = vmatpush1.bf16.msra.mxu0 0
  %258 = vmatprep.subr.bf16.mxu0 0
  %259 = vmatpush1.bf16.msra.mxu0 0
  %260 = vmatprep.subr.bf16.mxu0 0
  %261 = vmatpush1.bf16.msra.mxu0 0
  %262 = vmatprep.subr.bf16.mxu0 0
  %263 = vmatpush1.bf16.msra.mxu0 0
  %264 = vmatprep.subr.bf16.mxu0 0
  %265 = vmatpush1.bf16.msra.mxu0 0
  %266 = vmatprep.subr.bf16.mxu0 0
  %267 = vmatpush1.bf16.msra.mxu0 0
  %268 = vmatprep.mubr.bf16.mxu0 0
  %269 = vmatmul.mubr.bf16.gmra.mrb[0].mxu0 %v194
  %v270 = vpop.f32.mrb[0].mxu0
  %v271 = vadd.f32 %v231, %v270
  %v272 = vpop.f32.mrb[0].mxu0
  %v273 = vpop.f32.mrb[0].mxu0
  %v274 = vpop.f32.mrb[0].mxu0
  %275 = vdwg.mxu0
  %276 = vst [vmem:[%s4] sm:$0x7] %v271
  %v277 = vld [vmem:[#allocation2] sm:$0x7]
  %vm278 = vcmask 1042432
  %v279 = vsel %vm278, %v271, 0.0
  %280 = vadd.xlane.f32.xlu0 %v279
  %v281 = vpop.xlane.xlu0 %280
  %v282 = vadd.f32 %v277, %v281
  %vm283 = vcmask 2048
  %284 = vst.msk [vmem:[#allocation2] sm:$0x7] %vm283, %v282
  %v285 = vld [vmem:[#allocation3] sm:$0x7]
  %v286 = vmul.f32 %v271, %v271
  %v287 = vsel %vm278, %v286, 0.0
  %288 = vadd.xlane.f32.xlu0 %v287
  %v289 = vpop.xlane.xlu0 %288
  %v290 = vadd.f32 %v285, %v289
  %291 = vst.msk [vmem:[#allocation3] sm:$0x7] %vm283, %v290
  // Predicated region
  $region22: #{resnet_forward.29} parent=0 // pred_check
    %p292 = pneg %p21
  $region23: #{resnet_forward.29} parent=0 // pred_check_branch
    %294 = sbr.rel (%p292) target = $region25
  $region24: #{resnet_forward.29} parent=0 // pred_region
    %v295 = vld [vmem:[#allocation2] sm:$0x7]
    %v296 = vmul.f32 %v295, 0.0078125
    %v297 = vld [vmem:[#allocation3] sm:$0x7]
    %v298 = vmul.f32 %v297, 0.0078125
    %v299 = vmul.f32 %v296, %v296
    %v300 = vsub.f32 %v298, %v299
    %v301 = vadd.f32 %v300, 1e-05
    %v302 = vrsqrt.pop %v301
    %v303 = vld [vmem:[%s2] sm:$0x7]
    %v304 = vmul.f32 %v303, %v302
    %305 = vst.msk [vmem:[%s5] sm:$0x7] %vm283, %v304
    %v306 = vld [vmem:[%s3] sm:$0x7]
    %v307 = vmul.f32 %v296, %v304
    %v308 = vsub.f32 %v306, %v307
    %309 = vst.msk [vmem:[%s6] sm:$0x7] %vm283, %v308
  $region25: #{resnet_forward.29} parent=0 // pred_fallthru
    _
  // Predicated region
  $region26: #{resnet_forward.29} parent=0 // pred_check
    _
  $region27: #{resnet_forward.29} parent=0 // pred_check_branch
    %311 = sbr.rel (0) target = $region29
  $region28: #{resnet_forward.29} parent=0 // pred_region
    _
  $region29: #{resnet_forward.29} parent=0 // pred_fallthru
    _
  // Predicated region
  $region30: #{resnet_forward.29} parent=0 // pred_check
    _
  $region31: #{resnet_forward.29} parent=0 // pred_check_branch
    %313 = sbr.rel (0) target = $region33
  $region32: #{resnet_forward.29} parent=0 // pred_region
    _
  $region33: #{resnet_forward.29} parent=0 // pred_fallthru
    _
  // Predicated region
  $region34: #{resnet_forward.29} parent=0 // pred_check
    _
  $region35: #{resnet_forward.29} parent=0 // pred_check_branch
    %315 = sbr.rel (0) target = $region37
  $region36: #{resnet_forward.29} parent=0 // pred_region
    _
  $region37: #{resnet_forward.29} parent=0 // pred_fallthru
    _
  // Predicated region
  $region38: #{resnet_forward.29} parent=0 // pred_check
    _
  $region39: #{resnet_forward.29} parent=0 // pred_check_branch
    %317 = sbr.rel (0) target = $region41
  $region40: #{resnet_forward.29} parent=0 // pred_region
    _
  $region41: #{resnet_forward.29} parent=0 // pred_fallthru
    _
  // Predicated region
  $region42: #{resnet_forward.29} parent=0 // pred_check
    _
  $region43: #{resnet_forward.29} parent=0 // pred_check_branch
    %319 = sbr.rel (0) target = $region45
  $region44: #{resnet_forward.29} parent=0 // pred_region
    _
  $region45: #{resnet_forward.29} parent=0 // pred_fallthru
    _
  // Predicated region
  $region46: #{resnet_forward.29} parent=0 // pred_check
    _
  $region47: #{resnet_forward.29} parent=0 // pred_check_branch
    %321 = sbr.rel (0) target = $region49
  $region48: #{resnet_forward.29} parent=0 // pred_region
    _
  $region49: #{resnet_forward.29} parent=0 // pred_fallthru
    _

// kernel: resnet_forward.31
$region0: #{resnet_forward.31}
  #allocation0 [shape = 'u32[]', space=smem, size = 0x4, offset = 0x4, fixed_abs, tag = 'smem constant byte address 0x4 - core index']
  #allocation1 [shape = 'u32[144,128]{1,0:T(1,128)}', space=vmem, size = 0x12000, scoped, tag = 'internal scratch']
  #allocation2 [shape = 'f32[1,1]{1,0:T(1,128)S(1)}', space=vmem, size = 0x200, scoped, tag = 'scoped memory for resnet_forward.31']
  %s0 = inlined_call_operand.vmem [shape: bf16[2,192], index: 0, kind: input, shape index: {}]
  %s1 = inlined_call_operand.vmem [shape: bf16[192,1], index: 1, kind: input, shape index: {}]
  %s2 = inlined_call_operand.<no memory space> [shape: f32[1,1], index: 2, kind: input, shape index: {}]
  %s3 = inlined_call_operand.vmem [shape: f32[2,1], index: 3, kind: output, shape index: {}]
  %s4 = sld [smem:[#allocation0]]
  $region22: #{resnet_forward.31} parent=0
    _
  %s6 = ssub.s32 1, %s4
  %s7 = scalar_select 0, %s6, %s4
  %v8 = vstv %s2
  %9 = vst [vmem:[#allocation2] sm:$0x1] %v8
  // Predicated region
  $region2: #{resnet_forward.31} parent=0 // pred_check
    _
  $region3: #{resnet_forward.31} parent=0 // pred_check_branch
    %11 = sbr.rel (0) target = $region5
  $region4: #{resnet_forward.31} parent=0 // pred_region
    _
  $region5: #{resnet_forward.31} parent=0 // pred_fallthru
    _
  // Predicated region
  $region6: #{resnet_forward.31} parent=0 // pred_check
    _
  $region7: #{resnet_forward.31} parent=0 // pred_check_branch
    %13 = sbr.rel (0) target = $region9
  $region8: #{resnet_forward.31} parent=0 // pred_region
    _
  $region9: #{resnet_forward.31} parent=0 // pred_fallthru
    _
  // Predicated region
  $region10: #{resnet_forward.31} parent=0 // pred_check
    _
  $region11: #{resnet_forward.31} parent=0 // pred_check_branch
    %15 = sbr.rel (0) target = $region13
  $region12: #{resnet_forward.31} parent=0 // pred_region
    _
  $region13: #{resnet_forward.31} parent=0 // pred_fallthru
    _
  %v17 = vld [vmem:[%s0] sm:$0x3]
  %v18 = vld [vmem:[%s1] sm:$0xf]
  %v19 = vld [vmem:[%s1 + $0x4] sm:$0xf]
  %v20 = vld [vmem:[%s1 + $0x8] sm:$0xf]
  %v21 = vld [vmem:[%s1 + $0xc] sm:$0xf]
  %v22 = vld [vmem:[%s1 + $0x10] sm:$0xf]
  %v23 = vld [vmem:[%s1 + $0x14] sm:$0xf]
  %v24 = vld [vmem:[%s1 + $0x18] sm:$0xf]
  %v25 = vld [vmem:[%s1 + $0x1c] sm:$0xf]
  %v26 = vld [vmem:[%s1 + $0x20] sm:$0xf]
  %v27 = vld [vmem:[%s1 + $0x24] sm:$0xf]
  %v28 = vld [vmem:[%s1 + $0x28] sm:$0xf]
  %v29 = vld [vmem:[%s1 + $0x2c] sm:$0xf]
  %v30 = vld [vmem:[%s1 + $0x30] sm:$0xf]
  %v31 = vld [vmem:[%s1 + $0x34] sm:$0xf]
  %v32 = vld [vmem:[%s1 + $0x38] sm:$0xf]
  %v33 = vld [vmem:[%s1 + $0x3c] sm:$0xf]
  %v34 = vld [vmem:[%s1 + $0x40] sm:$0xf]
  %v35 = vld [vmem:[%s1 + $0x44] sm:$0xf]
  %v36 = vld [vmem:[%s1 + $0x48] sm:$0xf]
  %v37 = vld [vmem:[%s1 + $0x4c] sm:$0xf]
  %v38 = vld [vmem:[%s1 + $0x50] sm:$0xf]
  %v39 = vld [vmem:[%s1 + $0x54] sm:$0xf]
  %v40 = vld [vmem:[%s1 + $0x58] sm:$0xf]
  %v41 = vld [vmem:[%s1 + $0x5c] sm:$0xf]
  %v42 = vld [vmem:[#allocation2] sm:$0x1]
  %v44 = vlaneseq
  %v45 = vshrl.u32 %v44, 7
  %v46 = vsub.s32 0, %v45
  %v47 = vrot.slane %v42, %v46
  %v51 = vunpack.c.l.s4 1966171168
  %v52 = vunpack.c.0.s8 %v51
  %v53 = vlaneseq
  %v54 = vshrl.u32 %v53, 7
  %v55 = vsub.s32 %v52, %v54
  %v56 = vrot.slane %v17, %v55
  %v57 = vcombine.high %v56, %v56
  %v59 = vunpack.c.l.s4 1966171168
  %v60 = vunpack.c.0.s8 %v59
  %v61 = vlaneseq
  %v62 = vshrl.u32 %v61, 7
  %v63 = vsub.s32 %v60, %v62
  %v64 = vrot.slane %v56, %v63
  %v66 = vunpack.c.l.s4 1966171168
  %v67 = vunpack.c.0.s8 %v66
  %v68 = vlaneseq
  %v69 = vshrl.u32 %v68, 7
  %v70 = vsub.s32 %v67, %v69
  %v71 = vrot.slane %v57, %v70
  %v97 = vunpack.c.l.b16 %v18
  %v98 = vunpack.c.l.b16 %v19
  %v99 = vunpack.c.l.b16 %v20
  %v100 = vunpack.c.l.b16 %v21
  %v101 = vunpack.c.l.b16 %v22
  %v102 = vunpack.c.l.b16 %v23
  %v103 = vunpack.c.l.b16 %v24
  %v104 = vunpack.c.l.b16 %v25
  %v105 = vunpack.c.l.b16 %v26
  %v106 = vunpack.c.l.b16 %v27
  %v107 = vunpack.c.l.b16 %v28
  %v108 = vunpack.c.l.b16 %v29
  %v109 = vunpack.c.l.b16 %v30
  %v110 = vunpack.c.l.b16 %v31
  %v111 = vunpack.c.l.b16 %v32
  %v112 = vunpack.c.l.b16 %v33
  %v113 = vunpack.c.l.b16 %v34
  %v114 = vunpack.c.l.b16 %v35
  %v115 = vunpack.c.l.b16 %v36
  %v116 = vunpack.c.l.b16 %v37
  %v117 = vunpack.c.l.b16 %v38
  %v118 = vunpack.c.l.b16 %v39
  %v119 = vunpack.c.l.b16 %v40
  %v120 = vunpack.c.l.b16 %v41
  %v121 = vpack.c.b16 %v98, %v97
  %v122 = vpack.c.b16 %v100, %v99
  %v123 = vpack.c.b16 %v102, %v101
  %v124 = vpack.c.b16 %v104, %v103
  %v125 = vpack.c.b16 %v106, %v105
  %v126 = vpack.c.b16 %v108, %v107
  %v127 = vpack.c.b16 %v110, %v109
  %v128 = vpack.c.b16 %v112, %v111
  %v129 = vpack.c.b16 %v114, %v113
  %v130 = vpack.c.b16 %v116, %v115
  %v131 = vpack.c.b16 %v118, %v117
  %v132 = vpack.c.b16 %v120, %v119
  %vm145 = vcmask 523264
  %v147 = vsel %vm145, %v71, 0
  %149 = vmatprep.subr.bf16.mxu0 0
  %150 = vmatpush1.bf16.msra.mxu0 %v121
  %151 = vmatprep.subr.bf16.mxu0 0
  %152 = vmatpush1.bf16.msra.mxu0 %v122
  %153 = vmatprep.subr.bf16.mxu0 0
  %154 = vmatpush1.bf16.msra.mxu0 %v123
  %155 = vmatprep.subr.bf16.mxu0 0
  %156 = vmatpush1.bf16.msra.mxu0 %v124
  %157 = vmatprep.subr.bf16.mxu0 0
  %158 = vmatpush1.bf16.msra.mxu0 %v125
  %159 = vmatprep.subr.bf16.mxu0 0
  %160 = vmatpush1.bf16.msra.mxu0 %v126
  %161 = vmatprep.subr.bf16.mxu0 0
  %162 = vmatpush1.bf16.msra.mxu0 %v127
  %163 = vmatprep.subr.bf16.mxu0 0
  %164 = vmatpush1.bf16.msra.mxu0 %v128
  %165 = vmatprep.subr.bf16.mxu0 0
  %166 = vmatpush1.bf16.msra.mxu0 %v129
  %167 = vmatprep.subr.bf16.mxu0 0
  %168 = vmatpush1.bf16.msra.mxu0 %v130
  %169 = vmatprep.subr.bf16.mxu0 0
  %170 = vmatpush1.bf16.msra.mxu0 %v131
  %171 = vmatprep.subr.bf16.mxu0 0
  %172 = vmatpush1.bf16.msra.mxu0 %v132
  %173 = vmatprep.subr.bf16.mxu0 0
  %174 = vmatpush1.bf16.msra.mxu0 0
  %175 = vmatprep.subr.bf16.mxu0 0
  %176 = vmatpush1.bf16.msra.mxu0 0
  %177 = vmatprep.subr.bf16.mxu0 0
  %178 = vmatpush1.bf16.msra.mxu0 0
  %179 = vmatprep.subr.bf16.mxu0 0
  %180 = vmatpush1.bf16.msra.mxu0 0
  %181 = vmatprep.mubr.bf16.mxu0 %v147
  %182 = vmatmul.mubr.bf16.gmra.mrb[0].mxu0 %v64
  %v183 = vpop.f32.mrb[0].mxu0
  %v184 = vadd.f32 %v47, %v183
  %v185 = vpop.f32.mrb[0].mxu0
  %v186 = vpop.f32.mrb[0].mxu0
  %v187 = vpop.f32.mrb[0].mxu0
  %188 = vdwg.mxu0
  %v189 = vtanh.pop %v184
  %vm190 = vcmask 1024
  %191 = vst.msk [vmem:[%s3] sm:$0x3] %vm190, %v189
  // Predicated region
  $region14: #{resnet_forward.31} parent=0 // pred_check
    _
  $region15: #{resnet_forward.31} parent=0 // pred_check_branch
    %193 = sbr.rel (0) target = $region17
  $region16: #{resnet_forward.31} parent=0 // pred_region
    _
  $region17: #{resnet_forward.31} parent=0 // pred_fallthru
    _
  // Predicated region
  $region18: #{resnet_forward.31} parent=0 // pred_check
    _
  $region19: #{resnet_forward.31} parent=0 // pred_check_branch
    %195 = sbr.rel (0) target = $region21
  $region20: #{resnet_forward.31} parent=0 // pred_region
    _
  $region21: #{resnet_forward.31} parent=0 // pred_fallthru
    _

// kernel: resnet_forward.28
$region0: #{resnet_forward.28}
  #allocation0 [shape = 'u32[]', space=smem, size = 0x4, offset = 0x4, fixed_abs, tag = 'smem constant byte address 0x4 - core index']
  #allocation1 [shape = 'u32[144,128]{1,0:T(1,128)}', space=vmem, size = 0x12000, scoped, tag = 'internal scratch']
  %s0 = inlined_call_operand.vmem [shape: bf16[2,2048], index: 0, kind: input, shape index: {}]
  %s1 = inlined_call_operand.vmem [shape: bf16[2048,64], index: 1, kind: input, shape index: {}]
  %s2 = inlined_call_operand.vmem [shape: f32[1,64], index: 2, kind: input, shape index: {}]
  %s3 = inlined_call_operand.hbm [shape: f32[2,64], index: 3, kind: output, shape index: {}]
  %s4 = sld [smem:[#allocation0]]
  $region22: #{resnet_forward.28} parent=0
    _
  %s6 = ssub.s32 1, %s4
  %s7 = scalar_select 0, %s6, %s4
  $region1: #{resnet_forward.28} parent=0
    #allocation2 [shape = 'u8[1024]{0}', space=vmem, size = 0x400, scoped, tag = 'output window, operand 0, single buffered']
    #allocation3 [shape = 's32[1]{0}', space=sflag, size = 0x4, scoped, tag = 'scoped memory for resnet_forward.28']
    %8 = vsyncpa [#allocation3], 0
    // Predicated region
    $region2: #{resnet_forward.28} parent=1 // pred_check
      _
    $region3: #{resnet_forward.28} parent=1 // pred_check_branch
      %10 = sbr.rel (0) target = $region5
    $region4: #{resnet_forward.28} parent=1 // pred_region
      _
    $region5: #{resnet_forward.28} parent=1 // pred_fallthru
      _
    // Predicated region
    $region6: #{resnet_forward.28} parent=1 // pred_check
      _
    $region7: #{resnet_forward.28} parent=1 // pred_check_branch
      %12 = sbr.rel (0) target = $region9
    $region8: #{resnet_forward.28} parent=1 // pred_region
      _
    $region9: #{resnet_forward.28} parent=1 // pred_fallthru
      _
    // Predicated region
    $region10: #{resnet_forward.28} parent=1 // pred_check
      _
    $region11: #{resnet_forward.28} parent=1 // pred_check_branch
      %14 = sbr.rel (0) target = $region13
    $region12: #{resnet_forward.28} parent=1 // pred_region
      _
    $region13: #{resnet_forward.28} parent=1 // pred_fallthru
      _
    %v16 = vld [vmem:[%s0] sm:$0xff]
    %v17 = vld [vmem:[%s0 + $0x8] sm:$0xff]
    %v18 = vld [vmem:[%s1] sm:$0xf]
    %v19 = vld [vmem:[%s1 + $0x4] sm:$0xf]
    %v20 = vld [vmem:[%s1 + $0x8] sm:$0xf]
    %v21 = vld [vmem:[%s1 + $0xc] sm:$0xf]
    %v22 = vld [vmem:[%s1 + $0x10] sm:$0xf]
    %v23 = vld [vmem:[%s1 + $0x14] sm:$0xf]
    %v24 = vld [vmem:[%s1 + $0x18] sm:$0xf]
    %v25 = vld [vmem:[%s1 + $0x1c] sm:$0xf]
    %v26 = vld [vmem:[%s1 + $0x20] sm:$0xf]
    %v27 = vld [vmem:[%s1 + $0x24] sm:$0xf]
    %v28 = vld [vmem:[%s1 + $0x28] sm:$0xf]
    %v29 = vld [vmem:[%s1 + $0x2c] sm:$0xf]
    %v30 = vld [vmem:[%s1 + $0x30] sm:$0xf]
    %v31 = vld [vmem:[%s1 + $0x34] sm:$0xf]
    %v32 = vld [vmem:[%s1 + $0x38] sm:$0xf]
    %v33 = vld [vmem:[%s1 + $0x3c] sm:$0xf]
    %v34 = vld [vmem:[%s1 + $0x40] sm:$0xf]
    %v35 = vld [vmem:[%s1 + $0x44] sm:$0xf]
    %v36 = vld [vmem:[%s1 + $0x48] sm:$0xf]
    %v37 = vld [vmem:[%s1 + $0x4c] sm:$0xf]
    %v38 = vld [vmem:[%s1 + $0x50] sm:$0xf]
    %v39 = vld [vmem:[%s1 + $0x54] sm:$0xf]
    %v40 = vld [vmem:[%s1 + $0x58] sm:$0xf]
    %v41 = vld [vmem:[%s1 + $0x5c] sm:$0xf]
    %v42 = vld [vmem:[%s1 + $0x60] sm:$0xf]
    %v43 = vld [vmem:[%s1 + $0x64] sm:$0xf]
    %v44 = vld [vmem:[%s1 + $0x68] sm:$0xf]
    %v45 = vld [vmem:[%s1 + $0x6c] sm:$0xf]
    %v46 = vld [vmem:[%s1 + $0x70] sm:$0xf]
    %v47 = vld [vmem:[%s1 + $0x74] sm:$0xf]
    %v48 = vld [vmem:[%s1 + $0x78] sm:$0xf]
    %v49 = vld [vmem:[%s1 + $0x7c] sm:$0xf]
    %v50 = vld [vmem:[%s1 + $0x80] sm:$0xf]
    %v51 = vld [vmem:[%s1 + $0x84] sm:$0xf]
    %v52 = vld [vmem:[%s1 + $0x88] sm:$0xf]
    %v53 = vld [vmem:[%s1 + $0x8c] sm:$0xf]
    %v54 = vld [vmem:[%s1 + $0x90] sm:$0xf]
    %v55 = vld [vmem:[%s1 + $0x94] sm:$0xf]
    %v56 = vld [vmem:[%s1 + $0x98] sm:$0xf]
    %v57 = vld [vmem:[%s1 + $0x9c] sm:$0xf]
    %v58 = vld [vmem:[%s1 + $0xa0] sm:$0xf]
    %v59 = vld [vmem:[%s1 + $0xa4] sm:$0xf]
    %v60 = vld [vmem:[%s1 + $0xa8] sm:$0xf]
    %v61 = vld [vmem:[%s1 + $0xac] sm:$0xf]
    %v62 = vld [vmem:[%s1 + $0xb0] sm:$0xf]
    %v63 = vld [vmem:[%s1 + $0xb4] sm:$0xf]
    %v64 = vld [vmem:[%s1 + $0xb8] sm:$0xf]
    %v65 = vld [vmem:[%s1 + $0xbc] sm:$0xf]
    %v66 = vld [vmem:[%s1 + $0xc0] sm:$0xf]
    %v67 = vld [vmem:[%s1 + $0xc4] sm:$0xf]
    %v68 = vld [vmem:[%s1 + $0xc8] sm:$0xf]
    %v69 = vld [vmem:[%s1 + $0xcc] sm:$0xf]
    %v70 = vld [vmem:[%s1 + $0xd0] sm:$0xf]
    %v71 = vld [vmem:[%s1 + $0xd4] sm:$0xf]
    %v72 = vld [vmem:[%s1 + $0xd8] sm:$0xf]
    %v73 = vld [vmem:[%s1 + $0xdc] sm:$0xf]
    %v74 = vld [vmem:[%s1 + $0xe0] sm:$0xf]
    %v75 = vld [vmem:[%s1 + $0xe4] sm:$0xf]
    %v76 = vld [vmem:[%s1 + $0xe8] sm:$0xf]
    %v77 = vld [vmem:[%s1 + $0xec] sm:$0xf]
    %v78 = vld [vmem:[%s1 + $0xf0] sm:$0xf]
    %v79 = vld [vmem:[%s1 + $0xf4] sm:$0xf]
    %v80 = vld [vmem:[%s1 + $0xf8] sm:$0xf]
    %v81 = vld [vmem:[%s1 + $0xfc] sm:$0xf]
    %v82 = vld [vmem:[%s1 + $0x100] sm:$0xf]
    %v83 = vld [vmem:[%s1 + $0x104] sm:$0xf]
    %v84 = vld [vmem:[%s1 + $0x108] sm:$0xf]
    %v85 = vld [vmem:[%s1 + $0x10c] sm:$0xf]
    %v86 = vld [vmem:[%s1 + $0x110] sm:$0xf]
    %v87 = vld [vmem:[%s1 + $0x114] sm:$0xf]
    %v88 = vld [vmem:[%s1 + $0x118] sm:$0xf]
    %v89 = vld [vmem:[%s1 + $0x11c] sm:$0xf]
    %v90 = vld [vmem:[%s1 + $0x120] sm:$0xf]
    %v91 = vld [vmem:[%s1 + $0x124] sm:$0xf]
    %v92 = vld [vmem:[%s1 + $0x128] sm:$0xf]
    %v93 = vld [vmem:[%s1 + $0x12c] sm:$0xf]
    %v94 = vld [vmem:[%s1 + $0x130] sm:$0xf]
    %v95 = vld [vmem:[%s1 + $0x134] sm:$0xf]
    %v96 = vld [vmem:[%s1 + $0x138] sm:$0xf]
    %v97 = vld [vmem:[%s1 + $0x13c] sm:$0xf]
    %v98 = vld [vmem:[%s1 + $0x140] sm:$0xf]
    %v99 = vld [vmem:[%s1 + $0x144] sm:$0xf]
    %v100 = vld [vmem:[%s1 + $0x148] sm:$0xf]
    %v101 = vld [vmem:[%s1 + $0x14c] sm:$0xf]
    %v102 = vld [vmem:[%s1 + $0x150] sm:$0xf]
    %v103 = vld [vmem:[%s1 + $0x154] sm:$0xf]
    %v104 = vld [vmem:[%s1 + $0x158] sm:$0xf]
    %v105 = vld [vmem:[%s1 + $0x15c] sm:$0xf]
    %v106 = vld [vmem:[%s1 + $0x160] sm:$0xf]
    %v107 = vld [vmem:[%s1 + $0x164] sm:$0xf]
    %v108 = vld [vmem:[%s1 + $0x168] sm:$0xf]
    %v109 = vld [vmem:[%s1 + $0x16c] sm:$0xf]
    %v110 = vld [vmem:[%s1 + $0x170] sm:$0xf]
    %v111 = vld [vmem:[%s1 + $0x174] sm:$0xf]
    %v112 = vld [vmem:[%s1 + $0x178] sm:$0xf]
    %v113 = vld [vmem:[%s1 + $0x17c] sm:$0xf]
    %v114 = vld [vmem:[%s1 + $0x180] sm:$0xf]
    %v115 = vld [vmem:[%s1 + $0x184] sm:$0xf]
    %v116 = vld [vmem:[%s1 + $0x188] sm:$0xf]
    %v117 = vld [vmem:[%s1 + $0x18c] sm:$0xf]
    %v118 = vld [vmem:[%s1 + $0x190] sm:$0xf]
    %v119 = vld [vmem:[%s1 + $0x194] sm:$0xf]
    %v120 = vld [vmem:[%s1 + $0x198] sm:$0xf]
    %v121 = vld [vmem:[%s1 + $0x19c] sm:$0xf]
    %v122 = vld [vmem:[%s1 + $0x1a0] sm:$0xf]
    %v123 = vld [vmem:[%s1 + $0x1a4] sm:$0xf]
    %v124 = vld [vmem:[%s1 + $0x1a8] sm:$0xf]
    %v125 = vld [vmem:[%s1 + $0x1ac] sm:$0xf]
    %v126 = vld [vmem:[%s1 + $0x1b0] sm:$0xf]
    %v127 = vld [vmem:[%s1 + $0x1b4] sm:$0xf]
    %v128 = vld [vmem:[%s1 + $0x1b8] sm:$0xf]
    %v129 = vld [vmem:[%s1 + $0x1bc] sm:$0xf]
    %v130 = vld [vmem:[%s1 + $0x1c0] sm:$0xf]
    %v131 = vld [vmem:[%s1 + $0x1c4] sm:$0xf]
    %v132 = vld [vmem:[%s1 + $0x1c8] sm:$0xf]
    %v133 = vld [vmem:[%s1 + $0x1cc] sm:$0xf]
    %v134 = vld [vmem:[%s1 + $0x1d0] sm:$0xf]
    %v135 = vld [vmem:[%s1 + $0x1d4] sm:$0xf]
    %v136 = vld [vmem:[%s1 + $0x1d8] sm:$0xf]
    %v137 = vld [vmem:[%s1 + $0x1dc] sm:$0xf]
    %v138 = vld [vmem:[%s1 + $0x1e0] sm:$0xf]
    %v139 = vld [vmem:[%s1 + $0x1e4] sm:$0xf]
    %v140 = vld [vmem:[%s1 + $0x1e8] sm:$0xf]
    %v141 = vld [vmem:[%s1 + $0x1ec] sm:$0xf]
    %v142 = vld [vmem:[%s1 + $0x1f0] sm:$0xf]
    %v143 = vld [vmem:[%s1 + $0x1f4] sm:$0xf]
    %v144 = vld [vmem:[%s1 + $0x1f8] sm:$0xf]
    %v145 = vld [vmem:[%s1 + $0x1fc] sm:$0xf]
    %v146 = vld [vmem:[%s1 + $0x200] sm:$0xf]
    %v147 = vld [vmem:[%s1 + $0x204] sm:$0xf]
    %v148 = vld [vmem:[%s1 + $0x208] sm:$0xf]
    %v149 = vld [vmem:[%s1 + $0x20c] sm:$0xf]
    %v150 = vld [vmem:[%s1 + $0x210] sm:$0xf]
    %v151 = vld [vmem:[%s1 + $0x214] sm:$0xf]
    %v152 = vld [vmem:[%s1 + $0x218] sm:$0xf]
    %v153 = vld [vmem:[%s1 + $0x21c] sm:$0xf]
    %v154 = vld [vmem:[%s1 + $0x220] sm:$0xf]
    %v155 = vld [vmem:[%s1 + $0x224] sm:$0xf]
    %v156 = vld [vmem:[%s1 + $0x228] sm:$0xf]
    %v157 = vld [vmem:[%s1 + $0x22c] sm:$0xf]
    %v158 = vld [vmem:[%s1 + $0x230] sm:$0xf]
    %v159 = vld [vmem:[%s1 + $0x234] sm:$0xf]
    %v160 = vld [vmem:[%s1 + $0x238] sm:$0xf]
    %v161 = vld [vmem:[%s1 + $0x23c] sm:$0xf]
    %v162 = vld [vmem:[%s1 + $0x240] sm:$0xf]
    %v163 = vld [vmem:[%s1 + $0x244] sm:$0xf]
    %v164 = vld [vmem:[%s1 + $0x248] sm:$0xf]
    %v165 = vld [vmem:[%s1 + $0x24c] sm:$0xf]
    %v166 = vld [vmem:[%s1 + $0x250] sm:$0xf]
    %v167 = vld [vmem:[%s1 + $0x254] sm:$0xf]
    %v168 = vld [vmem:[%s1 + $0x258] sm:$0xf]
    %v169 = vld [vmem:[%s1 + $0x25c] sm:$0xf]
    %v170 = vld [vmem:[%s1 + $0x260] sm:$0xf]
    %v171 = vld [vmem:[%s1 + $0x264] sm:$0xf]
    %v172 = vld [vmem:[%s1 + $0x268] sm:$0xf]
    %v173 = vld [vmem:[%s1 + $0x26c] sm:$0xf]
    %v174 = vld [vmem:[%s1 + $0x270] sm:$0xf]
    %v175 = vld [vmem:[%s1 + $0x274] sm:$0xf]
    %v176 = vld [vmem:[%s1 + $0x278] sm:$0xf]
    %v177 = vld [vmem:[%s1 + $0x27c] sm:$0xf]
    %v178 = vld [vmem:[%s1 + $0x280] sm:$0xf]
    %v179 = vld [vmem:[%s1 + $0x284] sm:$0xf]
    %v180 = vld [vmem:[%s1 + $0x288] sm:$0xf]
    %v181 = vld [vmem:[%s1 + $0x28c] sm:$0xf]
    %v182 = vld [vmem:[%s1 + $0x290] sm:$0xf]
    %v183 = vld [vmem:[%s1 + $0x294] sm:$0xf]
    %v184 = vld [vmem:[%s1 + $0x298] sm:$0xf]
    %v185 = vld [vmem:[%s1 + $0x29c] sm:$0xf]
    %v186 = vld [vmem:[%s1 + $0x2a0] sm:$0xf]
    %v187 = vld [vmem:[%s1 + $0x2a4] sm:$0xf]
    %v188 = vld [vmem:[%s1 + $0x2a8] sm:$0xf]
    %v189 = vld [vmem:[%s1 + $0x2ac] sm:$0xf]
    %v190 = vld [vmem:[%s1 + $0x2b0] sm:$0xf]
    %v191 = vld [vmem:[%s1 + $0x2b4] sm:$0xf]
    %v192 = vld [vmem:[%s1 + $0x2b8] sm:$0xf]
    %v193 = vld [vmem:[%s1 + $0x2bc] sm:$0xf]
    %v194 = vld [vmem:[%s1 + $0x2c0] sm:$0xf]
    %v195 = vld [vmem:[%s1 + $0x2c4] sm:$0xf]
    %v196 = vld [vmem:[%s1 + $0x2c8] sm:$0xf]
    %v197 = vld [vmem:[%s1 + $0x2cc] sm:$0xf]
    %v198 = vld [vmem:[%s1 + $0x2d0] sm:$0xf]
    %v199 = vld [vmem:[%s1 + $0x2d4] sm:$0xf]
    %v200 = vld [vmem:[%s1 + $0x2d8] sm:$0xf]
    %v201 = vld [vmem:[%s1 + $0x2dc] sm:$0xf]
    %v202 = vld [vmem:[%s1 + $0x2e0] sm:$0xf]
    %v203 = vld [vmem:[%s1 + $0x2e4] sm:$0xf]
    %v204 = vld [vmem:[%s1 + $0x2e8] sm:$0xf]
    %v205 = vld [vmem:[%s1 + $0x2ec] sm:$0xf]
    %v206 = vld [vmem:[%s1 + $0x2f0] sm:$0xf]
    %v207 = vld [vmem:[%s1 + $0x2f4] sm:$0xf]
    %v208 = vld [vmem:[%s1 + $0x2f8] sm:$0xf]
    %v209 = vld [vmem:[%s1 + $0x2fc] sm:$0xf]
    %v210 = vld [vmem:[%s1 + $0x300] sm:$0xf]
    %v211 = vld [vmem:[%s1 + $0x304] sm:$0xf]
    %v212 = vld [vmem:[%s1 + $0x308] sm:$0xf]
    %v213 = vld [vmem:[%s1 + $0x30c] sm:$0xf]
    %v214 = vld [vmem:[%s1 + $0x310] sm:$0xf]
    %v215 = vld [vmem:[%s1 + $0x314] sm:$0xf]
    %v216 = vld [vmem:[%s1 + $0x318] sm:$0xf]
    %v217 = vld [vmem:[%s1 + $0x31c] sm:$0xf]
    %v218 = vld [vmem:[%s1 + $0x320] sm:$0xf]
    %v219 = vld [vmem:[%s1 + $0x324] sm:$0xf]
    %v220 = vld [vmem:[%s1 + $0x328] sm:$0xf]
    %v221 = vld [vmem:[%s1 + $0x32c] sm:$0xf]
    %v222 = vld [vmem:[%s1 + $0x330] sm:$0xf]
    %v223 = vld [vmem:[%s1 + $0x334] sm:$0xf]
    %v224 = vld [vmem:[%s1 + $0x338] sm:$0xf]
    %v225 = vld [vmem:[%s1 + $0x33c] sm:$0xf]
    %v226 = vld [vmem:[%s1 + $0x340] sm:$0xf]
    %v227 = vld [vmem:[%s1 + $0x344] sm:$0xf]
    %v228 = vld [vmem:[%s1 + $0x348] sm:$0xf]
    %v229 = vld [vmem:[%s1 + $0x34c] sm:$0xf]
    %v230 = vld [vmem:[%s1 + $0x350] sm:$0xf]
    %v231 = vld [vmem:[%s1 + $0x354] sm:$0xf]
    %v232 = vld [vmem:[%s1 + $0x358] sm:$0xf]
    %v233 = vld [vmem:[%s1 + $0x35c] sm:$0xf]
    %v234 = vld [vmem:[%s1 + $0x360] sm:$0xf]
    %v235 = vld [vmem:[%s1 + $0x364] sm:$0xf]
    %v236 = vld [vmem:[%s1 + $0x368] sm:$0xf]
    %v237 = vld [vmem:[%s1 + $0x36c] sm:$0xf]
    %v238 = vld [vmem:[%s1 + $0x370] sm:$0xf]
    %v239 = vld [vmem:[%s1 + $0x374] sm:$0xf]
    %v240 = vld [vmem:[%s1 + $0x378] sm:$0xf]
    %v241 = vld [vmem:[%s1 + $0x37c] sm:$0xf]
    %v242 = vld [vmem:[%s1 + $0x380] sm:$0xf]
    %v243 = vld [vmem:[%s1 + $0x384] sm:$0xf]
    %v244 = vld [vmem:[%s1 + $0x388] sm:$0xf]
    %v245 = vld [vmem:[%s1 + $0x38c] sm:$0xf]
    %v246 = vld [vmem:[%s1 + $0x390] sm:$0xf]
    %v247 = vld [vmem:[%s1 + $0x394] sm:$0xf]
    %v248 = vld [vmem:[%s1 + $0x398] sm:$0xf]
    %v249 = vld [vmem:[%s1 + $0x39c] sm:$0xf]
    %v250 = vld [vmem:[%s1 + $0x3a0] sm:$0xf]
    %v251 = vld [vmem:[%s1 + $0x3a4] sm:$0xf]
    %v252 = vld [vmem:[%s1 + $0x3a8] sm:$0xf]
    %v253 = vld [vmem:[%s1 + $0x3ac] sm:$0xf]
    %v254 = vld [vmem:[%s1 + $0x3b0] sm:$0xf]
    %v255 = vld [vmem:[%s1 + $0x3b4] sm:$0xf]
    %v256 = vld [vmem:[%s1 + $0x3b8] sm:$0xf]
    %v257 = vld [vmem:[%s1 + $0x3bc] sm:$0xf]
    %v258 = vld [vmem:[%s1 + $0x3c0] sm:$0xf]
    %v259 = vld [vmem:[%s1 + $0x3c4] sm:$0xf]
    %v260 = vld [vmem:[%s1 + $0x3c8] sm:$0xf]
    %v261 = vld [vmem:[%s1 + $0x3cc] sm:$0xf]
    %v262 = vld [vmem:[%s1 + $0x3d0] sm:$0xf]
    %v263 = vld [vmem:[%s1 + $0x3d4] sm:$0xf]
    %v264 = vld [vmem:[%s1 + $0x3d8] sm:$0xf]
    %v265 = vld [vmem:[%s1 + $0x3dc] sm:$0xf]
    %v266 = vld [vmem:[%s1 + $0x3e0] sm:$0xf]
    %v267 = vld [vmem:[%s1 + $0x3e4] sm:$0xf]
    %v268 = vld [vmem:[%s1 + $0x3e8] sm:$0xf]
    %v269 = vld [vmem:[%s1 + $0x3ec] sm:$0xf]
    %v270 = vld [vmem:[%s1 + $0x3f0] sm:$0xf]
    %v271 = vld [vmem:[%s1 + $0x3f4] sm:$0xf]
    %v272 = vld [vmem:[%s1 + $0x3f8] sm:$0xf]
    %v273 = vld [vmem:[%s1 + $0x3fc] sm:$0xf]
    %v274 = vld [vmem:[%s2] sm:$0x1]
    %v276 = vlaneseq
    %v277 = vshrl.u32 %v276, 7
    %v278 = vsub.s32 0, %v277
    %v279 = vrot.slane %v274, %v278
    %v283 = vcombine.high %v16, %v16
    %v285 = vunpack.c.l.s4 1966171168
    %v286 = vunpack.c.0.s8 %v285
    %v287 = vlaneseq
    %v288 = vshrl.u32 %v287, 7
    %v289 = vsub.s32 %v286, %v288
    %v290 = vrot.slane %v16, %v289
    %v292 = vunpack.c.l.s4 1966171168
    %v293 = vunpack.c.0.s8 %v292
    %v294 = vlaneseq
    %v295 = vshrl.u32 %v294, 7
    %v296 = vsub.s32 %v293, %v295
    %v297 = vrot.slane %v283, %v296
    %v298 = vcombine.high %v290, %v290
    %v299 = vcombine.high %v297, %v297
    %v301 = vunpack.c.l.s4 1966171168
    %v302 = vunpack.c.0.s8 %v301
    %v303 = vlaneseq
    %v304 = vshrl.u32 %v303, 7
    %v305 = vsub.s32 %v302, %v304
    %v306 = vrot.slane %v290, %v305
    %v308 = vunpack.c.l.s4 1966171168
    %v309 = vunpack.c.0.s8 %v308
    %v310 = vlaneseq
    %v311 = vshrl.u32 %v310, 7
    %v312 = vsub.s32 %v309, %v311
    %v313 = vrot.slane %v297, %v312
    %v315 = vunpack.c.l.s4 1966171168
    %v316 = vunpack.c.0.s8 %v315
    %v317 = vlaneseq
    %v318 = vshrl.u32 %v317, 7
    %v319 = vsub.s32 %v316, %v318
    %v320 = vrot.slane %v298, %v319
    %v322 = vunpack.c.l.s4 1966171168
    %v323 = vunpack.c.0.s8 %v322
    %v324 = vlaneseq
    %v325 = vshrl.u32 %v324, 7
    %v326 = vsub.s32 %v323, %v325
    %v327 = vrot.slane %v299, %v326
    %v328 = vcombine.high %v306, %v306
    %v329 = vcombine.high %v313, %v313
    %v330 = vcombine.high %v320, %v320
    %v331 = vcombine.high %v327, %v327
    %v332 = vcombine.high %v17, %v17
    %v334 = vunpack.c.l.s4 1966171168
    %v335 = vunpack.c.0.s8 %v334
    %v336 = vlaneseq
    %v337 = vshrl.u32 %v336, 7
    %v338 = vsub.s32 %v335, %v337
    %v339 = vrot.slane %v17, %v338
    %v341 = vunpack.c.l.s4 1966171168
    %v342 = vunpack.c.0.s8 %v341
    %v343 = vlaneseq
    %v344 = vshrl.u32 %v343, 7
    %v345 = vsub.s32 %v342, %v344
    %v346 = vrot.slane %v332, %v345
    %v347 = vcombine.high %v339, %v339
    %v348 = vcombine.high %v346, %v346
    %v350 = vunpack.c.l.s4 1966171168
    %v351 = vunpack.c.0.s8 %v350
    %v352 = vlaneseq
    %v353 = vshrl.u32 %v352, 7
    %v354 = vsub.s32 %v351, %v353
    %v355 = vrot.slane %v339, %v354
    %v357 = vunpack.c.l.s4 1966171168
    %v358 = vunpack.c.0.s8 %v357
    %v359 = vlaneseq
    %v360 = vshrl.u32 %v359, 7
    %v361 = vsub.s32 %v358, %v360
    %v362 = vrot.slane %v346, %v361
    %v364 = vunpack.c.l.s4 1966171168
    %v365 = vunpack.c.0.s8 %v364
    %v366 = vlaneseq
    %v367 = vshrl.u32 %v366, 7
    %v368 = vsub.s32 %v365, %v367
    %v369 = vrot.slane %v347, %v368
    %v371 = vunpack.c.l.s4 1966171168
    %v372 = vunpack.c.0.s8 %v371
    %v373 = vlaneseq
    %v374 = vshrl.u32 %v373, 7
    %v375 = vsub.s32 %v372, %v374
    %v376 = vrot.slane %v348, %v375
    %v377 = vcombine.high %v355, %v355
    %v378 = vcombine.high %v362, %v362
    %v379 = vcombine.high %v369, %v369
    %v380 = vcombine.high %v376, %v376
    %v653 = vunpack.c.l.b16 %v18
    %v654 = vunpack.c.l.b16 %v19
    %v655 = vunpack.c.l.b16 %v20
    %v656 = vunpack.c.l.b16 %v21
    %v657 = vunpack.c.l.b16 %v22
    %v658 = vunpack.c.l.b16 %v23
    %v659 = vunpack.c.l.b16 %v24
    %v660 = vunpack.c.l.b16 %v25
    %v661 = vunpack.c.l.b16 %v26
    %v662 = vunpack.c.l.b16 %v27
    %v663 = vunpack.c.l.b16 %v28
    %v664 = vunpack.c.l.b16 %v29
    %v665 = vunpack.c.l.b16 %v30
    %v666 = vunpack.c.l.b16 %v31
    %v667 = vunpack.c.l.b16 %v32
    %v668 = vunpack.c.l.b16 %v33
    %v669 = vunpack.c.l.b16 %v34
    %v670 = vunpack.c.l.b16 %v35
    %v671 = vunpack.c.l.b16 %v36
    %v672 = vunpack.c.l.b16 %v37
    %v673 = vunpack.c.l.b16 %v38
    %v674 = vunpack.c.l.b16 %v39
    %v675 = vunpack.c.l.b16 %v40
    %v676 = vunpack.c.l.b16 %v41
    %v677 = vunpack.c.l.b16 %v42
    %v678 = vunpack.c.l.b16 %v43
    %v679 = vunpack.c.l.b16 %v44
    %v680 = vunpack.c.l.b16 %v45
    %v681 = vunpack.c.l.b16 %v46
    %v682 = vunpack.c.l.b16 %v47
    %v683 = vunpack.c.l.b16 %v48
    %v684 = vunpack.c.l.b16 %v49
    %v685 = vunpack.c.l.b16 %v50
    %v686 = vunpack.c.l.b16 %v51
    %v687 = vunpack.c.l.b16 %v52
    %v688 = vunpack.c.l.b16 %v53
    %v689 = vunpack.c.l.b16 %v54
    %v690 = vunpack.c.l.b16 %v55
    %v691 = vunpack.c.l.b16 %v56
    %v692 = vunpack.c.l.b16 %v57
    %v693 = vunpack.c.l.b16 %v58
    %v694 = vunpack.c.l.b16 %v59
    %v695 = vunpack.c.l.b16 %v60
    %v696 = vunpack.c.l.b16 %v61
    %v697 = vunpack.c.l.b16 %v62
    %v698 = vunpack.c.l.b16 %v63
    %v699 = vunpack.c.l.b16 %v64
    %v700 = vunpack.c.l.b16 %v65
    %v701 = vunpack.c.l.b16 %v66
    %v702 = vunpack.c.l.b16 %v67
    %v703 = vunpack.c.l.b16 %v68
    %v704 = vunpack.c.l.b16 %v69
    %v705 = vunpack.c.l.b16 %v70
    %v706 = vunpack.c.l.b16 %v71
    %v707 = vunpack.c.l.b16 %v72
    %v708 = vunpack.c.l.b16 %v73
    %v709 = vunpack.c.l.b16 %v74
    %v710 = vunpack.c.l.b16 %v75
    %v711 = vunpack.c.l.b16 %v76
    %v712 = vunpack.c.l.b16 %v77
    %v713 = vunpack.c.l.b16 %v78
    %v714 = vunpack.c.l.b16 %v79
    %v715 = vunpack.c.l.b16 %v80
    %v716 = vunpack.c.l.b16 %v81
    %v717 = vunpack.c.l.b16 %v82
    %v718 = vunpack.c.l.b16 %v83
    %v719 = vunpack.c.l.b16 %v84
    %v720 = vunpack.c.l.b16 %v85
    %v721 = vunpack.c.l.b16 %v86
    %v722 = vunpack.c.l.b16 %v87
    %v723 = vunpack.c.l.b16 %v88
    %v724 = vunpack.c.l.b16 %v89
    %v725 = vunpack.c.l.b16 %v90
    %v726 = vunpack.c.l.b16 %v91
    %v727 = vunpack.c.l.b16 %v92
    %v728 = vunpack.c.l.b16 %v93
    %v729 = vunpack.c.l.b16 %v94
    %v730 = vunpack.c.l.b16 %v95
    %v731 = vunpack.c.l.b16 %v96
    %v732 = vunpack.c.l.b16 %v97
    %v733 = vunpack.c.l.b16 %v98
    %v734 = vunpack.c.l.b16 %v99
    %v735 = vunpack.c.l.b16 %v100
    %v736 = vunpack.c.l.b16 %v101
    %v737 = vunpack.c.l.b16 %v102
    %v738 = vunpack.c.l.b16 %v103
    %v739 = vunpack.c.l.b16 %v104
    %v740 = vunpack.c.l.b16 %v105
    %v741 = vunpack.c.l.b16 %v106
    %v742 = vunpack.c.l.b16 %v107
    %v743 = vunpack.c.l.b16 %v108
    %v744 = vunpack.c.l.b16 %v109
    %v745 = vunpack.c.l.b16 %v110
    %v746 = vunpack.c.l.b16 %v111
    %v747 = vunpack.c.l.b16 %v112
    %v748 = vunpack.c.l.b16 %v113
    %v749 = vunpack.c.l.b16 %v114
    %v750 = vunpack.c.l.b16 %v115
    %v751 = vunpack.c.l.b16 %v116
    %v752 = vunpack.c.l.b16 %v117
    %v753 = vunpack.c.l.b16 %v118
    %v754 = vunpack.c.l.b16 %v119
    %v755 = vunpack.c.l.b16 %v120
    %v756 = vunpack.c.l.b16 %v121
    %v757 = vunpack.c.l.b16 %v122
    %v758 = vunpack.c.l.b16 %v123
    %v759 = vunpack.c.l.b16 %v124
    %v760 = vunpack.c.l.b16 %v125
    %v761 = vunpack.c.l.b16 %v126
    %v762 = vunpack.c.l.b16 %v127
    %v763 = vunpack.c.l.b16 %v128
    %v764 = vunpack.c.l.b16 %v129
    %v765 = vunpack.c.l.b16 %v130
    %v766 = vunpack.c.l.b16 %v131
    %v767 = vunpack.c.l.b16 %v132
    %v768 = vunpack.c.l.b16 %v133
    %v769 = vunpack.c.l.b16 %v134
    %v770 = vunpack.c.l.b16 %v135
    %v771 = vunpack.c.l.b16 %v136
    %v772 = vunpack.c.l.b16 %v137
    %v773 = vunpack.c.l.b16 %v138
    %v774 = vunpack.c.l.b16 %v139
    %v775 = vunpack.c.l.b16 %v140
    %v776 = vunpack.c.l.b16 %v141
    %v777 = vunpack.c.l.b16 %v142
    %v778 = vunpack.c.l.b16 %v143
    %v779 = vunpack.c.l.b16 %v144
    %v780 = vunpack.c.l.b16 %v145
    %v781 = vunpack.c.l.b16 %v146
    %v782 = vunpack.c.l.b16 %v147
    %v783 = vunpack.c.l.b16 %v148
    %v784 = vunpack.c.l.b16 %v149
    %v785 = vunpack.c.l.b16 %v150
    %v786 = vunpack.c.l.b16 %v151
    %v787 = vunpack.c.l.b16 %v152
    %v788 = vunpack.c.l.b16 %v153
    %v789 = vunpack.c.l.b16 %v154
    %v790 = vunpack.c.l.b16 %v155
    %v791 = vunpack.c.l.b16 %v156
    %v792 = vunpack.c.l.b16 %v157
    %v793 = vunpack.c.l.b16 %v158
    %v794 = vunpack.c.l.b16 %v159
    %v795 = vunpack.c.l.b16 %v160
    %v796 = vunpack.c.l.b16 %v161
    %v797 = vunpack.c.l.b16 %v162
    %v798 = vunpack.c.l.b16 %v163
    %v799 = vunpack.c.l.b16 %v164
    %v800 = vunpack.c.l.b16 %v165
    %v801 = vunpack.c.l.b16 %v166
    %v802 = vunpack.c.l.b16 %v167
    %v803 = vunpack.c.l.b16 %v168
    %v804 = vunpack.c.l.b16 %v169
    %v805 = vunpack.c.l.b16 %v170
    %v806 = vunpack.c.l.b16 %v171
    %v807 = vunpack.c.l.b16 %v172
    %v808 = vunpack.c.l.b16 %v173
    %v809 = vunpack.c.l.b16 %v174
    %v810 = vunpack.c.l.b16 %v175
    %v811 = vunpack.c.l.b16 %v176
    %v812 = vunpack.c.l.b16 %v177
    %v813 = vunpack.c.l.b16 %v178
    %v814 = vunpack.c.l.b16 %v179
    %v815 = vunpack.c.l.b16 %v180
    %v816 = vunpack.c.l.b16 %v181
    %v817 = vunpack.c.l.b16 %v182
    %v818 = vunpack.c.l.b16 %v183
    %v819 = vunpack.c.l.b16 %v184
    %v820 = vunpack.c.l.b16 %v185
    %v821 = vunpack.c.l.b16 %v186
    %v822 = vunpack.c.l.b16 %v187
    %v823 = vunpack.c.l.b16 %v188
    %v824 = vunpack.c.l.b16 %v189
    %v825 = vunpack.c.l.b16 %v190
    %v826 = vunpack.c.l.b16 %v191
    %v827 = vunpack.c.l.b16 %v192
    %v828 = vunpack.c.l.b16 %v193
    %v829 = vunpack.c.l.b16 %v194
    %v830 = vunpack.c.l.b16 %v195
    %v831 = vunpack.c.l.b16 %v196
    %v832 = vunpack.c.l.b16 %v197
    %v833 = vunpack.c.l.b16 %v198
    %v834 = vunpack.c.l.b16 %v199
    %v835 = vunpack.c.l.b16 %v200
    %v836 = vunpack.c.l.b16 %v201
    %v837 = vunpack.c.l.b16 %v202
    %v838 = vunpack.c.l.b16 %v203
    %v839 = vunpack.c.l.b16 %v204
    %v840 = vunpack.c.l.b16 %v205
    %v841 = vunpack.c.l.b16 %v206
    %v842 = vunpack.c.l.b16 %v207
    %v843 = vunpack.c.l.b16 %v208
    %v844 = vunpack.c.l.b16 %v209
    %v845 = vunpack.c.l.b16 %v210
    %v846 = vunpack.c.l.b16 %v211
    %v847 = vunpack.c.l.b16 %v212
    %v848 = vunpack.c.l.b16 %v213
    %v849 = vunpack.c.l.b16 %v214
    %v850 = vunpack.c.l.b16 %v215
    %v851 = vunpack.c.l.b16 %v216
    %v852 = vunpack.c.l.b16 %v217
    %v853 = vunpack.c.l.b16 %v218
    %v854 = vunpack.c.l.b16 %v219
    %v855 = vunpack.c.l.b16 %v220
    %v856 = vunpack.c.l.b16 %v221
    %v857 = vunpack.c.l.b16 %v222
    %v858 = vunpack.c.l.b16 %v223
    %v859 = vunpack.c.l.b16 %v224
    %v860 = vunpack.c.l.b16 %v225
    %v861 = vunpack.c.l.b16 %v226
    %v862 = vunpack.c.l.b16 %v227
    %v863 = vunpack.c.l.b16 %v228
    %v864 = vunpack.c.l.b16 %v229
    %v865 = vunpack.c.l.b16 %v230
    %v866 = vunpack.c.l.b16 %v231
    %v867 = vunpack.c.l.b16 %v232
    %v868 = vunpack.c.l.b16 %v233
    %v869 = vunpack.c.l.b16 %v234
    %v870 = vunpack.c.l.b16 %v235
    %v871 = vunpack.c.l.b16 %v236
    %v872 = vunpack.c.l.b16 %v237
    %v873 = vunpack.c.l.b16 %v238
    %v874 = vunpack.c.l.b16 %v239
    %v875 = vunpack.c.l.b16 %v240
    %v876 = vunpack.c.l.b16 %v241
    %v877 = vunpack.c.l.b16 %v242
    %v878 = vunpack.c.l.b16 %v243
    %v879 = vunpack.c.l.b16 %v244
    %v880 = vunpack.c.l.b16 %v245
    %v881 = vunpack.c.l.b16 %v246
    %v882 = vunpack.c.l.b16 %v247
    %v883 = vunpack.c.l.b16 %v248
    %v884 = vunpack.c.l.b16 %v249
    %v885 = vunpack.c.l.b16 %v250
    %v886 = vunpack.c.l.b16 %v251
    %v887 = vunpack.c.l.b16 %v252
    %v888 = vunpack.c.l.b16 %v253
    %v889 = vunpack.c.l.b16 %v254
    %v890 = vunpack.c.l.b16 %v255
    %v891 = vunpack.c.l.b16 %v256
    %v892 = vunpack.c.l.b16 %v257
    %v893 = vunpack.c.l.b16 %v258
    %v894 = vunpack.c.l.b16 %v259
    %v895 = vunpack.c.l.b16 %v260
    %v896 = vunpack.c.l.b16 %v261
    %v897 = vunpack.c.l.b16 %v262
    %v898 = vunpack.c.l.b16 %v263
    %v899 = vunpack.c.l.b16 %v264
    %v900 = vunpack.c.l.b16 %v265
    %v901 = vunpack.c.l.b16 %v266
    %v902 = vunpack.c.l.b16 %v267
    %v903 = vunpack.c.l.b16 %v268
    %v904 = vunpack.c.l.b16 %v269
    %v905 = vunpack.c.l.b16 %v270
    %v906 = vunpack.c.l.b16 %v271
    %v907 = vunpack.c.l.b16 %v272
    %v908 = vunpack.c.l.b16 %v273
    %v909 = vpack.c.b16 %v654, %v653
    %v910 = vpack.c.b16 %v656, %v655
    %v911 = vpack.c.b16 %v658, %v657
    %v912 = vpack.c.b16 %v660, %v659
    %v913 = vpack.c.b16 %v662, %v661
    %v914 = vpack.c.b16 %v664, %v663
    %v915 = vpack.c.b16 %v666, %v665
    %v916 = vpack.c.b16 %v668, %v667
    %v917 = vpack.c.b16 %v670, %v669
    %v918 = vpack.c.b16 %v672, %v671
    %v919 = vpack.c.b16 %v674, %v673
    %v920 = vpack.c.b16 %v676, %v675
    %v921 = vpack.c.b16 %v678, %v677
    %v922 = vpack.c.b16 %v680, %v679
    %v923 = vpack.c.b16 %v682, %v681
    %v924 = vpack.c.b16 %v684, %v683
    %v925 = vpack.c.b16 %v686, %v685
    %v926 = vpack.c.b16 %v688, %v687
    %v927 = vpack.c.b16 %v690, %v689
    %v928 = vpack.c.b16 %v692, %v691
    %v929 = vpack.c.b16 %v694, %v693
    %v930 = vpack.c.b16 %v696, %v695
    %v931 = vpack.c.b16 %v698, %v697
    %v932 = vpack.c.b16 %v700, %v699
    %v933 = vpack.c.b16 %v702, %v701
    %v934 = vpack.c.b16 %v704, %v703
    %v935 = vpack.c.b16 %v706, %v705
    %v936 = vpack.c.b16 %v708, %v707
    %v937 = vpack.c.b16 %v710, %v709
    %v938 = vpack.c.b16 %v712, %v711
    %v939 = vpack.c.b16 %v714, %v713
    %v940 = vpack.c.b16 %v716, %v715
    %v941 = vpack.c.b16 %v718, %v717
    %v942 = vpack.c.b16 %v720, %v719
    %v943 = vpack.c.b16 %v722, %v721
    %v944 = vpack.c.b16 %v724, %v723
    %v945 = vpack.c.b16 %v726, %v725
    %v946 = vpack.c.b16 %v728, %v727
    %v947 = vpack.c.b16 %v730, %v729
    %v948 = vpack.c.b16 %v732, %v731
    %v949 = vpack.c.b16 %v734, %v733
    %v950 = vpack.c.b16 %v736, %v735
    %v951 = vpack.c.b16 %v738, %v737
    %v952 = vpack.c.b16 %v740, %v739
    %v953 = vpack.c.b16 %v742, %v741
    %v954 = vpack.c.b16 %v744, %v743
    %v955 = vpack.c.b16 %v746, %v745
    %v956 = vpack.c.b16 %v748, %v747
    %v957 = vpack.c.b16 %v750, %v749
    %v958 = vpack.c.b16 %v752, %v751
    %v959 = vpack.c.b16 %v754, %v753
    %v960 = vpack.c.b16 %v756, %v755
    %v961 = vpack.c.b16 %v758, %v757
    %v962 = vpack.c.b16 %v760, %v759
    %v963 = vpack.c.b16 %v762, %v761
    %v964 = vpack.c.b16 %v764, %v763
    %v965 = vpack.c.b16 %v766, %v765
    %v966 = vpack.c.b16 %v768, %v767
    %v967 = vpack.c.b16 %v770, %v769
    %v968 = vpack.c.b16 %v772, %v771
    %v969 = vpack.c.b16 %v774, %v773
    %v970 = vpack.c.b16 %v776, %v775
    %v971 = vpack.c.b16 %v778, %v777
    %v972 = vpack.c.b16 %v780, %v779
    %v973 = vpack.c.b16 %v782, %v781
    %v974 = vpack.c.b16 %v784, %v783
    %v975 = vpack.c.b16 %v786, %v785
    %v976 = vpack.c.b16 %v788, %v787
    %v977 = vpack.c.b16 %v790, %v789
    %v978 = vpack.c.b16 %v792, %v791
    %v979 = vpack.c.b16 %v794, %v793
    %v980 = vpack.c.b16 %v796, %v795
    %v981 = vpack.c.b16 %v798, %v797
    %v982 = vpack.c.b16 %v800, %v799
    %v983 = vpack.c.b16 %v802, %v801
    %v984 = vpack.c.b16 %v804, %v803
    %v985 = vpack.c.b16 %v806, %v805
    %v986 = vpack.c.b16 %v808, %v807
    %v987 = vpack.c.b16 %v810, %v809
    %v988 = vpack.c.b16 %v812, %v811
    %v989 = vpack.c.b16 %v814, %v813
    %v990 = vpack.c.b16 %v816, %v815
    %v991 = vpack.c.b16 %v818, %v817
    %v992 = vpack.c.b16 %v820, %v819
    %v993 = vpack.c.b16 %v822, %v821
    %v994 = vpack.c.b16 %v824, %v823
    %v995 = vpack.c.b16 %v826, %v825
    %v996 = vpack.c.b16 %v828, %v827
    %v997 = vpack.c.b16 %v830, %v829
    %v998 = vpack.c.b16 %v832, %v831
    %v999 = vpack.c.b16 %v834, %v833
    %v1000 = vpack.c.b16 %v836, %v835
    %v1001 = vpack.c.b16 %v838, %v837
    %v1002 = vpack.c.b16 %v840, %v839
    %v1003 = vpack.c.b16 %v842, %v841
    %v1004 = vpack.c.b16 %v844, %v843
    %v1005 = vpack.c.b16 %v846, %v845
    %v1006 = vpack.c.b16 %v848, %v847
    %v1007 = vpack.c.b16 %v850, %v849
    %v1008 = vpack.c.b16 %v852, %v851
    %v1009 = vpack.c.b16 %v854, %v853
    %v1010 = vpack.c.b16 %v856, %v855
    %v1011 = vpack.c.b16 %v858, %v857
    %v1012 = vpack.c.b16 %v860, %v859
    %v1013 = vpack.c.b16 %v862, %v861
    %v1014 = vpack.c.b16 %v864, %v863
    %v1015 = vpack.c.b16 %v866, %v865
    %v1016 = vpack.c.b16 %v868, %v867
    %v1017 = vpack.c.b16 %v870, %v869
    %v1018 = vpack.c.b16 %v872, %v871
    %v1019 = vpack.c.b16 %v874, %v873
    %v1020 = vpack.c.b16 %v876, %v875
    %v1021 = vpack.c.b16 %v878, %v877
    %v1022 = vpack.c.b16 %v880, %v879
    %v1023 = vpack.c.b16 %v882, %v881
    %v1024 = vpack.c.b16 %v884, %v883
    %v1025 = vpack.c.b16 %v886, %v885
    %v1026 = vpack.c.b16 %v888, %v887
    %v1027 = vpack.c.b16 %v890, %v889
    %v1028 = vpack.c.b16 %v892, %v891
    %v1029 = vpack.c.b16 %v894, %v893
    %v1030 = vpack.c.b16 %v896, %v895
    %v1031 = vpack.c.b16 %v898, %v897
    %v1032 = vpack.c.b16 %v900, %v899
    %v1033 = vpack.c.b16 %v902, %v901
    %v1034 = vpack.c.b16 %v904, %v903
    %v1035 = vpack.c.b16 %v906, %v905
    %v1036 = vpack.c.b16 %v908, %v907
    %1165 = vmatprep.subr.bf16.mxu0 0
    %1166 = vmatpush1.bf16.msra.mxu0 %v909
    %1167 = vmatprep.subr.bf16.mxu0 0
    %1168 = vmatpush1.bf16.msra.mxu0 %v910
    %1169 = vmatprep.subr.bf16.mxu0 0
    %1170 = vmatpush1.bf16.msra.mxu0 %v911
    %1171 = vmatprep.subr.bf16.mxu0 0
    %1172 = vmatpush1.bf16.msra.mxu0 %v912
    %1173 = vmatprep.subr.bf16.mxu0 0
    %1174 = vmatpush1.bf16.msra.mxu0 %v913
    %1175 = vmatprep.subr.bf16.mxu0 0
    %1176 = vmatpush1.bf16.msra.mxu0 %v914
    %1177 = vmatprep.subr.bf16.mxu0 0
    %1178 = vmatpush1.bf16.msra.mxu0 %v915
    %1179 = vmatprep.subr.bf16.mxu0 0
    %1180 = vmatpush1.bf16.msra.mxu0 %v916
    %1181 = vmatprep.subr.bf16.mxu0 0
    %1182 = vmatpush1.bf16.msra.mxu0 %v917
    %1183 = vmatprep.subr.bf16.mxu0 0
    %1184 = vmatpush1.bf16.msra.mxu0 %v918
    %1185 = vmatprep.subr.bf16.mxu0 0
    %1186 = vmatpush1.bf16.msra.mxu0 %v919
    %1187 = vmatprep.subr.bf16.mxu0 0
    %1188 = vmatpush1.bf16.msra.mxu0 %v920
    %1189 = vmatprep.subr.bf16.mxu0 0
    %1190 = vmatpush1.bf16.msra.mxu0 %v921
    %1191 = vmatprep.subr.bf16.mxu0 0
    %1192 = vmatpush1.bf16.msra.mxu0 %v922
    %1193 = vmatprep.subr.bf16.mxu0 0
    %1194 = vmatpush1.bf16.msra.mxu0 %v923
    %1195 = vmatprep.subr.bf16.mxu0 0
    %1196 = vmatpush1.bf16.msra.mxu0 %v924
    %1197 = vmatprep.mubr.bf16.mxu0 %v320
    %1198 = vmatmul.mubr.bf16.gmra.mrb[0].mxu0 %v306
    %v1199 = vpop.f32.mrb[0].mxu0
    %v1200 = vadd.f32 %v279, %v1199
    %v1201 = vpop.f32.mrb[0].mxu0
    %v1202 = vpop.f32.mrb[0].mxu0
    %v1203 = vpop.f32.mrb[0].mxu0
    %1204 = vdwg.mxu0
    %1205 = vmatprep.subr.bf16.mxu0 0
    %1206 = vmatpush1.bf16.msra.mxu0 %v925
    %1207 = vmatprep.subr.bf16.mxu0 0
    %1208 = vmatpush1.bf16.msra.mxu0 %v926
    %1209 = vmatprep.subr.bf16.mxu0 0
    %1210 = vmatpush1.bf16.msra.mxu0 %v927
    %1211 = vmatprep.subr.bf16.mxu0 0
    %1212 = vmatpush1.bf16.msra.mxu0 %v928
    %1213 = vmatprep.subr.bf16.mxu0 0
    %1214 = vmatpush1.bf16.msra.mxu0 %v929
    %1215 = vmatprep.subr.bf16.mxu0 0
    %1216 = vmatpush1.bf16.msra.mxu0 %v930
    %1217 = vmatprep.subr.bf16.mxu0 0
    %1218 = vmatpush1.bf16.msra.mxu0 %v931
    %1219 = vmatprep.subr.bf16.mxu0 0
    %1220 = vmatpush1.bf16.msra.mxu0 %v932
    %1221 = vmatprep.subr.bf16.mxu0 0
    %1222 = vmatpush1.bf16.msra.mxu0 %v933
    %1223 = vmatprep.subr.bf16.mxu0 0
    %1224 = vmatpush1.bf16.msra.mxu0 %v934
    %1225 = vmatprep.subr.bf16.mxu0 0
    %1226 = vmatpush1.bf16.msra.mxu0 %v935
    %1227 = vmatprep.subr.bf16.mxu0 0
    %1228 = vmatpush1.bf16.msra.mxu0 %v936
    %1229 = vmatprep.subr.bf16.mxu0 0
    %1230 = vmatpush1.bf16.msra.mxu0 %v937
    %1231 = vmatprep.subr.bf16.mxu0 0
    %1232 = vmatpush1.bf16.msra.mxu0 %v938
    %1233 = vmatprep.subr.bf16.mxu0 0
    %1234 = vmatpush1.bf16.msra.mxu0 %v939
    %1235 = vmatprep.subr.bf16.mxu0 0
    %1236 = vmatpush1.bf16.msra.mxu0 %v940
    %1237 = vmatprep.mubr.bf16.mxu0 %v330
    %1238 = vmatmul.mubr.bf16.gmra.mrb[0].mxu0 %v328
    %v1239 = vpop.f32.mrb[0].mxu0
    %v1240 = vadd.f32 %v1200, %v1239
    %v1241 = vpop.f32.mrb[0].mxu0
    %v1242 = vpop.f32.mrb[0].mxu0
    %v1243 = vpop.f32.mrb[0].mxu0
    %1244 = vdwg.mxu0
    %1245 = vmatprep.subr.bf16.mxu0 0
    %1246 = vmatpush1.bf16.msra.mxu0 %v941
    %1247 = vmatprep.subr.bf16.mxu0 0
    %1248 = vmatpush1.bf16.msra.mxu0 %v942
    %1249 = vmatprep.subr.bf16.mxu0 0
    %1250 = vmatpush1.bf16.msra.mxu0 %v943
    %1251 = vmatprep.subr.bf16.mxu0 0
    %1252 = vmatpush1.bf16.msra.mxu0 %v944
    %1253 = vmatprep.subr.bf16.mxu0 0
    %1254 = vmatpush1.bf16.msra.mxu0 %v945
    %1255 = vmatprep.subr.bf16.mxu0 0
    %1256 = vmatpush1.bf16.msra.mxu0 %v946
    %1257 = vmatprep.subr.bf16.mxu0 0
    %1258 = vmatpush1.bf16.msra.mxu0 %v947
    %1259 = vmatprep.subr.bf16.mxu0 0
    %1260 = vmatpush1.bf16.msra.mxu0 %v948
    %1261 = vmatprep.subr.bf16.mxu0 0
    %1262 = vmatpush1.bf16.msra.mxu0 %v949
    %1263 = vmatprep.subr.bf16.mxu0 0
    %1264 = vmatpush1.bf16.msra.mxu0 %v950
    %1265 = vmatprep.subr.bf16.mxu0 0
    %1266 = vmatpush1.bf16.msra.mxu0 %v951
    %1267 = vmatprep.subr.bf16.mxu0 0
    %1268 = vmatpush1.bf16.msra.mxu0 %v952
    %1269 = vmatprep.subr.bf16.mxu0 0
    %1270 = vmatpush1.bf16.msra.mxu0 %v953
    %1271 = vmatprep.subr.bf16.mxu0 0
    %1272 = vmatpush1.bf16.msra.mxu0 %v954
    %1273 = vmatprep.subr.bf16.mxu0 0
    %1274 = vmatpush1.bf16.msra.mxu0 %v955
    %1275 = vmatprep.subr.bf16.mxu0 0
    %1276 = vmatpush1.bf16.msra.mxu0 %v956
    %1277 = vmatprep.mubr.bf16.mxu0 %v327
    %1278 = vmatmul.mubr.bf16.gmra.mrb[0].mxu0 %v313
    %v1279 = vpop.f32.mrb[0].mxu0
    %v1280 = vadd.f32 %v1240, %v1279
    %v1281 = vpop.f32.mrb[0].mxu0
    %v1282 = vpop.f32.mrb[0].mxu0
    %v1283 = vpop.f32.mrb[0].mxu0
    %1284 = vdwg.mxu0
    %1285 = vmatprep.subr.bf16.mxu0 0
    %1286 = vmatpush1.bf16.msra.mxu0 %v957
    %1287 = vmatprep.subr.bf16.mxu0 0
    %1288 = vmatpush1.bf16.msra.mxu0 %v958
    %1289 = vmatprep.subr.bf16.mxu0 0
    %1290 = vmatpush1.bf16.msra.mxu0 %v959
    %1291 = vmatprep.subr.bf16.mxu0 0
    %1292 = vmatpush1.bf16.msra.mxu0 %v960
    %1293 = vmatprep.subr.bf16.mxu0 0
    %1294 = vmatpush1.bf16.msra.mxu0 %v961
    %1295 = vmatprep.subr.bf16.mxu0 0
    %1296 = vmatpush1.bf16.msra.mxu0 %v962
    %1297 = vmatprep.subr.bf16.mxu0 0
    %1298 = vmatpush1.bf16.msra.mxu0 %v963
    %1299 = vmatprep.subr.bf16.mxu0 0
    %1300 = vmatpush1.bf16.msra.mxu0 %v964
    %1301 = vmatprep.subr.bf16.mxu0 0
    %1302 = vmatpush1.bf16.msra.mxu0 %v965
    %1303 = vmatprep.subr.bf16.mxu0 0
    %1304 = vmatpush1.bf16.msra.mxu0 %v966
    %1305 = vmatprep.subr.bf16.mxu0 0
    %1306 = vmatpush1.bf16.msra.mxu0 %v967
    %1307 = vmatprep.subr.bf16.mxu0 0
    %1308 = vmatpush1.bf16.msra.mxu0 %v968
    %1309 = vmatprep.subr.bf16.mxu0 0
    %1310 = vmatpush1.bf16.msra.mxu0 %v969
    %1311 = vmatprep.subr.bf16.mxu0 0
    %1312 = vmatpush1.bf16.msra.mxu0 %v970
    %1313 = vmatprep.subr.bf16.mxu0 0
    %1314 = vmatpush1.bf16.msra.mxu0 %v971
    %1315 = vmatprep.subr.bf16.mxu0 0
    %1316 = vmatpush1.bf16.msra.mxu0 %v972
    %1317 = vmatprep.mubr.bf16.mxu0 %v331
    %1318 = vmatmul.mubr.bf16.gmra.mrb[0].mxu0 %v329
    %v1319 = vpop.f32.mrb[0].mxu0
    %v1320 = vadd.f32 %v1280, %v1319
    %v1321 = vpop.f32.mrb[0].mxu0
    %v1322 = vpop.f32.mrb[0].mxu0
    %v1323 = vpop.f32.mrb[0].mxu0
    %1324 = vdwg.mxu0
    %1325 = vmatprep.subr.bf16.mxu0 0
    %1326 = vmatpush1.bf16.msra.mxu0 %v973
    %1327 = vmatprep.subr.bf16.mxu0 0
    %1328 = vmatpush1.bf16.msra.mxu0 %v974
    %1329 = vmatprep.subr.bf16.mxu0 0
    %1330 = vmatpush1.bf16.msra.mxu0 %v975
    %1331 = vmatprep.subr.bf16.mxu0 0
    %1332 = vmatpush1.bf16.msra.mxu0 %v976
    %1333 = vmatprep.subr.bf16.mxu0 0
    %1334 = vmatpush1.bf16.msra.mxu0 %v977
    %1335 = vmatprep.subr.bf16.mxu0 0
    %1336 = vmatpush1.bf16.msra.mxu0 %v978
    %1337 = vmatprep.subr.bf16.mxu0 0
    %1338 = vmatpush1.bf16.msra.mxu0 %v979
    %1339 = vmatprep.subr.bf16.mxu0 0
    %1340 = vmatpush1.bf16.msra.mxu0 %v980
    %1341 = vmatprep.subr.bf16.mxu0 0
    %1342 = vmatpush1.bf16.msra.mxu0 %v981
    %1343 = vmatprep.subr.bf16.mxu0 0
    %1344 = vmatpush1.bf16.msra.mxu0 %v982
    %1345 = vmatprep.subr.bf16.mxu0 0
    %1346 = vmatpush1.bf16.msra.mxu0 %v983
    %1347 = vmatprep.subr.bf16.mxu0 0
    %1348 = vmatpush1.bf16.msra.mxu0 %v984
    %1349 = vmatprep.subr.bf16.mxu0 0
    %1350 = vmatpush1.bf16.msra.mxu0 %v985
    %1351 = vmatprep.subr.bf16.mxu0 0
    %1352 = vmatpush1.bf16.msra.mxu0 %v986
    %1353 = vmatprep.subr.bf16.mxu0 0
    %1354 = vmatpush1.bf16.msra.mxu0 %v987
    %1355 = vmatprep.subr.bf16.mxu0 0
    %1356 = vmatpush1.bf16.msra.mxu0 %v988
    %1357 = vmatprep.mubr.bf16.mxu0 %v369
    %1358 = vmatmul.mubr.bf16.gmra.mrb[0].mxu0 %v355
    %v1359 = vpop.f32.mrb[0].mxu0
    %v1360 = vadd.f32 %v1320, %v1359
    %v1361 = vpop.f32.mrb[0].mxu0
    %v1362 = vpop.f32.mrb[0].mxu0
    %v1363 = vpop.f32.mrb[0].mxu0
    %1364 = vdwg.mxu0
    %1365 = vmatprep.subr.bf16.mxu0 0
    %1366 = vmatpush1.bf16.msra.mxu0 %v989
    %1367 = vmatprep.subr.bf16.mxu0 0
    %1368 = vmatpush1.bf16.msra.mxu0 %v990
    %1369 = vmatprep.subr.bf16.mxu0 0
    %1370 = vmatpush1.bf16.msra.mxu0 %v991
    %1371 = vmatprep.subr.bf16.mxu0 0
    %1372 = vmatpush1.bf16.msra.mxu0 %v992
    %1373 = vmatprep.subr.bf16.mxu0 0
    %1374 = vmatpush1.bf16.msra.mxu0 %v993
    %1375 = vmatprep.subr.bf16.mxu0 0
    %1376 = vmatpush1.bf16.msra.mxu0 %v994
    %1377 = vmatprep.subr.bf16.mxu0 0
    %1378 = vmatpush1.bf16.msra.mxu0 %v995
    %1379 = vmatprep.subr.bf16.mxu0 0
    %1380 = vmatpush1.bf16.msra.mxu0 %v996
    %1381 = vmatprep.subr.bf16.mxu0 0
    %1382 = vmatpush1.bf16.msra.mxu0 %v997
    %1383 = vmatprep.subr.bf16.mxu0 0
    %1384 = vmatpush1.bf16.msra.mxu0 %v998
    %1385 = vmatprep.subr.bf16.mxu0 0
    %1386 = vmatpush1.bf16.msra.mxu0 %v999
    %1387 = vmatprep.subr.bf16.mxu0 0
    %1388 = vmatpush1.bf16.msra.mxu0 %v1000
    %1389 = vmatprep.subr.bf16.mxu0 0
    %1390 = vmatpush1.bf16.msra.mxu0 %v1001
    %1391 = vmatprep.subr.bf16.mxu0 0
    %1392 = vmatpush1.bf16.msra.mxu0 %v1002
    %1393 = vmatprep.subr.bf16.mxu0 0
    %1394 = vmatpush1.bf16.msra.mxu0 %v1003
    %1395 = vmatprep.subr.bf16.mxu0 0
    %1396 = vmatpush1.bf16.msra.mxu0 %v1004
    %1397 = vmatprep.mubr.bf16.mxu0 %v379
    %1398 = vmatmul.mubr.bf16.gmra.mrb[0].mxu0 %v377
    %v1399 = vpop.f32.mrb[0].mxu0
    %v1400 = vadd.f32 %v1360, %v1399
    %v1401 = vpop.f32.mrb[0].mxu0
    %v1402 = vpop.f32.mrb[0].mxu0
    %v1403 = vpop.f32.mrb[0].mxu0
    %1404 = vdwg.mxu0
    %1405 = vmatprep.subr.bf16.mxu0 0
    %1406 = vmatpush1.bf16.msra.mxu0 %v1005
    %1407 = vmatprep.subr.bf16.mxu0 0
    %1408 = vmatpush1.bf16.msra.mxu0 %v1006
    %1409 = vmatprep.subr.bf16.mxu0 0
    %1410 = vmatpush1.bf16.msra.mxu0 %v1007
    %1411 = vmatprep.subr.bf16.mxu0 0
    %1412 = vmatpush1.bf16.msra.mxu0 %v1008
    %1413 = vmatprep.subr.bf16.mxu0 0
    %1414 = vmatpush1.bf16.msra.mxu0 %v1009
    %1415 = vmatprep.subr.bf16.mxu0 0
    %1416 = vmatpush1.bf16.msra.mxu0 %v1010
    %1417 = vmatprep.subr.bf16.mxu0 0
    %1418 = vmatpush1.bf16.msra.mxu0 %v1011
    %1419 = vmatprep.subr.bf16.mxu0 0
    %1420 = vmatpush1.bf16.msra.mxu0 %v1012
    %1421 = vmatprep.subr.bf16.mxu0 0
    %1422 = vmatpush1.bf16.msra.mxu0 %v1013
    %1423 = vmatprep.subr.bf16.mxu0 0
    %1424 = vmatpush1.bf16.msra.mxu0 %v1014
    %1425 = vmatprep.subr.bf16.mxu0 0
    %1426 = vmatpush1.bf16.msra.mxu0 %v1015
    %1427 = vmatprep.subr.bf16.mxu0 0
    %1428 = vmatpush1.bf16.msra.mxu0 %v1016
    %1429 = vmatprep.subr.bf16.mxu0 0
    %1430 = vmatpush1.bf16.msra.mxu0 %v1017
    %1431 = vmatprep.subr.bf16.mxu0 0
    %1432 = vmatpush1.bf16.msra.mxu0 %v1018
    %1433 = vmatprep.subr.bf16.mxu0 0
    %1434 = vmatpush1.bf16.msra.mxu0 %v1019
    %1435 = vmatprep.subr.bf16.mxu0 0
    %1436 = vmatpush1.bf16.msra.mxu0 %v1020
    %1437 = vmatprep.mubr.bf16.mxu0 %v376
    %1438 = vmatmul.mubr.bf16.gmra.mrb[0].mxu0 %v362
    %v1439 = vpop.f32.mrb[0].mxu0
    %v1440 = vadd.f32 %v1400, %v1439
    %v1441 = vpop.f32.mrb[0].mxu0
    %v1442 = vpop.f32.mrb[0].mxu0
    %v1443 = vpop.f32.mrb[0].mxu0
    %1444 = vdwg.mxu0
    %1445 = vmatprep.subr.bf16.mxu0 0
    %1446 = vmatpush1.bf16.msra.mxu0 %v1021
    %1447 = vmatprep.subr.bf16.mxu0 0
    %1448 = vmatpush1.bf16.msra.mxu0 %v1022
    %1449 = vmatprep.subr.bf16.mxu0 0
    %1450 = vmatpush1.bf16.msra.mxu0 %v1023
    %1451 = vmatprep.subr.bf16.mxu0 0
    %1452 = vmatpush1.bf16.msra.mxu0 %v1024
    %1453 = vmatprep.subr.bf16.mxu0 0
    %1454 = vmatpush1.bf16.msra.mxu0 %v1025
    %1455 = vmatprep.subr.bf16.mxu0 0
    %1456 = vmatpush1.bf16.msra.mxu0 %v1026
    %1457 = vmatprep.subr.bf16.mxu0 0
    %1458 = vmatpush1.bf16.msra.mxu0 %v1027
    %1459 = vmatprep.subr.bf16.mxu0 0
    %1460 = vmatpush1.bf16.msra.mxu0 %v1028
    %1461 = vmatprep.subr.bf16.mxu0 0
    %1462 = vmatpush1.bf16.msra.mxu0 %v1029
    %1463 = vmatprep.subr.bf16.mxu0 0
    %1464 = vmatpush1.bf16.msra.mxu0 %v1030
    %1465 = vmatprep.subr.bf16.mxu0 0
    %1466 = vmatpush1.bf16.msra.mxu0 %v1031
    %1467 = vmatprep.subr.bf16.mxu0 0
    %1468 = vmatpush1.bf16.msra.mxu0 %v1032
    %1469 = vmatprep.subr.bf16.mxu0 0
    %1470 = vmatpush1.bf16.msra.mxu0 %v1033
    %1471 = vmatprep.subr.bf16.mxu0 0
    %1472 = vmatpush1.bf16.msra.mxu0 %v1034
    %1473 = vmatprep.subr.bf16.mxu0 0
    %1474 = vmatpush1.bf16.msra.mxu0 %v1035
    %1475 = vmatprep.subr.bf16.mxu0 0
    %1476 = vmatpush1.bf16.msra.mxu0 %v1036
    %1477 = vmatprep.mubr.bf16.mxu0 %v380
    %1478 = vmatmul.mubr.bf16.gmra.mrb[0].mxu0 %v378
    %v1479 = vpop.f32.mrb[0].mxu0
    %v1480 = vadd.f32 %v1440, %v1479
    %v1481 = vpop.f32.mrb[0].mxu0
    %v1482 = vpop.f32.mrb[0].mxu0
    %v1483 = vpop.f32.mrb[0].mxu0
    %1484 = vdwg.mxu0
    %vm1485 = vcmask 517120
    %1486 = vst.msk [vmem:[#allocation2] sm:$0x3] %vm1485, %v1480
    // Predicated region
    $region14: #{resnet_forward.28} parent=1 // pred_check
      _
    $region15: #{resnet_forward.28} parent=1 // pred_check_branch
      %1488 = sbr.rel (0) target = $region17
    $region16: #{resnet_forward.28} parent=1 // pred_region
      %s1490 = ssub.s32 32, 32
      %1491 = vsyncadd [#allocation3], %s1490
      %s1493 = sshll.u32 [#allocation2], 4
      %s1494 = int_to_ptr.vmem [resolvable:$true] %s1493
      %1496 = dma.vmem_to_hbm [thread:$0]  %s1494, 32, %s3, [#allocation3]
    $region17: #{resnet_forward.28} parent=1 // pred_fallthru
      _
    // Predicated region
    $region18: #{resnet_forward.28} parent=1 // pred_check
      _
    $region19: #{resnet_forward.28} parent=1 // pred_check_branch
      %1498 = sbr.rel (0) target = $region21
    $region20: #{resnet_forward.28} parent=1 // pred_region
      %1499 = dma.done [#allocation3], 32
    $region21: #{resnet_forward.28} parent=1 // pred_fallthru
      _
    %1500 = vsyncpa [#allocation3], 1

</llo_original>
